<compile_context>
chip_gen: v7x
topology: tpu7x:2x2x1
jax: 0.10.0
libtpu: 0.0.40
codegen_flags: <defaults>
</compile_context>

<pallas_src>
import math
import functools

import jax
import jax.numpy as jnp
from jax import lax
from jax.experimental import pallas as pl
from jax.experimental.pallas import tpu as pltpu

_CHUNK = 8  # timesteps per inner scan chunk (one sublane group)


def residual_block_kernel(
    x_ref,         # (1, L_TILE, D)             input dtype (f32 or bf16)
    w_norm_ref,    # (1, D)                     f32
    w_in_ref,      # (D, 2*d_inner)             bf16
    conv_w_ref,    # (d_conv, d_inner)          f32   (pre-transposed)
    conv_b_ref,    # (1, d_inner)               f32
    w_xp_ref,      # (d_inner, dt_pad + 2n)     bf16  (x_proj, dt cols zero-padded)
    w_dt_ref,      # (dt_pad, d_inner)          f32   (dt_proj, zero-padded rows)
    b_dt_ref,      # (1, d_inner)               f32
    neg_At_ref,    # (d_state, d_inner)         f32   (= (-exp(A_log)).T)
    D_ref,         # (1, d_inner)               f32
    w_out_ref,     # (d_inner, D)               bf16
    out_ref,       # (1, L_TILE, D)             input dtype
    state_ref,     # scratch (d_state, d_inner)  f32  -- scan-state carry
    conv_tail_ref, # scratch (8, d_inner)        f32  -- last 8 conv inputs of prev tile
    delta_ref,     # scratch (L_TILE, d_inner)   f32
    du_ref,        # scratch (L_TILE, d_inner)   f32
    bc_ref,        # scratch (L_TILE, 2*d_state) f32
    y_ref,         # scratch (L_TILE, d_inner)   f32
    *,
    d_inner, d_state, d_conv, dt_pad, l_tile, eps,
):
    li = pl.program_id(1)      # sequence-tile index (must be innermost/sequential)
    L = l_tile
    n = d_state
    mm_dtype = w_in_ref.dtype  # MXU compute dtype (bf16)
    f32 = jnp.float32

    # ---- re-initialize carried state at the start of each sequence ----
    @pl.when(li == 0)
    def _init():
        state_ref[...] = jnp.zeros_like(state_ref)
        conv_tail_ref[...] = jnp.zeros_like(conv_tail_ref)

    x = x_ref[0].astype(f32)                                   # (L, D) residual source

    # ---- RMSNorm (f32) ----
    ms = jnp.mean(x * x, axis=-1, keepdims=True)
    xn = x * lax.rsqrt(ms + eps) * w_norm_ref[...]             # (L, D)

    # ---- in_proj (bf16 MXU, f32 accumulation) ----
    xr = jnp.dot(xn.astype(mm_dtype), w_in_ref[...],
                 preferred_element_type=f32)                   # (L, 2*d_inner)
    xpart = xr[:, :d_inner]                                    # conv / SSM input
    res = xr[:, d_inner:]                                      # gate branch

    # ---- depthwise causal conv1d, inputs kept in registers ----
    # operand for tap k is xin[i+k] with xin = concat(prev tail (d_conv-1 rows), xpart)
    acc = conv_b_ref[...] + xpart * conv_w_ref[d_conv - 1:d_conv, :]
    if d_conv > 1:
        tail = conv_tail_ref[8 - (d_conv - 1):, :]             # prev tile's last inputs
        for k in range(d_conv - 1):
            shifted = jnp.concatenate(
                [tail[k:, :], xpart[:L - (d_conv - 1) + k, :]], axis=0)
            acc = acc + shifted * conv_w_ref[k:k + 1, :]
        # carry the last 8 inputs of this tile (aligned dense 8-row store)
        conv_tail_ref[...] = xpart[L - 8:, :]
    u = acc * jax.nn.sigmoid(acc)                              # SiLU, (L, d_inner) f32

    # ---- x_proj (low-rank dt_proj kept in-kernel, dt columns zero-padded) ----
    u_mm = u.astype(mm_dtype)
    x_dbl = jnp.dot(u_mm, w_xp_ref[...], preferred_element_type=f32)  # (L, dt_pad+2n)
    delta = jax.nn.softplus(
        jnp.dot(x_dbl[:, :dt_pad], w_dt_ref[...], preferred_element_type=f32)
        + b_dt_ref[...])                                       # (L, d_inner) f32
    delta_ref[...] = delta
    du_ref[...] = delta * u
    bc_ref[...] = x_dbl[:, dt_pad:]                            # (L, 2n): [B | C]

    # ---- selective scan, fused discretization, state layout (n, d_inner) ----
    neg_A = neg_At_ref[...]                                    # (n, d_inner)

    @pl.loop(0, L // _CHUNK)
    def _scan_chunk(c):
        off = pl.multiple_of(c * _CHUNK, _CHUNK)
        delta_c = delta_ref[pl.ds(off, _CHUNK), :]             # (8, d_inner)
        du_c = du_ref[pl.ds(off, _CHUNK), :]                   # (8, d_inner)
        bc_c = bc_ref[pl.ds(off, _CHUNK), :]                   # (8, 2n)
        B_c = bc_c[:, :n]                                      # (8, n)
        C_c = bc_c[:, n:]                                      # (8, n)

        # chunk prologue: EUP exp + lane broadcasts hoisted off the serial path
        dA_c = jnp.exp(delta_c[:, None, :] * neg_A[None, :, :])   # (8, n, d_inner)
        Bdu_c = B_c[:, :, None] * du_c[:, None, :]                # (8, n, d_inner)

        # serial recurrence: pure VPU fma chain over 8 steps
        st = state_ref[...]
        sts = []
        for t in range(_CHUNK):
            st = dA_c[t] * st + Bdu_c[t]
            sts.append(st)
        state_ref[...] = st                                    # carry to next chunk/tile

        # chunked C-weighted reduce + dense aligned 8-row store
        st_stack = jnp.stack(sts, axis=0)                      # (8, n, d_inner)
        y_ref[pl.ds(off, _CHUNK), :] = jnp.sum(st_stack * C_c[:, :, None], axis=1)

    # ---- skip term, SiLU gate, out_proj, residual ----
    y = y_ref[...] + u * D_ref[...]
    y = y * (res * jax.nn.sigmoid(res))
    out = jnp.dot(y.astype(mm_dtype), w_out_ref[...],
                  preferred_element_type=f32)                  # (L, D)
    out_ref[0] = (out + x).astype(out_ref.dtype)


def residual_block(x, params, *, d_inner, d_state, dt_rank, d_conv, eps=1e-5,
                   l_tile=None, mm_dtype=jnp.bfloat16,
                   vmem_limit_bytes=64 * 1024 * 1024):
    b, L, D = x.shape
    if l_tile is None:
        l_tile = min(L, 256)
    assert L % l_tile == 0, "L must be a multiple of l_tile"
    assert l_tile % _CHUNK == 0 and l_tile >= 8
    assert d_conv - 1 <= 8, "conv tail carry assumes d_conv <= 9"
    n_l = L // l_tile
    f32 = jnp.float32

    # ---- host-side, grid-invariant preparation (hoisted out of the kernel) ----
    dt_pad = ((dt_rank + 127) // 128) * 128       # lane-aligned dt section / K for dt_proj
    neg_A_t = jnp.transpose(-jnp.exp(params["A_log"].astype(f32)))       # (n, d_inner)
    w_xp = jnp.concatenate(
        [params["w_xproj"][:, :dt_rank].astype(f32),
         jnp.zeros((d_inner, dt_pad - dt_rank), f32),
         params["w_xproj"][:, dt_rank:].astype(f32)],
        axis=1).astype(mm_dtype)                                          # (d_inner, dt_pad+2n)
    w_dt_p = jnp.concatenate(
        [params["w_dt"].astype(f32),
         jnp.zeros((dt_pad - dt_rank, d_inner), f32)], axis=0)            # (dt_pad, d_inner) f32
    w_in = params["w_in"].astype(mm_dtype)                                # (D, 2*d_inner)
    w_out = params["w_out"].astype(mm_dtype)                              # (d_inner, D)
    conv_w_t = jnp.transpose(params["conv_w"]).astype(f32)                # (d_conv, d_inner)
    conv_b = params["conv_b"].astype(f32)
    w_norm = params["w_norm"].astype(f32)
    b_dt = params["b_dt"].astype(f32)
    d_skip = params["D"].astype(f32)

    kernel = functools.partial(
        residual_block_kernel, d_inner=d_inner, d_state=d_state, d_conv=d_conv,
        dt_pad=dt_pad, l_tile=l_tile, eps=eps)

    def _run(weight_mode):
        # Grid-invariant weights: single-buffer when supported (weight_mode).
        def full(arr):
            shp = tuple(arr.shape)
            idx = lambda bi, li, _nd=len(shp): (0,) * _nd
            if weight_mode is None:
                return pl.BlockSpec(shp, idx)
            return pl.BlockSpec(shp, idx, pipeline_mode=weight_mode)

        grid_spec = pltpu.PrefetchScalarGridSpec(
            num_scalar_prefetch=0,
            grid=(b, n_l),   # batch outer/parallel; sequence tiles inner/sequential
            in_specs=[
                pl.BlockSpec((1, l_tile, D), lambda bi, li: (bi, li, 0)),   # x
                full(w_norm), full(w_in), full(conv_w_t), full(conv_b),
                full(w_xp), full(w_dt_p), full(b_dt), full(neg_A_t),
                full(d_skip), full(w_out),
            ],
            out_specs=pl.BlockSpec((1, l_tile, D), lambda bi, li: (bi, li, 0)),
            scratch_shapes=[
                pltpu.VMEM((d_state, d_inner), f32),       # scan-state carry
                pltpu.VMEM((8, d_inner), f32),             # conv tail carry (8-row padded)
                pltpu.VMEM((l_tile, d_inner), f32),        # delta
                pltpu.VMEM((l_tile, d_inner), f32),        # delta * u
                pltpu.VMEM((l_tile, 2 * d_state), f32),    # [B | C]
                pltpu.VMEM((l_tile, d_inner), f32),        # y (scan output)
            ],
        )
        return pl.pallas_call(
            kernel,
            out_shape=jax.ShapeDtypeStruct((b, L, D), x.dtype),
            grid_spec=grid_spec,
            compiler_params=pltpu.CompilerParams(
                # NOTE: the L axis must stay "arbitrary" (sequential, innermost)
                # for the scan-state / conv-tail carries to be valid.
                dimension_semantics=("parallel", "arbitrary"),
                vmem_limit_bytes=vmem_limit_bytes),
        )(x, w_norm, w_in, conv_w_t, conv_b, w_xp, w_dt_p, b_dt, neg_A_t,
          d_skip, w_out)

    try:
        return _run(pl.Buffered(1))
    except Exception:
        # Fallback for JAX builds that reject single-buffered BlockSpecs.
        return _run(None)


def reference(x, params, *, d_inner, d_state, dt_rank, d_conv, eps=1e-5):
    """Pure-JAX f32 reference matching the PyTorch ResidualBlock forward."""
    b, L, D = x.shape
    ms = jnp.mean(x * x, axis=-1, keepdims=True)
    xn = x * lax.rsqrt(ms + eps) * params["w_norm"][0]
    xr = jnp.einsum("bld,de->ble", xn, params["w_in"])
    xpart, res = xr[..., :d_inner], xr[..., d_inner:]
    xpad = jnp.concatenate(
        [jnp.zeros((b, d_conv - 1, d_inner), jnp.float32), xpart], axis=1)
    acc = jnp.broadcast_to(params["conv_b"][0][None, None, :], (b, L, d_inner))
    for k in range(d_conv):
        acc = acc + xpad[:, k:k + L, :] * params["conv_w"][:, k][None, None, :]
    u = acc * jax.nn.sigmoid(acc)
    x_dbl = jnp.einsum("bld,de->ble", u, params["w_xproj"])
    delta_r = x_dbl[..., :dt_rank]
    B = x_dbl[..., dt_rank:dt_rank + d_state]
    C = x_dbl[..., dt_rank + d_state:]
    delta = jax.nn.softplus(
        jnp.einsum("blr,rd->bld", delta_r, params["w_dt"]) + params["b_dt"][0])
    A = -jnp.exp(params["A_log"])
    dA = jnp.exp(delta[..., None] * A[None, None])
    dBu = delta[..., None] * B[:, :, None, :] * u[..., None]
    state = jnp.zeros((b, d_inner, d_state), jnp.float32)
    ys = []
    for i in range(L):
        state = dA[:, i] * state + dBu[:, i]
        ys.append(jnp.einsum("bdn,bn->bd", state, C[:, i]))
    y = jnp.stack(ys, axis=1) + u * params["D"][0]
    y = y * (res * jax.nn.sigmoid(res))
    out = jnp.einsum("bld,de->ble", y, params["w_out"])
    return out + x


if __name__ == "__main__":
    # ResidualBlock config (bias=False, conv_bias=True)
    d_model = 32
    d_conv = 4
    d_state = 8
    expand = 2
    d_inner = expand * d_model                 # 64
    dt_rank = math.ceil(d_model / 16)          # 2
    b, L = 2, 16
    l_tile = 8                                 # 2 sequence tiles -> exercises carries

    key = jax.random.PRNGKey(0)
    ks = jax.random.split(key, 10)

    def rnd(k, shape, scale=0.1):
        return jax.random.normal(k, shape, jnp.float32) * scale

    params = {
        "w_norm": jnp.ones((1, d_model), jnp.float32),
        "w_in": rnd(ks[0], (d_model, 2 * d_inner)),
        "conv_w": rnd(ks[1], (d_inner, d_conv)),
        "conv_b": rnd(ks[2], (1, d_inner)),
        "w_xproj": rnd(ks[3], (d_inner, dt_rank + 2 * d_state)),
        "w_dt": rnd(ks[4], (dt_rank, d_inner)),
        "b_dt": rnd(ks[5], (1, d_inner)),
        "A_log": jnp.broadcast_to(
            jnp.log(jnp.arange(1, d_state + 1, dtype=jnp.float32))[None, :],
            (d_inner, d_state)),
        "D": jnp.ones((1, d_inner), jnp.float32),
        "w_out": rnd(ks[6], (d_inner, d_model)),
    }

    x = jax.random.normal(ks[7], (b, L, d_model), jnp.float32)

    out = residual_block(x, params, d_inner=d_inner, d_state=d_state,
                         dt_rank=dt_rank, d_conv=d_conv, l_tile=l_tile)
    out = jax.block_until_ready(out)

    ref = reference(x, params, d_inner=d_inner, d_state=d_state,
                    dt_rank=dt_rank, d_conv=d_conv)
    assert out.shape == (b, L, d_model)
    # bf16 MXU matmuls vs f32 reference -> allow ~1% tolerance
    assert jnp.allclose(out, ref, rtol=1e-2, atol=1e-2), \
        f"max diff {jnp.max(jnp.abs(out - ref))}"

    print("KERNEL_OK")
</pallas_src>

<mosaic_0001>
module attributes {stable_mosaic.version = 11 : i64} {
  func.func @residual_block_kernel(%arg0: i32, %arg1: i32, %arg2: memref<1x8x32xf32, #tpu.memory_space<vmem>>, %arg3: memref<1x32xf32, #tpu.memory_space<vmem>>, %arg4: memref<32x128xbf16, #tpu.memory_space<vmem>>, %arg5: memref<4x64xf32, #tpu.memory_space<vmem>>, %arg6: memref<1x64xf32, #tpu.memory_space<vmem>>, %arg7: memref<64x144xbf16, #tpu.memory_space<vmem>>, %arg8: memref<128x64xf32, #tpu.memory_space<vmem>>, %arg9: memref<1x64xf32, #tpu.memory_space<vmem>>, %arg10: memref<8x64xf32, #tpu.memory_space<vmem>>, %arg11: memref<1x64xf32, #tpu.memory_space<vmem>>, %arg12: memref<64x32xbf16, #tpu.memory_space<vmem>>, %arg13: memref<1x8x32xf32, #tpu.memory_space<vmem>>, %arg14: memref<8x64xf32, #tpu.memory_space<vmem>>, %arg15: memref<8x64xf32, #tpu.memory_space<vmem>>, %arg16: memref<8x64xf32, #tpu.memory_space<vmem>>, %arg17: memref<8x64xf32, #tpu.memory_space<vmem>>, %arg18: memref<8x16xf32, #tpu.memory_space<vmem>>, %arg19: memref<8x64xf32, #tpu.memory_space<vmem>>) attributes {dimension_semantics = [#tpu.dimension_semantics<parallel>, #tpu.dimension_semantics<arbitrary>], iteration_bounds = array<i64: 2, 2>, scalar_prefetch = 0 : i64, scratch_operands = 6 : i64, tpu.core_type = #tpu.core_type<tc>, window_params = [{transform_indices = @transform_0, window_bounds = array<i64: 1, 8, 32>}, {pipeline_mode = #tpu.pipeline_mode<synchronous>, transform_indices = @transform_1, window_bounds = array<i64: 1, 32>}, {pipeline_mode = #tpu.pipeline_mode<synchronous>, transform_indices = @transform_2, window_bounds = array<i64: 32, 128>}, {pipeline_mode = #tpu.pipeline_mode<synchronous>, transform_indices = @transform_3, window_bounds = array<i64: 4, 64>}, {pipeline_mode = #tpu.pipeline_mode<synchronous>, transform_indices = @transform_4, window_bounds = array<i64: 1, 64>}, {pipeline_mode = #tpu.pipeline_mode<synchronous>, transform_indices = @transform_5, window_bounds = array<i64: 64, 144>}, {pipeline_mode = #tpu.pipeline_mode<synchronous>, transform_indices = @transform_6, window_bounds = array<i64: 128, 64>}, {pipeline_mode = #tpu.pipeline_mode<synchronous>, transform_indices = @transform_7, window_bounds = array<i64: 1, 64>}, {pipeline_mode = #tpu.pipeline_mode<synchronous>, transform_indices = @transform_8, window_bounds = array<i64: 8, 64>}, {pipeline_mode = #tpu.pipeline_mode<synchronous>, transform_indices = @transform_9, window_bounds = array<i64: 1, 64>}, {pipeline_mode = #tpu.pipeline_mode<synchronous>, transform_indices = @transform_10, window_bounds = array<i64: 64, 32>}, {transform_indices = @transform_11, window_bounds = array<i64: 1, 8, 32>}]} {
    %c0_i32 = arith.constant 0 : i32
    %0 = arith.cmpi eq, %arg1, %c0_i32 : i32
    %1 = arith.extui %0 : i1 to i32
    %c0_i32_0 = arith.constant 0 : i32
    %2 = arith.cmpi ne, %1, %c0_i32_0 : i32
    scf.if %2 {
      %cst_62 = arith.constant 0.000000e+00 : f32
      %193 = vector.broadcast %cst_62 : f32 to vector<8x64xf32>
      %c0_63 = arith.constant 0 : index
      %c0_64 = arith.constant 0 : index
      %194 = vector.load %arg14[%c0_63, %c0_64] : memref<8x64xf32, #tpu.memory_space<vmem>>, vector<8x64xf32>
      tpu.vector_store %arg14[%c0_63, %c0_64], %193 {strides = array<i32>} : memref<8x64xf32, #tpu.memory_space<vmem>>, vector<8x64xf32>,
      %cst_65 = arith.constant 0.000000e+00 : f32
      %195 = vector.broadcast %cst_65 : f32 to vector<8x64xf32>
      %c0_66 = arith.constant 0 : index
      %c0_67 = arith.constant 0 : index
      %196 = vector.load %arg15[%c0_66, %c0_67] : memref<8x64xf32, #tpu.memory_space<vmem>>, vector<8x64xf32>
      tpu.vector_store %arg15[%c0_66, %c0_67], %195 {strides = array<i32>} : memref<8x64xf32, #tpu.memory_space<vmem>>, vector<8x64xf32>,
    } else {
    }
    %c0 = arith.constant 0 : index
    %c0_1 = arith.constant 0 : index
    %c0_2 = arith.constant 0 : index
    %3 = vector.load %arg2[%c0, %c0_1, %c0_2] : memref<1x8x32xf32, #tpu.memory_space<vmem>>, vector<1x8x32xf32>
    %4 = vector.shape_cast %3 : vector<1x8x32xf32> to vector<8x32xf32>
    %5 = arith.mulf %4, %4 : vector<8x32xf32>
    %cst = arith.constant dense<0.000000e+00> : vector<8xf32>
    %6 = vector.multi_reduction <add>, %5, %cst [1] : vector<8x32xf32> to vector<8xf32>
    %7 = vector.shape_cast %6 : vector<8xf32> to vector<8x1xf32>
    %cst_3 = arith.constant 3.200000e+01 : f32
    %8 = vector.broadcast %cst_3 : f32 to vector<8x1xf32>
    %9 = arith.divf %7, %8 : vector<8x1xf32>
    %cst_4 = arith.constant 9.99999974E-6 : f32
    %10 = vector.broadcast %cst_4 : f32 to vector<8x1xf32>
    %11 = arith.addf %9, %10 : vector<8x1xf32>
    %12 = math.rsqrt %11 : vector<8x1xf32>
    %13 = vector.broadcast %12 : vector<8x1xf32> to vector<8x32xf32>
    %14 = arith.mulf %4, %13 : vector<8x32xf32>
    %c0_5 = arith.constant 0 : index
    %c0_6 = arith.constant 0 : index
    %15 = vector.load %arg3[%c0_5, %c0_6] : memref<1x32xf32, #tpu.memory_space<vmem>>, vector<1x32xf32>
    %16 = vector.broadcast %15 : vector<1x32xf32> to vector<8x32xf32>
    %17 = arith.mulf %14, %16 : vector<8x32xf32>
    %18 = arith.truncf %17 : vector<8x32xf32> to vector<8x32xbf16>
    %c0_7 = arith.constant 0 : index
    %c0_8 = arith.constant 0 : index
    %19 = vector.load %arg4[%c0_7, %c0_8] : memref<32x128xbf16, #tpu.memory_space<vmem>>, vector<32x128xbf16>
    %cst_9 = arith.constant dense<0.000000e+00> : vector<8x128xf32>
    %20 = tpu.matmul %18, %19, %cst_9 {dimension_numbers = #tpu.dot_dimension_numbers<[1], [0], [0], [1], [0, 0, 1, 1], [], []>} : vector<8x32xbf16>, vector<32x128xbf16>, vector<8x128xf32> -> vector<8x128xf32>
    %21 = vector.extract_strided_slice %20 {offsets = [0, 0], sizes = [8, 64], strides = [1, 1]} : vector<8x128xf32> to vector<8x64xf32>
    %22 = vector.extract_strided_slice %20 {offsets = [0, 64], sizes = [8, 64], strides = [1, 1]} : vector<8x128xf32> to vector<8x64xf32>
    %c0_10 = arith.constant 0 : index
    %c0_11 = arith.constant 0 : index
    %23 = vector.load %arg6[%c0_10, %c0_11] : memref<1x64xf32, #tpu.memory_space<vmem>>, vector<1x64xf32>
    %c3 = arith.constant 3 : index
    %c0_12 = arith.constant 0 : index
    %24 = vector.load %arg5[%c3, %c0_12] : memref<4x64xf32, #tpu.memory_space<vmem>>, vector<1x64xf32>
    %25 = vector.broadcast %24 : vector<1x64xf32> to vector<8x64xf32>
    %26 = arith.mulf %21, %25 : vector<8x64xf32>
    %27 = vector.broadcast %23 : vector<1x64xf32> to vector<8x64xf32>
    %28 = arith.addf %27, %26 : vector<8x64xf32>
    %c5 = arith.constant 5 : index
    %c0_13 = arith.constant 0 : index
    %29 = vector.load %arg15[%c5, %c0_13] : memref<8x64xf32, #tpu.memory_space<vmem>>, vector<3x64xf32>
    %30 = vector.extract_strided_slice %21 {offsets = [0, 0], sizes = [5, 64], strides = [1, 1]} : vector<8x64xf32> to vector<5x64xf32>
    %31 = tpu.concatenate %29, %30 in 0 : vector<3x64xf32>, vector<5x64xf32> -> vector<8x64xf32>
    %c0_14 = arith.constant 0 : index
    %c0_15 = arith.constant 0 : index
    %32 = vector.load %arg5[%c0_14, %c0_15] : memref<4x64xf32, #tpu.memory_space<vmem>>, vector<1x64xf32>
    %33 = vector.broadcast %32 : vector<1x64xf32> to vector<8x64xf32>
    %34 = arith.mulf %31, %33 : vector<8x64xf32>
    %35 = arith.addf %28, %34 : vector<8x64xf32>
    %36 = vector.extract_strided_slice %29 {offsets = [1, 0], sizes = [2, 64], strides = [1, 1]} : vector<3x64xf32> to vector<2x64xf32>
    %37 = vector.extract_strided_slice %21 {offsets = [0, 0], sizes = [6, 64], strides = [1, 1]} : vector<8x64xf32> to vector<6x64xf32>
    %38 = tpu.concatenate %36, %37 in 0 : vector<2x64xf32>, vector<6x64xf32> -> vector<8x64xf32>
    %c1 = arith.constant 1 : index
    %c0_16 = arith.constant 0 : index
    %39 = vector.load %arg5[%c1, %c0_16] : memref<4x64xf32, #tpu.memory_space<vmem>>, vector<1x64xf32>
    %40 = vector.broadcast %39 : vector<1x64xf32> to vector<8x64xf32>
    %41 = arith.mulf %38, %40 : vector<8x64xf32>
    %42 = arith.addf %35, %41 : vector<8x64xf32>
    %43 = vector.extract_strided_slice %29 {offsets = [2, 0], sizes = [1, 64], strides = [1, 1]} : vector<3x64xf32> to vector<1x64xf32>
    %44 = vector.extract_strided_slice %21 {offsets = [0, 0], sizes = [7, 64], strides = [1, 1]} : vector<8x64xf32> to vector<7x64xf32>
    %45 = tpu.concatenate %43, %44 in 0 : vector<1x64xf32>, vector<7x64xf32> -> vector<8x64xf32>
    %c2 = arith.constant 2 : index
    %c0_17 = arith.constant 0 : index
    %46 = vector.load %arg5[%c2, %c0_17] : memref<4x64xf32, #tpu.memory_space<vmem>>, vector<1x64xf32>
    %47 = vector.broadcast %46 : vector<1x64xf32> to vector<8x64xf32>
    %48 = arith.mulf %45, %47 : vector<8x64xf32>
    %49 = arith.addf %42, %48 : vector<8x64xf32>
    %c0_18 = arith.constant 0 : index
    %c0_19 = arith.constant 0 : index
    %50 = vector.load %arg15[%c0_18, %c0_19] : memref<8x64xf32, #tpu.memory_space<vmem>>, vector<8x64xf32>
    tpu.vector_store %arg15[%c0_18, %c0_19], %21 {strides = array<i32>} : memref<8x64xf32, #tpu.memory_space<vmem>>, vector<8x64xf32>,
    %51 = arith.negf %49 : vector<8x64xf32>
    %52 = math.exp %51 : vector<8x64xf32>
    %cst_20 = arith.constant 1.000000e+00 : f32
    %53 = vector.broadcast %cst_20 : f32 to vector<8x64xf32>
    %54 = arith.addf %53, %52 : vector<8x64xf32>
    %55 = arith.divf %53, %54 : vector<8x64xf32>
    %56 = arith.mulf %49, %55 : vector<8x64xf32>
    %57 = arith.truncf %56 : vector<8x64xf32> to vector<8x64xbf16>
    %c0_21 = arith.constant 0 : index
    %c0_22 = arith.constant 0 : index
    %58 = vector.load %arg7[%c0_21, %c0_22] : memref<64x144xbf16, #tpu.memory_space<vmem>>, vector<64x144xbf16>
    %cst_23 = arith.constant dense<0.000000e+00> : vector<8x144xf32>
    %59 = tpu.matmul %57, %58, %cst_23 {dimension_numbers = #tpu.dot_dimension_numbers<[1], [0], [0], [1], [0, 0, 1, 1], [], []>} : vector<8x64xbf16>, vector<64x144xbf16>, vector<8x144xf32> -> vector<8x144xf32>
    %60 = vector.extract_strided_slice %59 {offsets = [0, 0], sizes = [8, 128], strides = [1, 1]} : vector<8x144xf32> to vector<8x128xf32>
    %c0_24 = arith.constant 0 : index
    %c0_25 = arith.constant 0 : index
    %61 = vector.load %arg8[%c0_24, %c0_25] : memref<128x64xf32, #tpu.memory_space<vmem>>, vector<128x64xf32>
    %cst_26 = arith.constant dense<0.000000e+00> : vector<8x64xf32>
    %62 = tpu.matmul %60, %61, %cst_26 {dimension_numbers = #tpu.dot_dimension_numbers<[1], [0], [0], [1], [0, 0, 1, 1], [], []>} : vector<8x128xf32>, vector<128x64xf32>, vector<8x64xf32> -> vector<8x64xf32>
    %c0_27 = arith.constant 0 : index
    %c0_28 = arith.constant 0 : index
    %63 = vector.load %arg9[%c0_27, %c0_28] : memref<1x64xf32, #tpu.memory_space<vmem>>, vector<1x64xf32>
    %64 = vector.broadcast %63 : vector<1x64xf32> to vector<8x64xf32>
    %65 = arith.addf %62, %64 : vector<8x64xf32>
    %cst_29 = arith.constant 0.000000e+00 : f32
    %66 = vector.broadcast %cst_29 : f32 to vector<8x64xf32>
    %67 = arith.maximumf %65, %66 : vector<8x64xf32>
    %68 = vector.broadcast %cst_29 : f32 to vector<8x64xf32>
    %69 = arith.subf %65, %68 : vector<8x64xf32>
    %70 = arith.cmpf one, %69, %69 : vector<8x64xf32>
    %71 = vector.broadcast %cst_29 : f32 to vector<8x64xf32>
    %72 = arith.addf %65, %71 : vector<8x64xf32>
    %73 = math.absf %69 : vector<8x64xf32>
    %cst_30 = arith.constant 0.000000e+00 : f32
    %74 = vector.broadcast %cst_30 : f32 to vector<8x64xf32>
    %75 = arith.subf %74, %73 : vector<8x64xf32>
    %76 = math.exp %75 : vector<8x64xf32>
    %77 = math.log1p %76 : vector<8x64xf32>
    %78 = arith.addf %67, %77 : vector<8x64xf32>
    %79 = arith.select %70, %72, %78 : vector<8x64xi1>, vector<8x64xf32>
    %c0_31 = arith.constant 0 : index
    %c0_32 = arith.constant 0 : index
    %80 = vector.load %arg16[%c0_31, %c0_32] : memref<8x64xf32, #tpu.memory_space<vmem>>, vector<8x64xf32>
    tpu.vector_store %arg16[%c0_31, %c0_32], %79 {strides = array<i32>} : memref<8x64xf32, #tpu.memory_space<vmem>>, vector<8x64xf32>,
    %81 = arith.mulf %79, %56 : vector<8x64xf32>
    %c0_33 = arith.constant 0 : index
    %c0_34 = arith.constant 0 : index
    %82 = vector.load %arg17[%c0_33, %c0_34] : memref<8x64xf32, #tpu.memory_space<vmem>>, vector<8x64xf32>
    tpu.vector_store %arg17[%c0_33, %c0_34], %81 {strides = array<i32>} : memref<8x64xf32, #tpu.memory_space<vmem>>, vector<8x64xf32>,
    %83 = vector.extract_strided_slice %59 {offsets = [0, 128], sizes = [8, 16], strides = [1, 1]} : vector<8x144xf32> to vector<8x16xf32>
    %c0_35 = arith.constant 0 : index
    %c0_36 = arith.constant 0 : index
    %84 = vector.load %arg18[%c0_35, %c0_36] : memref<8x16xf32, #tpu.memory_space<vmem>>, vector<8x16xf32>
    tpu.vector_store %arg18[%c0_35, %c0_36], %83 {strides = array<i32>} : memref<8x16xf32, #tpu.memory_space<vmem>>, vector<8x16xf32>,
    %c0_37 = arith.constant 0 : index
    %c0_38 = arith.constant 0 : index
    %85 = vector.load %arg10[%c0_37, %c0_38] : memref<8x64xf32, #tpu.memory_space<vmem>>, vector<8x64xf32>
    %c0_i32_39 = arith.constant 0 : i32
    %c1_i32 = arith.constant 1 : i32
    %86 = arith.muli %c0_i32_39, %c1_i32 : i32
    %c0_i32_40 = arith.constant 0 : i32
    %87 = arith.addi %c0_i32_40, %86 : i32
    %c8_i32 = arith.constant 8 : i32
    %88 = arith.muli %87, %c8_i32 : i32
    %89 = tpu.assume_multiple %88, 8 : i32
    %90 = arith.index_cast %89 : i32 to index
    %c0_41 = arith.constant 0 : index
    %91 = vector.load %arg16[%90, %c0_41] : memref<8x64xf32, #tpu.memory_space<vmem>>, vector<8x64xf32>
    %92 = arith.index_cast %89 : i32 to index
    %c0_42 = arith.constant 0 : index
    %93 = vector.load %arg17[%92, %c0_42] : memref<8x64xf32, #tpu.memory_space<vmem>>, vector<8x64xf32>
    %94 = arith.index_cast %89 : i32 to index
    %c0_43 = arith.constant 0 : index
    %95 = vector.load %arg18[%94, %c0_43] : memref<8x16xf32, #tpu.memory_space<vmem>>, vector<8x16xf32>
    %96 = vector.extract_strided_slice %95 {offsets = [0, 0], sizes = [8, 8], strides = [1, 1]} : vector<8x16xf32> to vector<8x8xf32>
    %97 = vector.extract_strided_slice %95 {offsets = [0, 8], sizes = [8, 8], strides = [1, 1]} : vector<8x16xf32> to vector<8x8xf32>
    %98 = vector.shape_cast %91 : vector<8x64xf32> to vector<8x1x64xf32>
    %99 = vector.shape_cast %85 : vector<8x64xf32> to vector<1x8x64xf32>
    %100 = vector.broadcast %98 : vector<8x1x64xf32> to vector<8x8x64xf32>
    %101 = vector.broadcast %99 : vector<1x8x64xf32> to vector<8x8x64xf32>
    %102 = arith.mulf %100, %101 : vector<8x8x64xf32>
    %103 = math.exp %102 : vector<8x8x64xf32>
    %104 = vector.shape_cast %96 : vector<8x8xf32> to vector<8x8x1xf32>
    %105 = vector.shape_cast %93 : vector<8x64xf32> to vector<8x1x64xf32>
    %106 = vector.broadcast %104 : vector<8x8x1xf32> to vector<8x8x64xf32>
    %107 = vector.broadcast %105 : vector<8x1x64xf32> to vector<8x8x64xf32>
    %108 = arith.mulf %106, %107 : vector<8x8x64xf32>
    %c0_44 = arith.constant 0 : index
    %c0_45 = arith.constant 0 : index
    %109 = vector.load %arg14[%c0_44, %c0_45] : memref<8x64xf32, #tpu.memory_space<vmem>>, vector<8x64xf32>
    %110 = vector.extract_strided_slice %103 {offsets = [0, 0, 0], sizes = [1, 8, 64], strides = [1, 1, 1]} : vector<8x8x64xf32> to vector<1x8x64xf32>
    %111 = vector.shape_cast %110 : vector<1x8x64xf32> to vector<8x64xf32>
    %112 = arith.mulf %111, %109 : vector<8x64xf32>
    %113 = vector.extract_strided_slice %108 {offsets = [0, 0, 0], sizes = [1, 8, 64], strides = [1, 1, 1]} : vector<8x8x64xf32> to vector<1x8x64xf32>
    %114 = vector.shape_cast %113 : vector<1x8x64xf32> to vector<8x64xf32>
    %115 = arith.addf %112, %114 : vector<8x64xf32>
    %116 = vector.extract_strided_slice %103 {offsets = [1, 0, 0], sizes = [1, 8, 64], strides = [1, 1, 1]} : vector<8x8x64xf32> to vector<1x8x64xf32>
    %117 = vector.shape_cast %116 : vector<1x8x64xf32> to vector<8x64xf32>
    %118 = arith.mulf %117, %115 : vector<8x64xf32>
    %119 = vector.extract_strided_slice %108 {offsets = [1, 0, 0], sizes = [1, 8, 64], strides = [1, 1, 1]} : vector<8x8x64xf32> to vector<1x8x64xf32>
    %120 = vector.shape_cast %119 : vector<1x8x64xf32> to vector<8x64xf32>
    %121 = arith.addf %118, %120 : vector<8x64xf32>
    %122 = vector.extract_strided_slice %103 {offsets = [2, 0, 0], sizes = [1, 8, 64], strides = [1, 1, 1]} : vector<8x8x64xf32> to vector<1x8x64xf32>
    %123 = vector.shape_cast %122 : vector<1x8x64xf32> to vector<8x64xf32>
    %124 = arith.mulf %123, %121 : vector<8x64xf32>
    %125 = vector.extract_strided_slice %108 {offsets = [2, 0, 0], sizes = [1, 8, 64], strides = [1, 1, 1]} : vector<8x8x64xf32> to vector<1x8x64xf32>
    %126 = vector.shape_cast %125 : vector<1x8x64xf32> to vector<8x64xf32>
    %127 = arith.addf %124, %126 : vector<8x64xf32>
    %128 = vector.extract_strided_slice %103 {offsets = [3, 0, 0], sizes = [1, 8, 64], strides = [1, 1, 1]} : vector<8x8x64xf32> to vector<1x8x64xf32>
    %129 = vector.shape_cast %128 : vector<1x8x64xf32> to vector<8x64xf32>
    %130 = arith.mulf %129, %127 : vector<8x64xf32>
    %131 = vector.extract_strided_slice %108 {offsets = [3, 0, 0], sizes = [1, 8, 64], strides = [1, 1, 1]} : vector<8x8x64xf32> to vector<1x8x64xf32>
    %132 = vector.shape_cast %131 : vector<1x8x64xf32> to vector<8x64xf32>
    %133 = arith.addf %130, %132 : vector<8x64xf32>
    %134 = vector.extract_strided_slice %103 {offsets = [4, 0, 0], sizes = [1, 8, 64], strides = [1, 1, 1]} : vector<8x8x64xf32> to vector<1x8x64xf32>
    %135 = vector.shape_cast %134 : vector<1x8x64xf32> to vector<8x64xf32>
    %136 = arith.mulf %135, %133 : vector<8x64xf32>
    %137 = vector.extract_strided_slice %108 {offsets = [4, 0, 0], sizes = [1, 8, 64], strides = [1, 1, 1]} : vector<8x8x64xf32> to vector<1x8x64xf32>
    %138 = vector.shape_cast %137 : vector<1x8x64xf32> to vector<8x64xf32>
    %139 = arith.addf %136, %138 : vector<8x64xf32>
    %140 = vector.extract_strided_slice %103 {offsets = [5, 0, 0], sizes = [1, 8, 64], strides = [1, 1, 1]} : vector<8x8x64xf32> to vector<1x8x64xf32>
    %141 = vector.shape_cast %140 : vector<1x8x64xf32> to vector<8x64xf32>
    %142 = arith.mulf %141, %139 : vector<8x64xf32>
    %143 = vector.extract_strided_slice %108 {offsets = [5, 0, 0], sizes = [1, 8, 64], strides = [1, 1, 1]} : vector<8x8x64xf32> to vector<1x8x64xf32>
    %144 = vector.shape_cast %143 : vector<1x8x64xf32> to vector<8x64xf32>
    %145 = arith.addf %142, %144 : vector<8x64xf32>
    %146 = vector.extract_strided_slice %103 {offsets = [6, 0, 0], sizes = [1, 8, 64], strides = [1, 1, 1]} : vector<8x8x64xf32> to vector<1x8x64xf32>
    %147 = vector.shape_cast %146 : vector<1x8x64xf32> to vector<8x64xf32>
    %148 = arith.mulf %147, %145 : vector<8x64xf32>
    %149 = vector.extract_strided_slice %108 {offsets = [6, 0, 0], sizes = [1, 8, 64], strides = [1, 1, 1]} : vector<8x8x64xf32> to vector<1x8x64xf32>
    %150 = vector.shape_cast %149 : vector<1x8x64xf32> to vector<8x64xf32>
    %151 = arith.addf %148, %150 : vector<8x64xf32>
    %152 = vector.extract_strided_slice %103 {offsets = [7, 0, 0], sizes = [1, 8, 64], strides = [1, 1, 1]} : vector<8x8x64xf32> to vector<1x8x64xf32>
    %153 = vector.shape_cast %152 : vector<1x8x64xf32> to vector<8x64xf32>
    %154 = arith.mulf %153, %151 : vector<8x64xf32>
    %155 = vector.extract_strided_slice %108 {offsets = [7, 0, 0], sizes = [1, 8, 64], strides = [1, 1, 1]} : vector<8x8x64xf32> to vector<1x8x64xf32>
    %156 = vector.shape_cast %155 : vector<1x8x64xf32> to vector<8x64xf32>
    %157 = arith.addf %154, %156 : vector<8x64xf32>
    %c0_46 = arith.constant 0 : index
    %c0_47 = arith.constant 0 : index
    %158 = vector.load %arg14[%c0_46, %c0_47] : memref<8x64xf32, #tpu.memory_space<vmem>>, vector<8x64xf32>
    tpu.vector_store %arg14[%c0_46, %c0_47], %157 {strides = array<i32>} : memref<8x64xf32, #tpu.memory_space<vmem>>, vector<8x64xf32>,
    %159 = vector.shape_cast %115 : vector<8x64xf32> to vector<1x8x64xf32>
    %160 = vector.shape_cast %121 : vector<8x64xf32> to vector<1x8x64xf32>
    %161 = vector.shape_cast %127 : vector<8x64xf32> to vector<1x8x64xf32>
    %162 = vector.shape_cast %133 : vector<8x64xf32> to vector<1x8x64xf32>
    %163 = vector.shape_cast %139 : vector<8x64xf32> to vector<1x8x64xf32>
    %164 = vector.shape_cast %145 : vector<8x64xf32> to vector<1x8x64xf32>
    %165 = vector.shape_cast %151 : vector<8x64xf32> to vector<1x8x64xf32>
    %166 = vector.shape_cast %157 : vector<8x64xf32> to vector<1x8x64xf32>
    %167 = tpu.concatenate %159, %160, %161, %162, %163, %164, %165, %166 in 0 : vector<1x8x64xf32>, vector<1x8x64xf32>, vector<1x8x64xf32>, vector<1x8x64xf32>, vector<1x8x64xf32>, vector<1x8x64xf32>, vector<1x8x64xf32>, vector<1x8x64xf32> -> vector<8x8x64xf32>
    %168 = vector.shape_cast %97 : vector<8x8xf32> to vector<8x8x1xf32>
    %169 = vector.broadcast %168 : vector<8x8x1xf32> to vector<8x8x64xf32>
    %170 = arith.mulf %167, %169 : vector<8x8x64xf32>
    %cst_48 = arith.constant dense<0.000000e+00> : vector<8x64xf32>
    %171 = vector.multi_reduction <add>, %170, %cst_48 [1] : vector<8x8x64xf32> to vector<8x64xf32>
    %172 = arith.index_cast %89 : i32 to index
    %c0_49 = arith.constant 0 : index
    %173 = vector.load %arg19[%172, %c0_49] : memref<8x64xf32, #tpu.memory_space<vmem>>, vector<8x64xf32>
    tpu.vector_store %arg19[%172, %c0_49], %171 {strides = array<i32>} : memref<8x64xf32, #tpu.memory_space<vmem>>, vector<8x64xf32>,
    %c1_i32_50 = arith.constant 1 : i32
    %c0_51 = arith.constant 0 : index
    %c0_52 = arith.constant 0 : index
    %174 = vector.load %arg19[%c0_51, %c0_52] : memref<8x64xf32, #tpu.memory_space<vmem>>, vector<8x64xf32>
    %c0_53 = arith.constant 0 : index
    %c0_54 = arith.constant 0 : index
    %175 = vector.load %arg11[%c0_53, %c0_54] : memref<1x64xf32, #tpu.memory_space<vmem>>, vector<1x64xf32>
    %176 = vector.broadcast %175 : vector<1x64xf32> to vector<8x64xf32>
    %177 = arith.mulf %56, %176 : vector<8x64xf32>
    %178 = arith.addf %174, %177 : vector<8x64xf32>
    %179 = arith.negf %22 : vector<8x64xf32>
    %180 = math.exp %179 : vector<8x64xf32>
    %cst_55 = arith.constant 1.000000e+00 : f32
    %181 = vector.broadcast %cst_55 : f32 to vector<8x64xf32>
    %182 = arith.addf %181, %180 : vector<8x64xf32>
    %183 = arith.divf %181, %182 : vector<8x64xf32>
    %184 = arith.mulf %22, %183 : vector<8x64xf32>
    %185 = arith.mulf %178, %184 : vector<8x64xf32>
    %186 = arith.truncf %185 : vector<8x64xf32> to vector<8x64xbf16>
    %c0_56 = arith.constant 0 : index
    %c0_57 = arith.constant 0 : index
    %187 = vector.load %arg12[%c0_56, %c0_57] : memref<64x32xbf16, #tpu.memory_space<vmem>>, vector<64x32xbf16>
    %cst_58 = arith.constant dense<0.000000e+00> : vector<8x32xf32>
    %188 = tpu.matmul %186, %187, %cst_58 {dimension_numbers = #tpu.dot_dimension_numbers<[1], [0], [0], [1], [0, 0, 1, 1], [], []>} : vector<8x64xbf16>, vector<64x32xbf16>, vector<8x32xf32> -> vector<8x32xf32>
    %189 = arith.addf %188, %4 : vector<8x32xf32>
    %c0_59 = arith.constant 0 : index
    %c0_60 = arith.constant 0 : index
    %c0_61 = arith.constant 0 : index
    %190 = vector.load %arg13[%c0_59, %c0_60, %c0_61] : memref<1x8x32xf32, #tpu.memory_space<vmem>>, vector<1x8x32xf32>
    %191 = vector.shape_cast %190 : vector<1x8x32xf32> to vector<8x32xf32>
    %192 = vector.shape_cast %189 : vector<8x32xf32> to vector<1x8x32xf32>
    tpu.vector_store %arg13[%c0_59, %c0_60, %c0_61], %192 {strides = array<i32>} : memref<1x8x32xf32, #tpu.memory_space<vmem>>, vector<1x8x32xf32>,
    return
  }
  func.func @transform_0(%arg0: i32, %arg1: i32) -> (i32, i32, i32) {
    %c0_i32 = arith.constant 0 : i32
    %c0_i32_0 = arith.constant 0 : i32
    return %arg0, %arg1, %c0_i32 : i32, i32, i32
  }
  func.func @transform_1(%arg0: i32, %arg1: i32) -> (i32, i32) {
    %c0_i32 = arith.constant 0 : i32
    %c0_i32_0 = arith.constant 0 : i32
    %c0_i32_1 = arith.constant 0 : i32
    return %c0_i32, %c0_i32_0 : i32, i32
  }
  func.func @transform_2(%arg0: i32, %arg1: i32) -> (i32, i32) {
    %c0_i32 = arith.constant 0 : i32
    %c0_i32_0 = arith.constant 0 : i32
    %c0_i32_1 = arith.constant 0 : i32
    return %c0_i32, %c0_i32_0 : i32, i32
  }
  func.func @transform_3(%arg0: i32, %arg1: i32) -> (i32, i32) {
    %c0_i32 = arith.constant 0 : i32
    %c0_i32_0 = arith.constant 0 : i32
    %c0_i32_1 = arith.constant 0 : i32
    return %c0_i32, %c0_i32_0 : i32, i32
  }
  func.func @transform_4(%arg0: i32, %arg1: i32) -> (i32, i32) {
    %c0_i32 = arith.constant 0 : i32
    %c0_i32_0 = arith.constant 0 : i32
    %c0_i32_1 = arith.constant 0 : i32
    return %c0_i32, %c0_i32_0 : i32, i32
  }
  func.func @transform_5(%arg0: i32, %arg1: i32) -> (i32, i32) {
    %c0_i32 = arith.constant 0 : i32
    %c0_i32_0 = arith.constant 0 : i32
    %c0_i32_1 = arith.constant 0 : i32
    return %c0_i32, %c0_i32_0 : i32, i32
  }
  func.func @transform_6(%arg0: i32, %arg1: i32) -> (i32, i32) {
    %c0_i32 = arith.constant 0 : i32
    %c0_i32_0 = arith.constant 0 : i32
    %c0_i32_1 = arith.constant 0 : i32
    return %c0_i32, %c0_i32_0 : i32, i32
  }
  func.func @transform_7(%arg0: i32, %arg1: i32) -> (i32, i32) {
    %c0_i32 = arith.constant 0 : i32
    %c0_i32_0 = arith.constant 0 : i32
    %c0_i32_1 = arith.constant 0 : i32
    return %c0_i32, %c0_i32_0 : i32, i32
  }
  func.func @transform_8(%arg0: i32, %arg1: i32) -> (i32, i32) {
    %c0_i32 = arith.constant 0 : i32
    %c0_i32_0 = arith.constant 0 : i32
    %c0_i32_1 = arith.constant 0 : i32
    return %c0_i32, %c0_i32_0 : i32, i32
  }
  func.func @transform_9(%arg0: i32, %arg1: i32) -> (i32, i32) {
    %c0_i32 = arith.constant 0 : i32
    %c0_i32_0 = arith.constant 0 : i32
    %c0_i32_1 = arith.constant 0 : i32
    return %c0_i32, %c0_i32_0 : i32, i32
  }
  func.func @transform_10(%arg0: i32, %arg1: i32) -> (i32, i32) {
    %c0_i32 = arith.constant 0 : i32
    %c0_i32_0 = arith.constant 0 : i32
    %c0_i32_1 = arith.constant 0 : i32
    return %c0_i32, %c0_i32_0 : i32, i32
  }
  func.func @transform_11(%arg0: i32, %arg1: i32) -> (i32, i32, i32) {
    %c0_i32 = arith.constant 0 : i32
    %c0_i32_0 = arith.constant 0 : i32
    return %arg0, %arg1, %c0_i32 : i32, i32, i32
  }
}

module attributes {stable_mosaic.version = 11 : i64} {
  func.func @residual_block_kernel(%arg0: i32, %arg1: i32, %arg2: memref<1x8x32xf32, #tpu.memory_space<vmem>>, %arg3: memref<1x32xf32, #tpu.memory_space<vmem>>, %arg4: memref<32x128xbf16, #tpu.memory_space<vmem>>, %arg5: memref<4x64xf32, #tpu.memory_space<vmem>>, %arg6: memref<1x64xf32, #tpu.memory_space<vmem>>, %arg7: memref<64x144xbf16, #tpu.memory_space<vmem>>, %arg8: memref<128x64xf32, #tpu.memory_space<vmem>>, %arg9: memref<1x64xf32, #tpu.memory_space<vmem>>, %arg10: memref<8x64xf32, #tpu.memory_space<vmem>>, %arg11: memref<1x64xf32, #tpu.memory_space<vmem>>, %arg12: memref<64x32xbf16, #tpu.memory_space<vmem>>, %arg13: memref<1x8x32xf32, #tpu.memory_space<vmem>>, %arg14: memref<8x64xf32, #tpu.memory_space<vmem>>, %arg15: memref<8x64xf32, #tpu.memory_space<vmem>>, %arg16: memref<8x64xf32, #tpu.memory_space<vmem>>, %arg17: memref<8x64xf32, #tpu.memory_space<vmem>>, %arg18: memref<8x16xf32, #tpu.memory_space<vmem>>, %arg19: memref<8x64xf32, #tpu.memory_space<vmem>>) attributes {dimension_semantics = [#tpu.dimension_semantics<parallel>, #tpu.dimension_semantics<arbitrary>], iteration_bounds = array<i64: 2, 2>, scalar_prefetch = 0 : i64, scratch_operands = 6 : i64, tpu.core_type = #tpu.core_type<tc>, window_params = [{transform_indices = @transform_0, window_bounds = array<i64: 1, 8, 32>}, {pipeline_mode = #tpu.pipeline_mode<synchronous>, transform_indices = @transform_1, window_bounds = array<i64: 1, 32>}, {pipeline_mode = #tpu.pipeline_mode<synchronous>, transform_indices = @transform_2, window_bounds = array<i64: 32, 128>}, {pipeline_mode = #tpu.pipeline_mode<synchronous>, transform_indices = @transform_3, window_bounds = array<i64: 4, 64>}, {pipeline_mode = #tpu.pipeline_mode<synchronous>, transform_indices = @transform_4, window_bounds = array<i64: 1, 64>}, {pipeline_mode = #tpu.pipeline_mode<synchronous>, transform_indices = @transform_5, window_bounds = array<i64: 64, 144>}, {pipeline_mode = #tpu.pipeline_mode<synchronous>, transform_indices = @transform_6, window_bounds = array<i64: 128, 64>}, {pipeline_mode = #tpu.pipeline_mode<synchronous>, transform_indices = @transform_7, window_bounds = array<i64: 1, 64>}, {pipeline_mode = #tpu.pipeline_mode<synchronous>, transform_indices = @transform_8, window_bounds = array<i64: 8, 64>}, {pipeline_mode = #tpu.pipeline_mode<synchronous>, transform_indices = @transform_9, window_bounds = array<i64: 1, 64>}, {pipeline_mode = #tpu.pipeline_mode<synchronous>, transform_indices = @transform_10, window_bounds = array<i64: 64, 32>}, {transform_indices = @transform_11, window_bounds = array<i64: 1, 8, 32>}]} {
    %c0_i32 = arith.constant 0 : i32
    %0 = arith.cmpi eq, %arg1, %c0_i32 : i32
    %1 = arith.extui %0 : i1 to i32
    %c0_i32_0 = arith.constant 0 : i32
    %2 = arith.cmpi ne, %1, %c0_i32_0 : i32
    scf.if %2 {
      %cst_62 = arith.constant 0.000000e+00 : f32
      %193 = vector.broadcast %cst_62 : f32 to vector<8x64xf32>
      %c0_63 = arith.constant 0 : index
      %c0_64 = arith.constant 0 : index
      %194 = vector.load %arg14[%c0_63, %c0_64] : memref<8x64xf32, #tpu.memory_space<vmem>>, vector<8x64xf32>
      tpu.vector_store %arg14[%c0_63, %c0_64], %193 {strides = array<i32>} : memref<8x64xf32, #tpu.memory_space<vmem>>, vector<8x64xf32>,
      %cst_65 = arith.constant 0.000000e+00 : f32
      %195 = vector.broadcast %cst_65 : f32 to vector<8x64xf32>
      %c0_66 = arith.constant 0 : index
      %c0_67 = arith.constant 0 : index
      %196 = vector.load %arg15[%c0_66, %c0_67] : memref<8x64xf32, #tpu.memory_space<vmem>>, vector<8x64xf32>
      tpu.vector_store %arg15[%c0_66, %c0_67], %195 {strides = array<i32>} : memref<8x64xf32, #tpu.memory_space<vmem>>, vector<8x64xf32>,
    } else {
    }
    %c0 = arith.constant 0 : index
    %c0_1 = arith.constant 0 : index
    %c0_2 = arith.constant 0 : index
    %3 = vector.load %arg2[%c0, %c0_1, %c0_2] : memref<1x8x32xf32, #tpu.memory_space<vmem>>, vector<1x8x32xf32>
    %4 = vector.shape_cast %3 : vector<1x8x32xf32> to vector<8x32xf32>
    %5 = arith.mulf %4, %4 : vector<8x32xf32>
    %cst = arith.constant dense<0.000000e+00> : vector<8xf32>
    %6 = vector.multi_reduction <add>, %5, %cst [1] : vector<8x32xf32> to vector<8xf32>
    %7 = vector.shape_cast %6 : vector<8xf32> to vector<8x1xf32>
    %cst_3 = arith.constant 3.200000e+01 : f32
    %8 = vector.broadcast %cst_3 : f32 to vector<8x1xf32>
    %9 = arith.divf %7, %8 : vector<8x1xf32>
    %cst_4 = arith.constant 9.99999974E-6 : f32
    %10 = vector.broadcast %cst_4 : f32 to vector<8x1xf32>
    %11 = arith.addf %9, %10 : vector<8x1xf32>
    %12 = math.rsqrt %11 : vector<8x1xf32>
    %13 = vector.broadcast %12 : vector<8x1xf32> to vector<8x32xf32>
    %14 = arith.mulf %4, %13 : vector<8x32xf32>
    %c0_5 = arith.constant 0 : index
    %c0_6 = arith.constant 0 : index
    %15 = vector.load %arg3[%c0_5, %c0_6] : memref<1x32xf32, #tpu.memory_space<vmem>>, vector<1x32xf32>
    %16 = vector.broadcast %15 : vector<1x32xf32> to vector<8x32xf32>
    %17 = arith.mulf %14, %16 : vector<8x32xf32>
    %18 = arith.truncf %17 : vector<8x32xf32> to vector<8x32xbf16>
    %c0_7 = arith.constant 0 : index
    %c0_8 = arith.constant 0 : index
    %19 = vector.load %arg4[%c0_7, %c0_8] : memref<32x128xbf16, #tpu.memory_space<vmem>>, vector<32x128xbf16>
    %cst_9 = arith.constant dense<0.000000e+00> : vector<8x128xf32>
    %20 = tpu.matmul %18, %19, %cst_9 {dimension_numbers = #tpu.dot_dimension_numbers<[1], [0], [0], [1], [0, 0, 1, 1], [], []>} : vector<8x32xbf16>, vector<32x128xbf16>, vector<8x128xf32> -> vector<8x128xf32>
    %21 = vector.extract_strided_slice %20 {offsets = [0, 0], sizes = [8, 64], strides = [1, 1]} : vector<8x128xf32> to vector<8x64xf32>
    %22 = vector.extract_strided_slice %20 {offsets = [0, 64], sizes = [8, 64], strides = [1, 1]} : vector<8x128xf32> to vector<8x64xf32>
    %c0_10 = arith.constant 0 : index
    %c0_11 = arith.constant 0 : index
    %23 = vector.load %arg6[%c0_10, %c0_11] : memref<1x64xf32, #tpu.memory_space<vmem>>, vector<1x64xf32>
    %c3 = arith.constant 3 : index
    %c0_12 = arith.constant 0 : index
    %24 = vector.load %arg5[%c3, %c0_12] : memref<4x64xf32, #tpu.memory_space<vmem>>, vector<1x64xf32>
    %25 = vector.broadcast %24 : vector<1x64xf32> to vector<8x64xf32>
    %26 = arith.mulf %21, %25 : vector<8x64xf32>
    %27 = vector.broadcast %23 : vector<1x64xf32> to vector<8x64xf32>
    %28 = arith.addf %27, %26 : vector<8x64xf32>
    %c5 = arith.constant 5 : index
    %c0_13 = arith.constant 0 : index
    %29 = vector.load %arg15[%c5, %c0_13] : memref<8x64xf32, #tpu.memory_space<vmem>>, vector<3x64xf32>
    %30 = vector.extract_strided_slice %21 {offsets = [0, 0], sizes = [5, 64], strides = [1, 1]} : vector<8x64xf32> to vector<5x64xf32>
    %31 = tpu.concatenate %29, %30 in 0 : vector<3x64xf32>, vector<5x64xf32> -> vector<8x64xf32>
    %c0_14 = arith.constant 0 : index
    %c0_15 = arith.constant 0 : index
    %32 = vector.load %arg5[%c0_14, %c0_15] : memref<4x64xf32, #tpu.memory_space<vmem>>, vector<1x64xf32>
    %33 = vector.broadcast %32 : vector<1x64xf32> to vector<8x64xf32>
    %34 = arith.mulf %31, %33 : vector<8x64xf32>
    %35 = arith.addf %28, %34 : vector<8x64xf32>
    %36 = vector.extract_strided_slice %29 {offsets = [1, 0], sizes = [2, 64], strides = [1, 1]} : vector<3x64xf32> to vector<2x64xf32>
    %37 = vector.extract_strided_slice %21 {offsets = [0, 0], sizes = [6, 64], strides = [1, 1]} : vector<8x64xf32> to vector<6x64xf32>
    %38 = tpu.concatenate %36, %37 in 0 : vector<2x64xf32>, vector<6x64xf32> -> vector<8x64xf32>
    %c1 = arith.constant 1 : index
    %c0_16 = arith.constant 0 : index
    %39 = vector.load %arg5[%c1, %c0_16] : memref<4x64xf32, #tpu.memory_space<vmem>>, vector<1x64xf32>
    %40 = vector.broadcast %39 : vector<1x64xf32> to vector<8x64xf32>
    %41 = arith.mulf %38, %40 : vector<8x64xf32>
    %42 = arith.addf %35, %41 : vector<8x64xf32>
    %43 = vector.extract_strided_slice %29 {offsets = [2, 0], sizes = [1, 64], strides = [1, 1]} : vector<3x64xf32> to vector<1x64xf32>
    %44 = vector.extract_strided_slice %21 {offsets = [0, 0], sizes = [7, 64], strides = [1, 1]} : vector<8x64xf32> to vector<7x64xf32>
    %45 = tpu.concatenate %43, %44 in 0 : vector<1x64xf32>, vector<7x64xf32> -> vector<8x64xf32>
    %c2 = arith.constant 2 : index
    %c0_17 = arith.constant 0 : index
    %46 = vector.load %arg5[%c2, %c0_17] : memref<4x64xf32, #tpu.memory_space<vmem>>, vector<1x64xf32>
    %47 = vector.broadcast %46 : vector<1x64xf32> to vector<8x64xf32>
    %48 = arith.mulf %45, %47 : vector<8x64xf32>
    %49 = arith.addf %42, %48 : vector<8x64xf32>
    %c0_18 = arith.constant 0 : index
    %c0_19 = arith.constant 0 : index
    %50 = vector.load %arg15[%c0_18, %c0_19] : memref<8x64xf32, #tpu.memory_space<vmem>>, vector<8x64xf32>
    tpu.vector_store %arg15[%c0_18, %c0_19], %21 {strides = array<i32>} : memref<8x64xf32, #tpu.memory_space<vmem>>, vector<8x64xf32>,
    %51 = arith.negf %49 : vector<8x64xf32>
    %52 = math.exp %51 : vector<8x64xf32>
    %cst_20 = arith.constant 1.000000e+00 : f32
    %53 = vector.broadcast %cst_20 : f32 to vector<8x64xf32>
    %54 = arith.addf %53, %52 : vector<8x64xf32>
    %55 = arith.divf %53, %54 : vector<8x64xf32>
    %56 = arith.mulf %49, %55 : vector<8x64xf32>
    %57 = arith.truncf %56 : vector<8x64xf32> to vector<8x64xbf16>
    %c0_21 = arith.constant 0 : index
    %c0_22 = arith.constant 0 : index
    %58 = vector.load %arg7[%c0_21, %c0_22] : memref<64x144xbf16, #tpu.memory_space<vmem>>, vector<64x144xbf16>
    %cst_23 = arith.constant dense<0.000000e+00> : vector<8x144xf32>
    %59 = tpu.matmul %57, %58, %cst_23 {dimension_numbers = #tpu.dot_dimension_numbers<[1], [0], [0], [1], [0, 0, 1, 1], [], []>} : vector<8x64xbf16>, vector<64x144xbf16>, vector<8x144xf32> -> vector<8x144xf32>
    %60 = vector.extract_strided_slice %59 {offsets = [0, 0], sizes = [8, 128], strides = [1, 1]} : vector<8x144xf32> to vector<8x128xf32>
    %c0_24 = arith.constant 0 : index
    %c0_25 = arith.constant 0 : index
    %61 = vector.load %arg8[%c0_24, %c0_25] : memref<128x64xf32, #tpu.memory_space<vmem>>, vector<128x64xf32>
    %cst_26 = arith.constant dense<0.000000e+00> : vector<8x64xf32>
    %62 = tpu.matmul %60, %61, %cst_26 {dimension_numbers = #tpu.dot_dimension_numbers<[1], [0], [0], [1], [0, 0, 1, 1], [], []>} : vector<8x128xf32>, vector<128x64xf32>, vector<8x64xf32> -> vector<8x64xf32>
    %c0_27 = arith.constant 0 : index
    %c0_28 = arith.constant 0 : index
    %63 = vector.load %arg9[%c0_27, %c0_28] : memref<1x64xf32, #tpu.memory_space<vmem>>, vector<1x64xf32>
    %64 = vector.broadcast %63 : vector<1x64xf32> to vector<8x64xf32>
    %65 = arith.addf %62, %64 : vector<8x64xf32>
    %cst_29 = arith.constant 0.000000e+00 : f32
    %66 = vector.broadcast %cst_29 : f32 to vector<8x64xf32>
    %67 = arith.maximumf %65, %66 : vector<8x64xf32>
    %68 = vector.broadcast %cst_29 : f32 to vector<8x64xf32>
    %69 = arith.subf %65, %68 : vector<8x64xf32>
    %70 = arith.cmpf one, %69, %69 : vector<8x64xf32>
    %71 = vector.broadcast %cst_29 : f32 to vector<8x64xf32>
    %72 = arith.addf %65, %71 : vector<8x64xf32>
    %73 = math.absf %69 : vector<8x64xf32>
    %cst_30 = arith.constant 0.000000e+00 : f32
    %74 = vector.broadcast %cst_30 : f32 to vector<8x64xf32>
    %75 = arith.subf %74, %73 : vector<8x64xf32>
    %76 = math.exp %75 : vector<8x64xf32>
    %77 = math.log1p %76 : vector<8x64xf32>
    %78 = arith.addf %67, %77 : vector<8x64xf32>
    %79 = arith.select %70, %72, %78 : vector<8x64xi1>, vector<8x64xf32>
    %c0_31 = arith.constant 0 : index
    %c0_32 = arith.constant 0 : index
    %80 = vector.load %arg16[%c0_31, %c0_32] : memref<8x64xf32, #tpu.memory_space<vmem>>, vector<8x64xf32>
    tpu.vector_store %arg16[%c0_31, %c0_32], %79 {strides = array<i32>} : memref<8x64xf32, #tpu.memory_space<vmem>>, vector<8x64xf32>,
    %81 = arith.mulf %79, %56 : vector<8x64xf32>
    %c0_33 = arith.constant 0 : index
    %c0_34 = arith.constant 0 : index
    %82 = vector.load %arg17[%c0_33, %c0_34] : memref<8x64xf32, #tpu.memory_space<vmem>>, vector<8x64xf32>
    tpu.vector_store %arg17[%c0_33, %c0_34], %81 {strides = array<i32>} : memref<8x64xf32, #tpu.memory_space<vmem>>, vector<8x64xf32>,
    %83 = vector.extract_strided_slice %59 {offsets = [0, 128], sizes = [8, 16], strides = [1, 1]} : vector<8x144xf32> to vector<8x16xf32>
    %c0_35 = arith.constant 0 : index
    %c0_36 = arith.constant 0 : index
    %84 = vector.load %arg18[%c0_35, %c0_36] : memref<8x16xf32, #tpu.memory_space<vmem>>, vector<8x16xf32>
    tpu.vector_store %arg18[%c0_35, %c0_36], %83 {strides = array<i32>} : memref<8x16xf32, #tpu.memory_space<vmem>>, vector<8x16xf32>,
    %c0_37 = arith.constant 0 : index
    %c0_38 = arith.constant 0 : index
    %85 = vector.load %arg10[%c0_37, %c0_38] : memref<8x64xf32, #tpu.memory_space<vmem>>, vector<8x64xf32>
    %c0_i32_39 = arith.constant 0 : i32
    %c1_i32 = arith.constant 1 : i32
    %86 = arith.muli %c0_i32_39, %c1_i32 : i32
    %c0_i32_40 = arith.constant 0 : i32
    %87 = arith.addi %c0_i32_40, %86 : i32
    %c8_i32 = arith.constant 8 : i32
    %88 = arith.muli %87, %c8_i32 : i32
    %89 = tpu.assume_multiple %88, 8 : i32
    %90 = arith.index_cast %89 : i32 to index
    %c0_41 = arith.constant 0 : index
    %91 = vector.load %arg16[%90, %c0_41] : memref<8x64xf32, #tpu.memory_space<vmem>>, vector<8x64xf32>
    %92 = arith.index_cast %89 : i32 to index
    %c0_42 = arith.constant 0 : index
    %93 = vector.load %arg17[%92, %c0_42] : memref<8x64xf32, #tpu.memory_space<vmem>>, vector<8x64xf32>
    %94 = arith.index_cast %89 : i32 to index
    %c0_43 = arith.constant 0 : index
    %95 = vector.load %arg18[%94, %c0_43] : memref<8x16xf32, #tpu.memory_space<vmem>>, vector<8x16xf32>
    %96 = vector.extract_strided_slice %95 {offsets = [0, 0], sizes = [8, 8], strides = [1, 1]} : vector<8x16xf32> to vector<8x8xf32>
    %97 = vector.extract_strided_slice %95 {offsets = [0, 8], sizes = [8, 8], strides = [1, 1]} : vector<8x16xf32> to vector<8x8xf32>
    %98 = vector.shape_cast %91 : vector<8x64xf32> to vector<8x1x64xf32>
    %99 = vector.shape_cast %85 : vector<8x64xf32> to vector<1x8x64xf32>
    %100 = vector.broadcast %98 : vector<8x1x64xf32> to vector<8x8x64xf32>
    %101 = vector.broadcast %99 : vector<1x8x64xf32> to vector<8x8x64xf32>
    %102 = arith.mulf %100, %101 : vector<8x8x64xf32>
    %103 = math.exp %102 : vector<8x8x64xf32>
    %104 = vector.shape_cast %96 : vector<8x8xf32> to vector<8x8x1xf32>
    %105 = vector.shape_cast %93 : vector<8x64xf32> to vector<8x1x64xf32>
    %106 = vector.broadcast %104 : vector<8x8x1xf32> to vector<8x8x64xf32>
    %107 = vector.broadcast %105 : vector<8x1x64xf32> to vector<8x8x64xf32>
    %108 = arith.mulf %106, %107 : vector<8x8x64xf32>
    %c0_44 = arith.constant 0 : index
    %c0_45 = arith.constant 0 : index
    %109 = vector.load %arg14[%c0_44, %c0_45] : memref<8x64xf32, #tpu.memory_space<vmem>>, vector<8x64xf32>
    %110 = vector.extract_strided_slice %103 {offsets = [0, 0, 0], sizes = [1, 8, 64], strides = [1, 1, 1]} : vector<8x8x64xf32> to vector<1x8x64xf32>
    %111 = vector.shape_cast %110 : vector<1x8x64xf32> to vector<8x64xf32>
    %112 = arith.mulf %111, %109 : vector<8x64xf32>
    %113 = vector.extract_strided_slice %108 {offsets = [0, 0, 0], sizes = [1, 8, 64], strides = [1, 1, 1]} : vector<8x8x64xf32> to vector<1x8x64xf32>
    %114 = vector.shape_cast %113 : vector<1x8x64xf32> to vector<8x64xf32>
    %115 = arith.addf %112, %114 : vector<8x64xf32>
    %116 = vector.extract_strided_slice %103 {offsets = [1, 0, 0], sizes = [1, 8, 64], strides = [1, 1, 1]} : vector<8x8x64xf32> to vector<1x8x64xf32>
    %117 = vector.shape_cast %116 : vector<1x8x64xf32> to vector<8x64xf32>
    %118 = arith.mulf %117, %115 : vector<8x64xf32>
    %119 = vector.extract_strided_slice %108 {offsets = [1, 0, 0], sizes = [1, 8, 64], strides = [1, 1, 1]} : vector<8x8x64xf32> to vector<1x8x64xf32>
    %120 = vector.shape_cast %119 : vector<1x8x64xf32> to vector<8x64xf32>
    %121 = arith.addf %118, %120 : vector<8x64xf32>
    %122 = vector.extract_strided_slice %103 {offsets = [2, 0, 0], sizes = [1, 8, 64], strides = [1, 1, 1]} : vector<8x8x64xf32> to vector<1x8x64xf32>
    %123 = vector.shape_cast %122 : vector<1x8x64xf32> to vector<8x64xf32>
    %124 = arith.mulf %123, %121 : vector<8x64xf32>
    %125 = vector.extract_strided_slice %108 {offsets = [2, 0, 0], sizes = [1, 8, 64], strides = [1, 1, 1]} : vector<8x8x64xf32> to vector<1x8x64xf32>
    %126 = vector.shape_cast %125 : vector<1x8x64xf32> to vector<8x64xf32>
    %127 = arith.addf %124, %126 : vector<8x64xf32>
    %128 = vector.extract_strided_slice %103 {offsets = [3, 0, 0], sizes = [1, 8, 64], strides = [1, 1, 1]} : vector<8x8x64xf32> to vector<1x8x64xf32>
    %129 = vector.shape_cast %128 : vector<1x8x64xf32> to vector<8x64xf32>
    %130 = arith.mulf %129, %127 : vector<8x64xf32>
    %131 = vector.extract_strided_slice %108 {offsets = [3, 0, 0], sizes = [1, 8, 64], strides = [1, 1, 1]} : vector<8x8x64xf32> to vector<1x8x64xf32>
    %132 = vector.shape_cast %131 : vector<1x8x64xf32> to vector<8x64xf32>
    %133 = arith.addf %130, %132 : vector<8x64xf32>
    %134 = vector.extract_strided_slice %103 {offsets = [4, 0, 0], sizes = [1, 8, 64], strides = [1, 1, 1]} : vector<8x8x64xf32> to vector<1x8x64xf32>
    %135 = vector.shape_cast %134 : vector<1x8x64xf32> to vector<8x64xf32>
    %136 = arith.mulf %135, %133 : vector<8x64xf32>
    %137 = vector.extract_strided_slice %108 {offsets = [4, 0, 0], sizes = [1, 8, 64], strides = [1, 1, 1]} : vector<8x8x64xf32> to vector<1x8x64xf32>
    %138 = vector.shape_cast %137 : vector<1x8x64xf32> to vector<8x64xf32>
    %139 = arith.addf %136, %138 : vector<8x64xf32>
    %140 = vector.extract_strided_slice %103 {offsets = [5, 0, 0], sizes = [1, 8, 64], strides = [1, 1, 1]} : vector<8x8x64xf32> to vector<1x8x64xf32>
    %141 = vector.shape_cast %140 : vector<1x8x64xf32> to vector<8x64xf32>
    %142 = arith.mulf %141, %139 : vector<8x64xf32>
    %143 = vector.extract_strided_slice %108 {offsets = [5, 0, 0], sizes = [1, 8, 64], strides = [1, 1, 1]} : vector<8x8x64xf32> to vector<1x8x64xf32>
    %144 = vector.shape_cast %143 : vector<1x8x64xf32> to vector<8x64xf32>
    %145 = arith.addf %142, %144 : vector<8x64xf32>
    %146 = vector.extract_strided_slice %103 {offsets = [6, 0, 0], sizes = [1, 8, 64], strides = [1, 1, 1]} : vector<8x8x64xf32> to vector<1x8x64xf32>
    %147 = vector.shape_cast %146 : vector<1x8x64xf32> to vector<8x64xf32>
    %148 = arith.mulf %147, %145 : vector<8x64xf32>
    %149 = vector.extract_strided_slice %108 {offsets = [6, 0, 0], sizes = [1, 8, 64], strides = [1, 1, 1]} : vector<8x8x64xf32> to vector<1x8x64xf32>
    %150 = vector.shape_cast %149 : vector<1x8x64xf32> to vector<8x64xf32>
    %151 = arith.addf %148, %150 : vector<8x64xf32>
    %152 = vector.extract_strided_slice %103 {offsets = [7, 0, 0], sizes = [1, 8, 64], strides = [1, 1, 1]} : vector<8x8x64xf32> to vector<1x8x64xf32>
    %153 = vector.shape_cast %152 : vector<1x8x64xf32> to vector<8x64xf32>
    %154 = arith.mulf %153, %151 : vector<8x64xf32>
    %155 = vector.extract_strided_slice %108 {offsets = [7, 0, 0], sizes = [1, 8, 64], strides = [1, 1, 1]} : vector<8x8x64xf32> to vector<1x8x64xf32>
    %156 = vector.shape_cast %155 : vector<1x8x64xf32> to vector<8x64xf32>
    %157 = arith.addf %154, %156 : vector<8x64xf32>
    %c0_46 = arith.constant 0 : index
    %c0_47 = arith.constant 0 : index
    %158 = vector.load %arg14[%c0_46, %c0_47] : memref<8x64xf32, #tpu.memory_space<vmem>>, vector<8x64xf32>
    tpu.vector_store %arg14[%c0_46, %c0_47], %157 {strides = array<i32>} : memref<8x64xf32, #tpu.memory_space<vmem>>, vector<8x64xf32>,
    %159 = vector.shape_cast %115 : vector<8x64xf32> to vector<1x8x64xf32>
    %160 = vector.shape_cast %121 : vector<8x64xf32> to vector<1x8x64xf32>
    %161 = vector.shape_cast %127 : vector<8x64xf32> to vector<1x8x64xf32>
    %162 = vector.shape_cast %133 : vector<8x64xf32> to vector<1x8x64xf32>
    %163 = vector.shape_cast %139 : vector<8x64xf32> to vector<1x8x64xf32>
    %164 = vector.shape_cast %145 : vector<8x64xf32> to vector<1x8x64xf32>
    %165 = vector.shape_cast %151 : vector<8x64xf32> to vector<1x8x64xf32>
    %166 = vector.shape_cast %157 : vector<8x64xf32> to vector<1x8x64xf32>
    %167 = tpu.concatenate %159, %160, %161, %162, %163, %164, %165, %166 in 0 : vector<1x8x64xf32>, vector<1x8x64xf32>, vector<1x8x64xf32>, vector<1x8x64xf32>, vector<1x8x64xf32>, vector<1x8x64xf32>, vector<1x8x64xf32>, vector<1x8x64xf32> -> vector<8x8x64xf32>
    %168 = vector.shape_cast %97 : vector<8x8xf32> to vector<8x8x1xf32>
    %169 = vector.broadcast %168 : vector<8x8x1xf32> to vector<8x8x64xf32>
    %170 = arith.mulf %167, %169 : vector<8x8x64xf32>
    %cst_48 = arith.constant dense<0.000000e+00> : vector<8x64xf32>
    %171 = vector.multi_reduction <add>, %170, %cst_48 [1] : vector<8x8x64xf32> to vector<8x64xf32>
    %172 = arith.index_cast %89 : i32 to index
    %c0_49 = arith.constant 0 : index
    %173 = vector.load %arg19[%172, %c0_49] : memref<8x64xf32, #tpu.memory_space<vmem>>, vector<8x64xf32>
    tpu.vector_store %arg19[%172, %c0_49], %171 {strides = array<i32>} : memref<8x64xf32, #tpu.memory_space<vmem>>, vector<8x64xf32>,
    %c1_i32_50 = arith.constant 1 : i32
    %c0_51 = arith.constant 0 : index
    %c0_52 = arith.constant 0 : index
    %174 = vector.load %arg19[%c0_51, %c0_52] : memref<8x64xf32, #tpu.memory_space<vmem>>, vector<8x64xf32>
    %c0_53 = arith.constant 0 : index
    %c0_54 = arith.constant 0 : index
    %175 = vector.load %arg11[%c0_53, %c0_54] : memref<1x64xf32, #tpu.memory_space<vmem>>, vector<1x64xf32>
    %176 = vector.broadcast %175 : vector<1x64xf32> to vector<8x64xf32>
    %177 = arith.mulf %56, %176 : vector<8x64xf32>
    %178 = arith.addf %174, %177 : vector<8x64xf32>
    %179 = arith.negf %22 : vector<8x64xf32>
    %180 = math.exp %179 : vector<8x64xf32>
    %cst_55 = arith.constant 1.000000e+00 : f32
    %181 = vector.broadcast %cst_55 : f32 to vector<8x64xf32>
    %182 = arith.addf %181, %180 : vector<8x64xf32>
    %183 = arith.divf %181, %182 : vector<8x64xf32>
    %184 = arith.mulf %22, %183 : vector<8x64xf32>
    %185 = arith.mulf %178, %184 : vector<8x64xf32>
    %186 = arith.truncf %185 : vector<8x64xf32> to vector<8x64xbf16>
    %c0_56 = arith.constant 0 : index
    %c0_57 = arith.constant 0 : index
    %187 = vector.load %arg12[%c0_56, %c0_57] : memref<64x32xbf16, #tpu.memory_space<vmem>>, vector<64x32xbf16>
    %cst_58 = arith.constant dense<0.000000e+00> : vector<8x32xf32>
    %188 = tpu.matmul %186, %187, %cst_58 {dimension_numbers = #tpu.dot_dimension_numbers<[1], [0], [0], [1], [0, 0, 1, 1], [], []>} : vector<8x64xbf16>, vector<64x32xbf16>, vector<8x32xf32> -> vector<8x32xf32>
    %189 = arith.addf %188, %4 : vector<8x32xf32>
    %c0_59 = arith.constant 0 : index
    %c0_60 = arith.constant 0 : index
    %c0_61 = arith.constant 0 : index
    %190 = vector.load %arg13[%c0_59, %c0_60, %c0_61] : memref<1x8x32xf32, #tpu.memory_space<vmem>>, vector<1x8x32xf32>
    %191 = vector.shape_cast %190 : vector<1x8x32xf32> to vector<8x32xf32>
    %192 = vector.shape_cast %189 : vector<8x32xf32> to vector<1x8x32xf32>
    tpu.vector_store %arg13[%c0_59, %c0_60, %c0_61], %192 {strides = array<i32>} : memref<1x8x32xf32, #tpu.memory_space<vmem>>, vector<1x8x32xf32>,
    return
  }
  func.func @transform_0(%arg0: i32, %arg1: i32) -> (i32, i32, i32) {
    %c0_i32 = arith.constant 0 : i32
    %c0_i32_0 = arith.constant 0 : i32
    return %arg0, %arg1, %c0_i32 : i32, i32, i32
  }
  func.func @transform_1(%arg0: i32, %arg1: i32) -> (i32, i32) {
    %c0_i32 = arith.constant 0 : i32
    %c0_i32_0 = arith.constant 0 : i32
    %c0_i32_1 = arith.constant 0 : i32
    return %c0_i32, %c0_i32_0 : i32, i32
  }
  func.func @transform_2(%arg0: i32, %arg1: i32) -> (i32, i32) {
    %c0_i32 = arith.constant 0 : i32
    %c0_i32_0 = arith.constant 0 : i32
    %c0_i32_1 = arith.constant 0 : i32
    return %c0_i32, %c0_i32_0 : i32, i32
  }
  func.func @transform_3(%arg0: i32, %arg1: i32) -> (i32, i32) {
    %c0_i32 = arith.constant 0 : i32
    %c0_i32_0 = arith.constant 0 : i32
    %c0_i32_1 = arith.constant 0 : i32
    return %c0_i32, %c0_i32_0 : i32, i32
  }
  func.func @transform_4(%arg0: i32, %arg1: i32) -> (i32, i32) {
    %c0_i32 = arith.constant 0 : i32
    %c0_i32_0 = arith.constant 0 : i32
    %c0_i32_1 = arith.constant 0 : i32
    return %c0_i32, %c0_i32_0 : i32, i32
  }
  func.func @transform_5(%arg0: i32, %arg1: i32) -> (i32, i32) {
    %c0_i32 = arith.constant 0 : i32
    %c0_i32_0 = arith.constant 0 : i32
    %c0_i32_1 = arith.constant 0 : i32
    return %c0_i32, %c0_i32_0 : i32, i32
  }
  func.func @transform_6(%arg0: i32, %arg1: i32) -> (i32, i32) {
    %c0_i32 = arith.constant 0 : i32
    %c0_i32_0 = arith.constant 0 : i32
    %c0_i32_1 = arith.constant 0 : i32
    return %c0_i32, %c0_i32_0 : i32, i32
  }
  func.func @transform_7(%arg0: i32, %arg1: i32) -> (i32, i32) {
    %c0_i32 = arith.constant 0 : i32
    %c0_i32_0 = arith.constant 0 : i32
    %c0_i32_1 = arith.constant 0 : i32
    return %c0_i32, %c0_i32_0 : i32, i32
  }
  func.func @transform_8(%arg0: i32, %arg1: i32) -> (i32, i32) {
    %c0_i32 = arith.constant 0 : i32
    %c0_i32_0 = arith.constant 0 : i32
    %c0_i32_1 = arith.constant 0 : i32
    return %c0_i32, %c0_i32_0 : i32, i32
  }
  func.func @transform_9(%arg0: i32, %arg1: i32) -> (i32, i32) {
    %c0_i32 = arith.constant 0 : i32
    %c0_i32_0 = arith.constant 0 : i32
    %c0_i32_1 = arith.constant 0 : i32
    return %c0_i32, %c0_i32_0 : i32, i32
  }
  func.func @transform_10(%arg0: i32, %arg1: i32) -> (i32, i32) {
    %c0_i32 = arith.constant 0 : i32
    %c0_i32_0 = arith.constant 0 : i32
    %c0_i32_1 = arith.constant 0 : i32
    return %c0_i32, %c0_i32_0 : i32, i32
  }
  func.func @transform_11(%arg0: i32, %arg1: i32) -> (i32, i32, i32) {
    %c0_i32 = arith.constant 0 : i32
    %c0_i32_0 = arith.constant 0 : i32
    return %arg0, %arg1, %c0_i32 : i32, i32, i32
  }
}

</mosaic_0001>

<llo_original>
// kernel: tpu_custom_call.1
$region0: #{tpu_custom_call.1}
  #allocation0 [shape = 'u32[]', space=smem, size = 0x4, offset = 0x4, fixed_abs, tag = 'smem constant byte address 0x4 - core index']
  #allocation1 [shape = 'u32[144,128]{1,0:T(1,128)}', space=vmem, size = 0x12000, scoped, tag = 'internal scratch']
  #allocation2 [shape = 'f32[8,64]{1,0:T(8,128)}', space=vmem, size = 0x1000, scoped, tag = 'scratch operand']
  #allocation3 [shape = 'f32[8,64]{1,0:T(8,128)}', space=vmem, size = 0x1000, scoped, tag = 'scratch operand']
  #allocation4 [shape = 'f32[8,64]{1,0:T(8,128)}', space=vmem, size = 0x1000, scoped, tag = 'scratch operand']
  #allocation5 [shape = 'f32[8,64]{1,0:T(8,128)}', space=vmem, size = 0x1000, scoped, tag = 'scratch operand']
  #allocation6 [shape = 'f32[8,16]{1,0:T(8,128)}', space=vmem, size = 0x1000, scoped, tag = 'scratch operand']
  #allocation7 [shape = 'f32[8,64]{1,0:T(8,128)}', space=vmem, size = 0x1000, scoped, tag = 'scratch operand']
  %s0 = inlined_call_operand.hbm [shape: f32[2,16,32], index: 0, kind: input, shape index: {}]
  %s1 = inlined_call_operand.hbm [shape: f32[1,32], index: 1, kind: input, shape index: {}]
  %s2 = inlined_call_operand.hbm [shape: bf16[32,128], index: 2, kind: input, shape index: {}]
  %s3 = inlined_call_operand.hbm [shape: f32[4,64], index: 3, kind: input, shape index: {}]
  %s4 = inlined_call_operand.hbm [shape: f32[1,64], index: 4, kind: input, shape index: {}]
  %s5 = inlined_call_operand.hbm [shape: bf16[64,144], index: 5, kind: input, shape index: {}]
  %s6 = inlined_call_operand.hbm [shape: f32[128,64], index: 6, kind: input, shape index: {}]
  %s7 = inlined_call_operand.hbm [shape: f32[1,64], index: 7, kind: input, shape index: {}]
  %s8 = inlined_call_operand.hbm [shape: f32[8,64], index: 8, kind: input, shape index: {}]
  %s9 = inlined_call_operand.hbm [shape: f32[1,64], index: 9, kind: input, shape index: {}]
  %s10 = inlined_call_operand.hbm [shape: bf16[64,32], index: 10, kind: input, shape index: {}]
  %s11 = inlined_call_operand.hbm [shape: f32[2,16,32], index: 11, kind: output, shape index: {}]
  %s12 = sld [smem:[#allocation0]]
  $region125: #{tpu_custom_call.1} parent=0
    _
  %s14 = ssub.s32 1, %s12
  %s15 = scalar_select 0, %s14, %s12
  $region1: #{tpu_custom_call.1} parent=0
    #allocation8 [shape = 'u8[8192]{0}', space=vmem, size = 0x2000, scoped, tag = 'input window, operand 0']
    #allocation9 [shape = 's32[2]{0}', space=sflag, size = 0x8, scoped, tag = 'scoped memory for tpu_custom_call.1']
    #allocation10 [shape = 's32[2]{0}', space=sflag, size = 0x8, scoped, tag = 'scoped memory for tpu_custom_call.1']
    #allocation11 [shape = 'u8[512]{0}', space=vmem, size = 0x400, scoped, tag = 'input window, operand 1, single buffered']
    #allocation12 [shape = 's32[1]{0}', space=sflag, size = 0x4, scoped, tag = 'scoped memory for tpu_custom_call.1']
    #allocation13 [shape = 'u8[8192]{0}', space=vmem, size = 0x2000, scoped, tag = 'input window, operand 2, single buffered']
    #allocation14 [shape = 'u8[2048]{0}', space=vmem, size = 0x800, scoped, tag = 'input window, operand 3, single buffered']
    #allocation15 [shape = 's32[1]{0}', space=sflag, size = 0x4, scoped, tag = 'scoped memory for tpu_custom_call.1']
    #allocation16 [shape = 'u8[512]{0}', space=vmem, size = 0x400, scoped, tag = 'input window, operand 4, single buffered']
    #allocation17 [shape = 'u8[32768]{0}', space=vmem, size = 0x8000, scoped, tag = 'input window, operand 5, single buffered']
    #allocation18 [shape = 's32[1]{0}', space=sflag, size = 0x4, scoped, tag = 'scoped memory for tpu_custom_call.1']
    #allocation19 [shape = 'u8[65536]{0}', space=vmem, size = 0x10000, scoped, tag = 'input window, operand 6, single buffered']
    #allocation20 [shape = 'u8[512]{0}', space=vmem, size = 0x400, scoped, tag = 'input window, operand 7, single buffered']
    #allocation21 [shape = 's32[1]{0}', space=sflag, size = 0x4, scoped, tag = 'scoped memory for tpu_custom_call.1']
    #allocation22 [shape = 'u8[4096]{0}', space=vmem, size = 0x1000, scoped, tag = 'input window, operand 8, single buffered']
    #allocation23 [shape = 'u8[512]{0}', space=vmem, size = 0x400, scoped, tag = 'input window, operand 9, single buffered']
    #allocation24 [shape = 's32[1]{0}', space=sflag, size = 0x4, scoped, tag = 'scoped memory for tpu_custom_call.1']
    #allocation25 [shape = 'u8[16384]{0}', space=vmem, size = 0x4000, scoped, tag = 'input window, operand 10, single buffered']
    #allocation26 [shape = 'u8[8192]{0}', space=vmem, size = 0x2000, scoped, tag = 'output window, operand 0']
    %16 = vsyncpa [#allocation9], 0
    %s17 = scalar_lea.sflag [#allocation9], 1
    %18 = vsyncpa %s17, 0
    %19 = vsyncpa [#allocation12], 0
    %20 = vsyncpa [#allocation15], 0
    %21 = vsyncpa [#allocation18], 0
    %22 = vsyncpa [#allocation21], 0
    %23 = vsyncpa [#allocation24], 0
    %24 = vsyncpa [#allocation10], 0
    %s25 = scalar_lea.sflag [#allocation10], 1
    %26 = vsyncpa %s25, 0
    loop: start=0, step=1, limit=6
    $region2: #{tpu_custom_call.1} parent=1 // loop_pre_header
      _
    $region3: #{tpu_custom_call.1} parent=1 // loop_header
      %s28 = sphi 0, %s32
      %p29 = scmp.ge.s32.totalorder %s28, 6
      %s35 = sphi 0, %s47
      %s36 = sphi 0, %s43
      %s37 = sphi 0, %s35
      %s38 = sphi 0, %s36
      %s39 = sphi 0, %s37
      %s40 = sphi 0, %s38
      %s52 = sphi 0, %s54
      %s55 = sphi 0, %s52
      %s56 = sphi 0, %s55
      %s72 = sphi 0, %s56
      %s76 = sphi 0, %s76
      %s78 = sphi 0, %s76
      %s79 = sphi 0, %s78
      %s93 = sphi 0, %s79
      %s97 = sphi 0, %s97
      %s99 = sphi 0, %s97
      %s100 = sphi 0, %s99
      %s114 = sphi 0, %s100
      %s118 = sphi 0, %s118
      %s120 = sphi 0, %s118
      %s121 = sphi 0, %s120
      %s135 = sphi 0, %s121
      %s139 = sphi 0, %s139
      %s141 = sphi 0, %s139
      %s142 = sphi 0, %s141
      %s156 = sphi 0, %s142
      %s160 = sphi 0, %s160
      %s162 = sphi 0, %s160
      %s163 = sphi 0, %s162
      %s177 = sphi 0, %s163
      %s181 = sphi 0, %s181
      %s183 = sphi 0, %s181
      %s184 = sphi 0, %s183
      %s198 = sphi 0, %s184
      %s202 = sphi 0, %s202
      %s204 = sphi 0, %s202
      %s205 = sphi 0, %s204
      %s219 = sphi 0, %s205
      %s223 = sphi 0, %s223
      %s225 = sphi 0, %s223
      %s226 = sphi 0, %s225
      %s240 = sphi 0, %s226
      %s244 = sphi 0, %s244
      %s246 = sphi 0, %s244
      %s247 = sphi 0, %s246
      %s261 = sphi 0, %s247
      %s265 = sphi 0, %s265
      %s267 = sphi 0, %s265
      %s268 = sphi 0, %s267
      %s282 = sphi 0, %s268
      %s290 = sphi 0, %s292
      %s293 = sphi 0, %s290
      %s294 = sphi 0, %s293
      %s310 = sphi 0, %s294
    $region4: #{tpu_custom_call.1} parent=1 // loop_header_branch
      %31 = sbr.rel (%p29) target = $region8
    $region5: #{tpu_custom_call.1} parent=1 // loop_body
      %s33 = ssub.s32 %s28, 1
      %s34 = ssub.s32 %s28, 2
      %s41 = sadd.s32 1, %s36
      %p42 = scmp.ge.s32.totalorder %s41, 2
      %s43 = scalar_select %p42, 0, %s41
      %s44 = sadd.s32 1, %s35
      %s45 = scalar_select %p42, %s44, %s35
      %p46 = scmp.ge.s32.totalorder %s45, 2
      %s47 = scalar_select %p46, 0, %s45
      %s48 = ssub.s32 %s35, %s47
      %s49 = ssub.s32 %s36, %s43
      %s50 = sor.u32 %s48, %s49
      %p51 = scmp.eq.s32.totalorder %s50, 0
      %s53 = sadd.s32 %s52, 1
      %s54 = scalar_select %p51, %s52, %s53
      %p57 = pneg %p51
      %p58 = scmp.eq.s32.totalorder %s28, 3
      %p59 = por %p57, %p58
      %p60 = scmp.ne.s32.totalorder %s52, %s55
      %p61 = scmp.eq.s32.totalorder %s28, 0
      %p62 = por %p60, %p61
      %p63 = scmp.ne.s32.totalorder %s52, %s55
      %p64 = scmp.eq.s32.totalorder %s33, 3
      %p65 = por %p63, %p64
      %p66 = scmp.ne.s32.totalorder %s55, %s56
      %p67 = scmp.eq.s32.totalorder %s33, 0
      %p68 = por %p66, %p67
      %p69 = scmp.ne.s32.totalorder %s55, %s56
      %p70 = scmp.eq.s32.totalorder %s34, 3
      %p71 = por %p69, %p70
      %p73 = scmp.ne.s32.totalorder %s56, %s72
      %p74 = scmp.eq.s32.totalorder %s34, 0
      %p75 = por %p73, %p74
      %s77 = sadd.s32 %s76, 1
      %p80 = scmp.eq.s32.totalorder %s28, 3
      %p81 = scmp.ne.s32.totalorder %s76, %s78
      %p82 = scmp.eq.s32.totalorder %s28, 0
      %p83 = por %p81, %p82
      %p84 = scmp.ne.s32.totalorder %s76, %s78
      %p85 = scmp.eq.s32.totalorder %s33, 3
      %p86 = por %p84, %p85
      %p87 = scmp.ne.s32.totalorder %s78, %s79
      %p88 = scmp.eq.s32.totalorder %s33, 0
      %p89 = por %p87, %p88
      %p90 = scmp.ne.s32.totalorder %s78, %s79
      %p91 = scmp.eq.s32.totalorder %s34, 3
      %p92 = por %p90, %p91
      %p94 = scmp.ne.s32.totalorder %s79, %s93
      %p95 = scmp.eq.s32.totalorder %s34, 0
      %p96 = por %p94, %p95
      %s98 = sadd.s32 %s97, 1
      %p101 = scmp.eq.s32.totalorder %s28, 3
      %p102 = scmp.ne.s32.totalorder %s97, %s99
      %p103 = scmp.eq.s32.totalorder %s28, 0
      %p104 = por %p102, %p103
      %p105 = scmp.ne.s32.totalorder %s97, %s99
      %p106 = scmp.eq.s32.totalorder %s33, 3
      %p107 = por %p105, %p106
      %p108 = scmp.ne.s32.totalorder %s99, %s100
      %p109 = scmp.eq.s32.totalorder %s33, 0
      %p110 = por %p108, %p109
      %p111 = scmp.ne.s32.totalorder %s99, %s100
      %p112 = scmp.eq.s32.totalorder %s34, 3
      %p113 = por %p111, %p112
      %p115 = scmp.ne.s32.totalorder %s100, %s114
      %p116 = scmp.eq.s32.totalorder %s34, 0
      %p117 = por %p115, %p116
      %s119 = sadd.s32 %s118, 1
      %p122 = scmp.eq.s32.totalorder %s28, 3
      %p123 = scmp.ne.s32.totalorder %s118, %s120
      %p124 = scmp.eq.s32.totalorder %s28, 0
      %p125 = por %p123, %p124
      %p126 = scmp.ne.s32.totalorder %s118, %s120
      %p127 = scmp.eq.s32.totalorder %s33, 3
      %p128 = por %p126, %p127
      %p129 = scmp.ne.s32.totalorder %s120, %s121
      %p130 = scmp.eq.s32.totalorder %s33, 0
      %p131 = por %p129, %p130
      %p132 = scmp.ne.s32.totalorder %s120, %s121
      %p133 = scmp.eq.s32.totalorder %s34, 3
      %p134 = por %p132, %p133
      %p136 = scmp.ne.s32.totalorder %s121, %s135
      %p137 = scmp.eq.s32.totalorder %s34, 0
      %p138 = por %p136, %p137
      %s140 = sadd.s32 %s139, 1
      %p143 = scmp.eq.s32.totalorder %s28, 3
      %p144 = scmp.ne.s32.totalorder %s139, %s141
      %p145 = scmp.eq.s32.totalorder %s28, 0
      %p146 = por %p144, %p145
      %p147 = scmp.ne.s32.totalorder %s139, %s141
      %p148 = scmp.eq.s32.totalorder %s33, 3
      %p149 = por %p147, %p148
      %p150 = scmp.ne.s32.totalorder %s141, %s142
      %p151 = scmp.eq.s32.totalorder %s33, 0
      %p152 = por %p150, %p151
      %p153 = scmp.ne.s32.totalorder %s141, %s142
      %p154 = scmp.eq.s32.totalorder %s34, 3
      %p155 = por %p153, %p154
      %p157 = scmp.ne.s32.totalorder %s142, %s156
      %p158 = scmp.eq.s32.totalorder %s34, 0
      %p159 = por %p157, %p158
      %s161 = sadd.s32 %s160, 1
      %p164 = scmp.eq.s32.totalorder %s28, 3
      %p165 = scmp.ne.s32.totalorder %s160, %s162
      %p166 = scmp.eq.s32.totalorder %s28, 0
      %p167 = por %p165, %p166
      %p168 = scmp.ne.s32.totalorder %s160, %s162
      %p169 = scmp.eq.s32.totalorder %s33, 3
      %p170 = por %p168, %p169
      %p171 = scmp.ne.s32.totalorder %s162, %s163
      %p172 = scmp.eq.s32.totalorder %s33, 0
      %p173 = por %p171, %p172
      %p174 = scmp.ne.s32.totalorder %s162, %s163
      %p175 = scmp.eq.s32.totalorder %s34, 3
      %p176 = por %p174, %p175
      %p178 = scmp.ne.s32.totalorder %s163, %s177
      %p179 = scmp.eq.s32.totalorder %s34, 0
      %p180 = por %p178, %p179
      %s182 = sadd.s32 %s181, 1
      %p185 = scmp.eq.s32.totalorder %s28, 3
      %p186 = scmp.ne.s32.totalorder %s181, %s183
      %p187 = scmp.eq.s32.totalorder %s28, 0
      %p188 = por %p186, %p187
      %p189 = scmp.ne.s32.totalorder %s181, %s183
      %p190 = scmp.eq.s32.totalorder %s33, 3
      %p191 = por %p189, %p190
      %p192 = scmp.ne.s32.totalorder %s183, %s184
      %p193 = scmp.eq.s32.totalorder %s33, 0
      %p194 = por %p192, %p193
      %p195 = scmp.ne.s32.totalorder %s183, %s184
      %p196 = scmp.eq.s32.totalorder %s34, 3
      %p197 = por %p195, %p196
      %p199 = scmp.ne.s32.totalorder %s184, %s198
      %p200 = scmp.eq.s32.totalorder %s34, 0
      %p201 = por %p199, %p200
      %s203 = sadd.s32 %s202, 1
      %p206 = scmp.eq.s32.totalorder %s28, 3
      %p207 = scmp.ne.s32.totalorder %s202, %s204
      %p208 = scmp.eq.s32.totalorder %s28, 0
      %p209 = por %p207, %p208
      %p210 = scmp.ne.s32.totalorder %s202, %s204
      %p211 = scmp.eq.s32.totalorder %s33, 3
      %p212 = por %p210, %p211
      %p213 = scmp.ne.s32.totalorder %s204, %s205
      %p214 = scmp.eq.s32.totalorder %s33, 0
      %p215 = por %p213, %p214
      %p216 = scmp.ne.s32.totalorder %s204, %s205
      %p217 = scmp.eq.s32.totalorder %s34, 3
      %p218 = por %p216, %p217
      %p220 = scmp.ne.s32.totalorder %s205, %s219
      %p221 = scmp.eq.s32.totalorder %s34, 0
      %p222 = por %p220, %p221
      %s224 = sadd.s32 %s223, 1
      %p227 = scmp.eq.s32.totalorder %s28, 3
      %p228 = scmp.ne.s32.totalorder %s223, %s225
      %p229 = scmp.eq.s32.totalorder %s28, 0
      %p230 = por %p228, %p229
      %p231 = scmp.ne.s32.totalorder %s223, %s225
      %p232 = scmp.eq.s32.totalorder %s33, 3
      %p233 = por %p231, %p232
      %p234 = scmp.ne.s32.totalorder %s225, %s226
      %p235 = scmp.eq.s32.totalorder %s33, 0
      %p236 = por %p234, %p235
      %p237 = scmp.ne.s32.totalorder %s225, %s226
      %p238 = scmp.eq.s32.totalorder %s34, 3
      %p239 = por %p237, %p238
      %p241 = scmp.ne.s32.totalorder %s226, %s240
      %p242 = scmp.eq.s32.totalorder %s34, 0
      %p243 = por %p241, %p242
      %s245 = sadd.s32 %s244, 1
      %p248 = scmp.eq.s32.totalorder %s28, 3
      %p249 = scmp.ne.s32.totalorder %s244, %s246
      %p250 = scmp.eq.s32.totalorder %s28, 0
      %p251 = por %p249, %p250
      %p252 = scmp.ne.s32.totalorder %s244, %s246
      %p253 = scmp.eq.s32.totalorder %s33, 3
      %p254 = por %p252, %p253
      %p255 = scmp.ne.s32.totalorder %s246, %s247
      %p256 = scmp.eq.s32.totalorder %s33, 0
      %p257 = por %p255, %p256
      %p258 = scmp.ne.s32.totalorder %s246, %s247
      %p259 = scmp.eq.s32.totalorder %s34, 3
      %p260 = por %p258, %p259
      %p262 = scmp.ne.s32.totalorder %s247, %s261
      %p263 = scmp.eq.s32.totalorder %s34, 0
      %p264 = por %p262, %p263
      %s266 = sadd.s32 %s265, 1
      %p269 = scmp.eq.s32.totalorder %s28, 3
      %p270 = scmp.ne.s32.totalorder %s265, %s267
      %p271 = scmp.eq.s32.totalorder %s28, 0
      %p272 = por %p270, %p271
      %p273 = scmp.ne.s32.totalorder %s265, %s267
      %p274 = scmp.eq.s32.totalorder %s33, 3
      %p275 = por %p273, %p274
      %p276 = scmp.ne.s32.totalorder %s267, %s268
      %p277 = scmp.eq.s32.totalorder %s33, 0
      %p278 = por %p276, %p277
      %p279 = scmp.ne.s32.totalorder %s267, %s268
      %p280 = scmp.eq.s32.totalorder %s34, 3
      %p281 = por %p279, %p280
      %p283 = scmp.ne.s32.totalorder %s268, %s282
      %p284 = scmp.eq.s32.totalorder %s34, 0
      %p285 = por %p283, %p284
      %s286 = ssub.s32 %s35, %s47
      %s287 = ssub.s32 %s36, %s43
      %s288 = sor.u32 %s286, %s287
      %p289 = scmp.eq.s32.totalorder %s288, 0
      %s291 = sadd.s32 %s290, 1
      %s292 = scalar_select %p289, %s290, %s291
      %p295 = pneg %p289
      %p296 = scmp.eq.s32.totalorder %s28, 3
      %p297 = por %p295, %p296
      %p298 = scmp.ne.s32.totalorder %s290, %s293
      %p299 = scmp.eq.s32.totalorder %s28, 0
      %p300 = por %p298, %p299
      %p301 = scmp.ne.s32.totalorder %s290, %s293
      %p302 = scmp.eq.s32.totalorder %s33, 3
      %p303 = por %p301, %p302
      %p304 = scmp.ne.s32.totalorder %s293, %s294
      %p305 = scmp.eq.s32.totalorder %s33, 0
      %p306 = por %p304, %p305
      %p307 = scmp.ne.s32.totalorder %s293, %s294
      %p308 = scmp.eq.s32.totalorder %s34, 3
      %p309 = por %p307, %p308
      %p311 = scmp.ne.s32.totalorder %s294, %s310
      %p312 = scmp.eq.s32.totalorder %s34, 0
      %p313 = por %p311, %p312
      %p314 = scmp.le.s32.totalorder 1, %s28
      %p315 = scmp.lt.s32.totalorder %s28, 5
      %p316 = pnand %p314, %p315
      %p317 = pneg %p316
      // Predicated region
      $region9: #{tpu_custom_call.1} parent=5 // pred_check
        _
      $region10: #{tpu_custom_call.1} parent=5 // pred_check_branch
        %319 = sbr.rel (%p316) target = $region12
      $region11: #{tpu_custom_call.1} parent=5 // pred_region
        %s320 = ssub.s32 %s28, 1
        // Predicated region
        $region13: #{tpu_custom_call.1} parent=11 // pred_check
          %p321 = pneg %p89
        $region14: #{tpu_custom_call.1} parent=11 // pred_check_branch
          %323 = sbr.rel (%p321) target = $region16
        $region15: #{tpu_custom_call.1} parent=11 // pred_region
          %s325 = ssub.s32 16, 16
          %326 = vsyncadd [#allocation12], %s325
          %s328 = sshll.u32 [#allocation11], 4
          %s329 = int_to_ptr.vmem [resolvable:$true] %s328
          %331 = dma.hbm_to_vmem [thread:$0]  %s1, 16, %s329, [#allocation12]
        $region16: #{tpu_custom_call.1} parent=11 // pred_fallthru
          _
        // Predicated region
        $region17: #{tpu_custom_call.1} parent=11 // pred_check
          %p332 = pneg %p110
        $region18: #{tpu_custom_call.1} parent=11 // pred_check_branch
          %334 = sbr.rel (%p332) target = $region20
        $region19: #{tpu_custom_call.1} parent=11 // pred_region
          %s336 = ssub.s32 256, 256
          %337 = vsyncadd [#allocation12], %s336
          %s338 = sshll.u32 [#allocation13], 4
          %s339 = int_to_ptr.vmem [resolvable:$true] %s338
          %344 = dma.hbm_to_vmem [thread:$0]  %s2, 256, %s339, [#allocation12], 64, 64, 4
        $region20: #{tpu_custom_call.1} parent=11 // pred_fallthru
          _
        // Predicated region
        $region21: #{tpu_custom_call.1} parent=11 // pred_check
          %p345 = pneg %p131
        $region22: #{tpu_custom_call.1} parent=11 // pred_check_branch
          %347 = sbr.rel (%p345) target = $region24
        $region23: #{tpu_custom_call.1} parent=11 // pred_region
          %s349 = ssub.s32 64, 64
          %350 = vsyncadd [#allocation15], %s349
          %s352 = sshll.u32 [#allocation14], 4
          %s353 = int_to_ptr.vmem [resolvable:$true] %s352
          %355 = dma.hbm_to_vmem [thread:$0]  %s3, 64, %s353, [#allocation15]
        $region24: #{tpu_custom_call.1} parent=11 // pred_fallthru
          _
        // Predicated region
        $region25: #{tpu_custom_call.1} parent=11 // pred_check
          %p356 = pneg %p152
        $region26: #{tpu_custom_call.1} parent=11 // pred_check_branch
          %358 = sbr.rel (%p356) target = $region28
        $region27: #{tpu_custom_call.1} parent=11 // pred_region
          %s360 = ssub.s32 16, 16
          %361 = vsyncadd [#allocation15], %s360
          %s363 = sshll.u32 [#allocation16], 4
          %s364 = int_to_ptr.vmem [resolvable:$true] %s363
          %366 = dma.hbm_to_vmem [thread:$0]  %s4, 16, %s364, [#allocation15]
        $region28: #{tpu_custom_call.1} parent=11 // pred_fallthru
          _
        // Predicated region
        $region29: #{tpu_custom_call.1} parent=11 // pred_check
          %p367 = pneg %p173
        $region30: #{tpu_custom_call.1} parent=11 // pred_check_branch
          %369 = sbr.rel (%p367) target = $region32
        $region31: #{tpu_custom_call.1} parent=11 // pred_region
          %s371 = ssub.s32 1024, 1024
          %372 = vsyncadd [#allocation18], %s371
          %s373 = sshll.u32 [#allocation17], 4
          %s374 = int_to_ptr.vmem [resolvable:$true] %s373
          %379 = dma.hbm_to_vmem [thread:$0]  %s5, 1024, %s374, [#allocation18], 128, 128, 8
        $region32: #{tpu_custom_call.1} parent=11 // pred_fallthru
          _
        // Predicated region
        $region33: #{tpu_custom_call.1} parent=11 // pred_check
          %p380 = pneg %p194
        $region34: #{tpu_custom_call.1} parent=11 // pred_check_branch
          %382 = sbr.rel (%p380) target = $region36
        $region35: #{tpu_custom_call.1} parent=11 // pred_region
          %s384 = ssub.s32 2048, 2048
          %385 = vsyncadd [#allocation18], %s384
          %s386 = sshll.u32 [#allocation19], 4
          %s387 = int_to_ptr.vmem [resolvable:$true] %s386
          %392 = dma.hbm_to_vmem [thread:$0]  %s6, 2048, %s387, [#allocation18], 128, 128, 8
        $region36: #{tpu_custom_call.1} parent=11 // pred_fallthru
          _
        // Predicated region
        $region37: #{tpu_custom_call.1} parent=11 // pred_check
          %p393 = pneg %p215
        $region38: #{tpu_custom_call.1} parent=11 // pred_check_branch
          %395 = sbr.rel (%p393) target = $region40
        $region39: #{tpu_custom_call.1} parent=11 // pred_region
          %s397 = ssub.s32 16, 16
          %398 = vsyncadd [#allocation21], %s397
          %s400 = sshll.u32 [#allocation20], 4
          %s401 = int_to_ptr.vmem [resolvable:$true] %s400
          %403 = dma.hbm_to_vmem [thread:$0]  %s7, 16, %s401, [#allocation21]
        $region40: #{tpu_custom_call.1} parent=11 // pred_fallthru
          _
        // Predicated region
        $region41: #{tpu_custom_call.1} parent=11 // pred_check
          %p404 = pneg %p236
        $region42: #{tpu_custom_call.1} parent=11 // pred_check_branch
          %406 = sbr.rel (%p404) target = $region44
        $region43: #{tpu_custom_call.1} parent=11 // pred_region
          %s408 = ssub.s32 128, 128
          %409 = vsyncadd [#allocation21], %s408
          %s411 = sshll.u32 [#allocation22], 4
          %s412 = int_to_ptr.vmem [resolvable:$true] %s411
          %414 = dma.hbm_to_vmem [thread:$0]  %s8, 128, %s412, [#allocation21]
        $region44: #{tpu_custom_call.1} parent=11 // pred_fallthru
          _
        // Predicated region
        $region45: #{tpu_custom_call.1} parent=11 // pred_check
          %p415 = pneg %p257
        $region46: #{tpu_custom_call.1} parent=11 // pred_check_branch
          %417 = sbr.rel (%p415) target = $region48
        $region47: #{tpu_custom_call.1} parent=11 // pred_region
          %s419 = ssub.s32 16, 16
          %420 = vsyncadd [#allocation24], %s419
          %s422 = sshll.u32 [#allocation23], 4
          %s423 = int_to_ptr.vmem [resolvable:$true] %s422
          %425 = dma.hbm_to_vmem [thread:$0]  %s9, 16, %s423, [#allocation24]
        $region48: #{tpu_custom_call.1} parent=11 // pred_fallthru
          _
        // Predicated region
        $region49: #{tpu_custom_call.1} parent=11 // pred_check
          %p426 = pneg %p278
        $region50: #{tpu_custom_call.1} parent=11 // pred_check_branch
          %428 = sbr.rel (%p426) target = $region52
        $region51: #{tpu_custom_call.1} parent=11 // pred_region
          %s430 = ssub.s32 512, 512
          %431 = vsyncadd [#allocation24], %s430
          %s432 = sshll.u32 [#allocation25], 4
          %s433 = int_to_ptr.vmem [resolvable:$true] %s432
          %438 = dma.hbm_to_vmem [thread:$0]  %s10, 512, %s433, [#allocation24], 64, 64, 4
        $region52: #{tpu_custom_call.1} parent=11 // pred_fallthru
          _
      $region12: #{tpu_custom_call.1} parent=5 // pred_fallthru
        _
      %p439 = scmp.lt.s32.totalorder %s28, 4
      // Predicated region
      $region53: #{tpu_custom_call.1} parent=5 // pred_check
        %p440 = pneg %p439
      $region54: #{tpu_custom_call.1} parent=5 // pred_check_branch
        %442 = sbr.rel (%p440) target = $region56
      $region55: #{tpu_custom_call.1} parent=5 // pred_region
        // Predicated region
        $region57: #{tpu_custom_call.1} parent=55 // pred_check
          %p443 = pneg %p62
        $region58: #{tpu_custom_call.1} parent=55 // pred_check_branch
          %445 = sbr.rel (%p443) target = $region60
        $region59: #{tpu_custom_call.1} parent=55 // pred_region
          %s446 = sand.u32 %s52, 1
          %s447 = scalar_lea.sflag [#allocation9], %s446
          %s448 = sand.u32 %s52, 1
          %s449 = smul.addr %s448, 8
          %s450 = scalar_lea.vmem [#allocation8], %s449
          %s452 = ssub.s32 128, 128
          %453 = vsyncadd %s447, %s452
          %s454 = smul.addr %s35, 2
          %s455 = sadd.s32 %s36, %s454
          %s456 = smul.addr %s455, 128
          %s457 = scalar_lea.hbm %s0, %s456
          %s459 = sshll.u32 %s450, 4
          %s460 = int_to_ptr.vmem [resolvable:$true] %s459
          %462 = dma.hbm_to_vmem [thread:$0]  %s457, 128, %s460, %s447
        $region60: #{tpu_custom_call.1} parent=55 // pred_fallthru
          _
      $region56: #{tpu_custom_call.1} parent=5 // pred_fallthru
        _
      %p463 = scmp.le.s32.totalorder 1, %s28
      %p464 = scmp.lt.s32.totalorder %s28, 5
      %p465 = pnand %p463, %p464
      %p466 = pneg %p465
      // Predicated region
      $region61: #{tpu_custom_call.1} parent=5 // pred_check
        _
      $region62: #{tpu_custom_call.1} parent=5 // pred_check_branch
        %468 = sbr.rel (%p465) target = $region64
      $region63: #{tpu_custom_call.1} parent=5 // pred_region
        %s469 = ssub.s32 %s28, 1
        %s470 = sand.u32 %s55, 1
        %s471 = scalar_lea.sflag [#allocation9], %s470
        %s472 = sand.u32 %s55, 1
        %s473 = smul.addr %s472, 8
        %s474 = scalar_lea.vmem [#allocation8], %s473
        // Predicated region
        $region65: #{tpu_custom_call.1} parent=63 // pred_check
          %p475 = pneg %p68
        $region66: #{tpu_custom_call.1} parent=63 // pred_check_branch
          %477 = sbr.rel (%p475) target = $region68
        $region67: #{tpu_custom_call.1} parent=63 // pred_region
          %478 = dma.done %s471, 128
        $region68: #{tpu_custom_call.1} parent=63 // pred_fallthru
          _
        // Predicated region
        $region69: #{tpu_custom_call.1} parent=63 // pred_check
          %p479 = pneg %p89
        $region70: #{tpu_custom_call.1} parent=63 // pred_check_branch
          %481 = sbr.rel (%p479) target = $region72
        $region71: #{tpu_custom_call.1} parent=63 // pred_region
          %482 = dma.done [#allocation12], 16
        $region72: #{tpu_custom_call.1} parent=63 // pred_fallthru
          _
        // Predicated region
        $region73: #{tpu_custom_call.1} parent=63 // pred_check
          %p483 = pneg %p110
        $region74: #{tpu_custom_call.1} parent=63 // pred_check_branch
          %485 = sbr.rel (%p483) target = $region76
        $region75: #{tpu_custom_call.1} parent=63 // pred_region
          %486 = dma.done [#allocation12], 256
        $region76: #{tpu_custom_call.1} parent=63 // pred_fallthru
          _
        // Predicated region
        $region77: #{tpu_custom_call.1} parent=63 // pred_check
          %p487 = pneg %p131
        $region78: #{tpu_custom_call.1} parent=63 // pred_check_branch
          %489 = sbr.rel (%p487) target = $region80
        $region79: #{tpu_custom_call.1} parent=63 // pred_region
          %490 = dma.done [#allocation15], 64
        $region80: #{tpu_custom_call.1} parent=63 // pred_fallthru
          _
        // Predicated region
        $region81: #{tpu_custom_call.1} parent=63 // pred_check
          %p491 = pneg %p152
        $region82: #{tpu_custom_call.1} parent=63 // pred_check_branch
          %493 = sbr.rel (%p491) target = $region84
        $region83: #{tpu_custom_call.1} parent=63 // pred_region
          %494 = dma.done [#allocation15], 16
        $region84: #{tpu_custom_call.1} parent=63 // pred_fallthru
          _
        // Predicated region
        $region85: #{tpu_custom_call.1} parent=63 // pred_check
          %p495 = pneg %p173
        $region86: #{tpu_custom_call.1} parent=63 // pred_check_branch
          %497 = sbr.rel (%p495) target = $region88
        $region87: #{tpu_custom_call.1} parent=63 // pred_region
          %498 = dma.done [#allocation18], 1024
        $region88: #{tpu_custom_call.1} parent=63 // pred_fallthru
          _
        // Predicated region
        $region89: #{tpu_custom_call.1} parent=63 // pred_check
          %p499 = pneg %p194
        $region90: #{tpu_custom_call.1} parent=63 // pred_check_branch
          %501 = sbr.rel (%p499) target = $region92
        $region91: #{tpu_custom_call.1} parent=63 // pred_region
          %502 = dma.done [#allocation18], 2048
        $region92: #{tpu_custom_call.1} parent=63 // pred_fallthru
          _
        // Predicated region
        $region93: #{tpu_custom_call.1} parent=63 // pred_check
          %p503 = pneg %p215
        $region94: #{tpu_custom_call.1} parent=63 // pred_check_branch
          %505 = sbr.rel (%p503) target = $region96
        $region95: #{tpu_custom_call.1} parent=63 // pred_region
          %506 = dma.done [#allocation21], 16
        $region96: #{tpu_custom_call.1} parent=63 // pred_fallthru
          _
        // Predicated region
        $region97: #{tpu_custom_call.1} parent=63 // pred_check
          %p507 = pneg %p236
        $region98: #{tpu_custom_call.1} parent=63 // pred_check_branch
          %509 = sbr.rel (%p507) target = $region100
        $region99: #{tpu_custom_call.1} parent=63 // pred_region
          %510 = dma.done [#allocation21], 128
        $region100: #{tpu_custom_call.1} parent=63 // pred_fallthru
          _
        // Predicated region
        $region101: #{tpu_custom_call.1} parent=63 // pred_check
          %p511 = pneg %p257
        $region102: #{tpu_custom_call.1} parent=63 // pred_check_branch
          %513 = sbr.rel (%p511) target = $region104
        $region103: #{tpu_custom_call.1} parent=63 // pred_region
          %514 = dma.done [#allocation24], 16
        $region104: #{tpu_custom_call.1} parent=63 // pred_fallthru
          _
        // Predicated region
        $region105: #{tpu_custom_call.1} parent=63 // pred_check
          %p515 = pneg %p278
        $region106: #{tpu_custom_call.1} parent=63 // pred_check_branch
          %517 = sbr.rel (%p515) target = $region108
        $region107: #{tpu_custom_call.1} parent=63 // pred_region
          %518 = dma.done [#allocation24], 512
        $region108: #{tpu_custom_call.1} parent=63 // pred_fallthru
          _
        %s519 = sand.u32 %s55, 1
        %s520 = scalar_lea.sflag [#allocation9], %s519
        %s521 = sand.u32 %s55, 1
        %s522 = smul.addr %s521, 8
        %s523 = scalar_lea.vmem [#allocation8], %s522
        %p524 = pneg %p68
        %p525 = pneg %p65
        %p526 = pneg %p89
        %p527 = pneg %p86
        %p528 = pneg %p110
        %p529 = pneg %p107
        %p530 = pneg %p131
        %p531 = pneg %p128
        %p532 = pneg %p152
        %p533 = pneg %p149
        %p534 = pneg %p173
        %p535 = pneg %p170
        %p536 = pneg %p194
        %p537 = pneg %p191
        %p538 = pneg %p215
        %p539 = pneg %p212
        %p540 = pneg %p236
        %p541 = pneg %p233
        %p542 = pneg %p257
        %p543 = pneg %p254
        %p544 = pneg %p278
        %p545 = pneg %p275
        %p546 = pneg %p306
        %p547 = pneg %p303
        %s548 = sand.u32 %s293, 1
        %s549 = scalar_lea.sflag [#allocation10], %s548
        %s550 = sand.u32 %s293, 1
        %s551 = smul.addr %s550, 8
        %s552 = scalar_lea.vmem [#allocation26], %s551
        %p554 = scmp.eq.s32.totalorder %s38, 0
        // Predicated region
        $region109: #{tpu_custom_call.1} parent=63 // pred_check
          %p555 = pneg %p554
        $region110: #{tpu_custom_call.1} parent=63 // pred_check_branch
          %557 = sbr.rel (%p555) target = $region112
        $region111: #{tpu_custom_call.1} parent=63 // pred_region
          %vm558 = vcmask 523264
          %559 = vst.msk [vmem:[#allocation2] sm:$0xff] %vm558, 0.0
          %560 = vst.msk [vmem:[#allocation3] sm:$0xff] %vm558, 0.0
        $region112: #{tpu_custom_call.1} parent=63 // pred_fallthru
          _
        %v561 = vld [vmem:[%s474] sm:$0xff]
        %v562 = vmul.f32 %v561, %v561
        %vm563 = vcmask 261120
        %v564 = vsel %vm563, %v562, 0.0
        %565 = vadd.xlane.f32.xlu0 %v564
        %v566 = vpop.xlane.xlu0 %565
        %v567 = vrcp.pop 32.0
        %v568 = vmul.f32 %v566, %v567
        %v569 = vadd.f32 %v568, 1e-05
        %v570 = vrsqrt.pop %v569
        %v571 = vmul.f32 %v561, %v570
        %v572 = vld [vmem:[#allocation11] sm:$0x1]
        %v574 = vlaneseq
        %v575 = vshrl.u32 %v574, 7
        %v576 = vsub.s32 0, %v575
        %v577 = vrot.slane %v572, %v576
        %v579 = vmul.f32 %v571, %v577
        %v580 = vpack.c.bf16 %v579, %v579
        %v581 = vld [vmem:[#allocation13] sm:$0xf]
        %v582 = vld [vmem:[#allocation13 + $0x4] sm:$0xf]
        %v583 = vld [vmem:[#allocation13 + $0x8] sm:$0xf]
        %v584 = vld [vmem:[#allocation13 + $0xc] sm:$0xf]
        %v589 = vunpack.c.l.b16 %v581
        %v590 = vunpack.c.l.b16 %v582
        %v591 = vunpack.c.l.b16 %v583
        %v592 = vunpack.c.l.b16 %v584
        %v593 = vpack.c.b16 %v590, %v589
        %v594 = vpack.c.b16 %v592, %v591
        %v598 = vsel %vm563, %v580, 0
        %600 = vmatprep.subr.bf16.mxu0 0
        %601 = vmatpush1.bf16.msra.mxu0 %v593
        %602 = vmatprep.subr.bf16.mxu0 0
        %603 = vmatpush1.bf16.msra.mxu0 %v594
        %604 = vmatprep.subr.bf16.mxu0 0
        %605 = vmatpush1.bf16.msra.mxu0 0
        %606 = vmatprep.subr.bf16.mxu0 0
        %607 = vmatpush1.bf16.msra.mxu0 0
        %608 = vmatprep.subr.bf16.mxu0 0
        %609 = vmatpush1.bf16.msra.mxu0 0
        %610 = vmatprep.subr.bf16.mxu0 0
        %611 = vmatpush1.bf16.msra.mxu0 0
        %612 = vmatprep.subr.bf16.mxu0 0
        %613 = vmatpush1.bf16.msra.mxu0 0
        %614 = vmatprep.subr.bf16.mxu0 0
        %615 = vmatpush1.bf16.msra.mxu0 0
        %616 = vmatprep.subr.bf16.mxu0 0
        %617 = vmatpush1.bf16.msra.mxu0 0
        %618 = vmatprep.subr.bf16.mxu0 0
        %619 = vmatpush1.bf16.msra.mxu0 0
        %620 = vmatprep.subr.bf16.mxu0 0
        %621 = vmatpush1.bf16.msra.mxu0 0
        %622 = vmatprep.subr.bf16.mxu0 0
        %623 = vmatpush1.bf16.msra.mxu0 0
        %624 = vmatprep.subr.bf16.mxu0 0
        %625 = vmatpush1.bf16.msra.mxu0 0
        %626 = vmatprep.subr.bf16.mxu0 0
        %627 = vmatpush1.bf16.msra.mxu0 0
        %628 = vmatprep.subr.bf16.mxu0 0
        %629 = vmatpush1.bf16.msra.mxu0 0
        %630 = vmatprep.subr.bf16.mxu0 0
        %631 = vmatpush1.bf16.msra.mxu0 0
        %632 = vmatprep.mubr.bf16.mxu0 0
        %633 = vmatmul.mubr.bf16.gmra.mrb[0].mxu0 %v598
        %v634 = vpop.f32.mrb[0].mxu0
        %v635 = vadd.f32 0.0, %v634
        %v636 = vpop.f32.mrb[0].mxu0
        %v637 = vpop.f32.mrb[0].mxu0
        %v638 = vpop.f32.mrb[0].mxu0
        %639 = vdwg.mxu0
        %v640 = vld [vmem:[#allocation16] sm:$0x1]
        %v641 = vld [vmem:[#allocation14 + $0x3] sm:$0x1]
        %v642 = vlaneseq
        %v643 = vshrl.u32 %v642, 7
        %v644 = vsub.s32 0, %v643
        %v645 = vrot.slane %v641, %v644
        %v646 = vmul.f32 %v635, %v645
        %v648 = vlaneseq
        %v649 = vshrl.u32 %v648, 7
        %v650 = vsub.s32 0, %v649
        %v651 = vrot.slane %v640, %v650
        %v653 = vadd.f32 %v651, %v646
        %v654 = vld [vmem:[#allocation3 + $0x5] sm:$0x7]
        %v656 = vrot.slane %v635, 5
        %vm658 = vcmask 1042432
        %v659 = vsel %vm658, %v654, %v656
        %v660 = vld [vmem:[#allocation14] sm:$0x1]
        %v661 = vlaneseq
        %v662 = vshrl.u32 %v661, 7
        %v663 = vsub.s32 0, %v662
        %v664 = vrot.slane %v660, %v663
        %v665 = vmul.f32 %v659, %v664
        %v666 = vadd.f32 %v653, %v665
        %v668 = vrot.slane %v654, 1
        %v670 = vrot.slane %v635, 6
        %vm672 = vcmask 1041408
        %v673 = vsel %vm672, %v668, %v670
        %v674 = vld [vmem:[#allocation14 + $0x1] sm:$0x1]
        %v675 = vlaneseq
        %v676 = vshrl.u32 %v675, 7
        %v677 = vsub.s32 0, %v676
        %v678 = vrot.slane %v674, %v677
        %v679 = vmul.f32 %v673, %v678
        %v680 = vadd.f32 %v666, %v679
        %v681 = vrot.slane %v654, 2
        %v683 = vrot.slane %v635, 7
        %vm685 = vcmask 1040384
        %v686 = vsel %vm685, %v681, %v683
        %v687 = vld [vmem:[#allocation14 + $0x2] sm:$0x1]
        %v688 = vlaneseq
        %v689 = vshrl.u32 %v688, 7
        %v690 = vsub.s32 0, %v689
        %v691 = vrot.slane %v687, %v690
        %v692 = vmul.f32 %v686, %v691
        %v693 = vadd.f32 %v680, %v692
        %vm694 = vcmask 523264
        %695 = vst.msk [vmem:[#allocation3] sm:$0xff] %vm694, %v635
        %v696 = vxor.u32 %v693, 2147483648
        %v697 = vmul.f32 %v696, 1.442695
        %v698 = vpow.pop %v697
        %v699 = vadd.f32 %v698, 1.0
        %v700 = vrcp.pop %v699
        %v701 = vmul.f32 1.0, %v700
        %v702 = vmul.f32 %v693, %v701
        %v703 = vpack.c.bf16 %v702, %v702
        %v704 = vld [vmem:[#allocation17] sm:$0xff]
        %v705 = vld [vmem:[#allocation17 + $0x8] sm:$0xff]
        %v706 = vld [vmem:[#allocation17 + $0x10] sm:$0xff]
        %v707 = vld [vmem:[#allocation17 + $0x18] sm:$0xff]
        %v708 = vld [vmem:[#allocation17 + $0x20] sm:$0xff]
        %v709 = vld [vmem:[#allocation17 + $0x28] sm:$0xff]
        %v710 = vld [vmem:[#allocation17 + $0x30] sm:$0xff]
        %v711 = vld [vmem:[#allocation17 + $0x38] sm:$0xff]
        %v720 = vunpack.c.l.b16 %v704
        %v721 = vunpack.c.h.b16 %v704
        %v722 = vunpack.c.l.b16 %v705
        %v723 = vunpack.c.h.b16 %v705
        %v724 = vunpack.c.l.b16 %v706
        %v725 = vunpack.c.h.b16 %v706
        %v726 = vunpack.c.l.b16 %v707
        %v727 = vunpack.c.h.b16 %v707
        %v728 = vunpack.c.l.b16 %v708
        %v729 = vunpack.c.h.b16 %v708
        %v730 = vunpack.c.l.b16 %v709
        %v731 = vunpack.c.h.b16 %v709
        %v732 = vunpack.c.l.b16 %v710
        %v733 = vunpack.c.h.b16 %v710
        %v734 = vunpack.c.l.b16 %v711
        %v735 = vunpack.c.h.b16 %v711
        %v736 = vpack.c.b16 %v722, %v720
        %v737 = vpack.c.b16 %v723, %v721
        %v738 = vpack.c.b16 %v726, %v724
        %v739 = vpack.c.b16 %v727, %v725
        %v740 = vpack.c.b16 %v730, %v728
        %v741 = vpack.c.b16 %v731, %v729
        %v742 = vpack.c.b16 %v734, %v732
        %v743 = vpack.c.b16 %v735, %v733
        %v753 = vsel %vm694, %v703, 0
        %755 = vmatprep.subr.bf16.mxu0 %v737
        %756 = vmatpush1.bf16.msra.mxu0 %v736
        %757 = vmatprep.subr.bf16.mxu0 %v739
        %758 = vmatpush1.bf16.msra.mxu0 %v738
        %759 = vmatprep.subr.bf16.mxu0 %v741
        %760 = vmatpush1.bf16.msra.mxu0 %v740
        %761 = vmatprep.subr.bf16.mxu0 %v743
        %762 = vmatpush1.bf16.msra.mxu0 %v742
        %763 = vmatprep.subr.bf16.mxu0 0
        %764 = vmatpush1.bf16.msra.mxu0 0
        %765 = vmatprep.subr.bf16.mxu0 0
        %766 = vmatpush1.bf16.msra.mxu0 0
        %767 = vmatprep.subr.bf16.mxu0 0
        %768 = vmatpush1.bf16.msra.mxu0 0
        %769 = vmatprep.subr.bf16.mxu0 0
        %770 = vmatpush1.bf16.msra.mxu0 0
        %771 = vmatprep.subr.bf16.mxu0 0
        %772 = vmatpush1.bf16.msra.mxu0 0
        %773 = vmatprep.subr.bf16.mxu0 0
        %774 = vmatpush1.bf16.msra.mxu0 0
        %775 = vmatprep.subr.bf16.mxu0 0
        %776 = vmatpush1.bf16.msra.mxu0 0
        %777 = vmatprep.subr.bf16.mxu0 0
        %778 = vmatpush1.bf16.msra.mxu0 0
        %779 = vmatprep.subr.bf16.mxu0 0
        %780 = vmatpush1.bf16.msra.mxu0 0
        %781 = vmatprep.subr.bf16.mxu0 0
        %782 = vmatpush1.bf16.msra.mxu0 0
        %783 = vmatprep.subr.bf16.mxu0 0
        %784 = vmatpush1.bf16.msra.mxu0 0
        %785 = vmatprep.subr.bf16.mxu0 0
        %786 = vmatpush1.bf16.msra.mxu0 0
        %787 = vmatprep.mubr.bf16.mxu0 0
        %788 = vmatmul.mubr.bf16.gmra.mrb[0].mxu0 %v753
        %v789 = vpop.f32.mrb[0].mxu0
        %v790 = vadd.f32 0.0, %v789
        %v791 = vpop.f32.mrb[0].mxu0
        %v792 = vadd.f32 0.0, %v791
        %v793 = vpop.f32.mrb[0].mxu0
        %v794 = vpop.f32.mrb[0].mxu0
        %795 = vdwg.mxu0
        %v796 = vld [vmem:[#allocation19] sm:$0xff]
        %v797 = vld [vmem:[#allocation19 + $0x8] sm:$0xff]
        %v798 = vld [vmem:[#allocation19 + $0x10] sm:$0xff]
        %v799 = vld [vmem:[#allocation19 + $0x18] sm:$0xff]
        %v800 = vld [vmem:[#allocation19 + $0x20] sm:$0xff]
        %v801 = vld [vmem:[#allocation19 + $0x28] sm:$0xff]
        %v802 = vld [vmem:[#allocation19 + $0x30] sm:$0xff]
        %v803 = vld [vmem:[#allocation19 + $0x38] sm:$0xff]
        %v804 = vld [vmem:[#allocation19 + $0x40] sm:$0xff]
        %v805 = vld [vmem:[#allocation19 + $0x48] sm:$0xff]
        %v806 = vld [vmem:[#allocation19 + $0x50] sm:$0xff]
        %v807 = vld [vmem:[#allocation19 + $0x58] sm:$0xff]
        %v808 = vld [vmem:[#allocation19 + $0x60] sm:$0xff]
        %v809 = vld [vmem:[#allocation19 + $0x68] sm:$0xff]
        %v810 = vld [vmem:[#allocation19 + $0x70] sm:$0xff]
        %v811 = vld [vmem:[#allocation19 + $0x78] sm:$0xff]
        %v812 = vld [vmem:[#allocation20] sm:$0x1]
        %v814 = vlaneseq
        %v815 = vshrl.u32 %v814, 7
        %v816 = vsub.s32 0, %v815
        %v817 = vrot.slane %v812, %v816
        %819 = vmatprep.subr.mxu0 0.0
        %820 = vmatpush1.msra.mxu0 %v796
        %821 = vmatprep.subr.mxu0 0.0
        %822 = vmatpush1.msra.mxu0 %v797
        %823 = vmatprep.subr.mxu0 0.0
        %824 = vmatpush1.msra.mxu0 %v798
        %825 = vmatprep.subr.mxu0 0.0
        %826 = vmatpush1.msra.mxu0 %v799
        %827 = vmatprep.subr.mxu0 0.0
        %828 = vmatpush1.msra.mxu0 %v800
        %829 = vmatprep.subr.mxu0 0.0
        %830 = vmatpush1.msra.mxu0 %v801
        %831 = vmatprep.subr.mxu0 0.0
        %832 = vmatpush1.msra.mxu0 %v802
        %833 = vmatprep.subr.mxu0 0.0
        %834 = vmatpush1.msra.mxu0 %v803
        %835 = vmatprep.subr.mxu0 0.0
        %836 = vmatpush1.msra.mxu0 %v804
        %837 = vmatprep.subr.mxu0 0.0
        %838 = vmatpush1.msra.mxu0 %v805
        %839 = vmatprep.subr.mxu0 0.0
        %840 = vmatpush1.msra.mxu0 %v806
        %841 = vmatprep.subr.mxu0 0.0
        %842 = vmatpush1.msra.mxu0 %v807
        %843 = vmatprep.subr.mxu0 0.0
        %844 = vmatpush1.msra.mxu0 %v808
        %845 = vmatprep.subr.mxu0 0.0
        %846 = vmatpush1.msra.mxu0 %v809
        %847 = vmatprep.subr.mxu0 0.0
        %848 = vmatpush1.msra.mxu0 %v810
        %849 = vmatprep.subr.mxu0 0.0
        %850 = vmatpush1.msra.mxu0 %v811
        %851 = vmatprep.subr.mxu0 0.0
        %852 = vmatpush1.msra.mxu0 0.0
        %853 = vmatprep.subr.mxu0 0.0
        %854 = vmatpush1.msra.mxu0 0.0
        %855 = vmatprep.subr.mxu0 0.0
        %856 = vmatpush1.msra.mxu0 0.0
        %857 = vmatprep.subr.mxu0 0.0
        %858 = vmatpush1.msra.mxu0 0.0
        %859 = vmatprep.subr.mxu0 0.0
        %860 = vmatpush1.msra.mxu0 0.0
        %861 = vmatprep.subr.mxu0 0.0
        %862 = vmatpush1.msra.mxu0 0.0
        %863 = vmatprep.subr.mxu0 0.0
        %864 = vmatpush1.msra.mxu0 0.0
        %865 = vmatprep.subr.mxu0 0.0
        %866 = vmatpush1.msra.mxu0 0.0
        %867 = vmatprep.subr.mxu0 0.0
        %868 = vmatpush1.msra.mxu0 0.0
        %869 = vmatprep.subr.mxu0 0.0
        %870 = vmatpush1.msra.mxu0 0.0
        %871 = vmatprep.subr.mxu0 0.0
        %872 = vmatpush1.msra.mxu0 0.0
        %873 = vmatprep.subr.mxu0 0.0
        %874 = vmatpush1.msra.mxu0 0.0
        %875 = vmatprep.subr.mxu0 0.0
        %876 = vmatpush1.msra.mxu0 0.0
        %877 = vmatprep.subr.mxu0 0.0
        %878 = vmatpush1.msra.mxu0 0.0
        %879 = vmatprep.subr.mxu0 0.0
        %880 = vmatpush1.msra.mxu0 0.0
        %881 = vmatprep.subr.mxu0 0.0
        %882 = vmatpush1.msra.mxu0 0.0
        %883 = vmatprep.mubr.f32.mxu0 0.0
        %884 = vmatmul.mubr.f32.gmra.mrb[0].mxu0 %v790
        %v885 = vpop.f32.mrb[0].mxu0
        %v886 = vadd.f32 %v817, %v885
        %v887 = vpop.f32.mrb[0].mxu0
        %888 = vdwg.mxu0
        %v889 = vmax.f32 %v886, 0.0
        %vm890 = vcmp.ne.f32.partialorder %v886, %v886
        %v891 = vadd.f32 %v886, 0.0
        %v892 = vand.u32 2147483647, %v886
        %v893 = vsub.f32 0.0, %v892
        %v894 = vmul.f32 %v893, 1.442695
        %v895 = vpow.pop %v894
        %v896 = vadd.f32 %v895, 1.0
        %v897 = vlog2.pop %v896
        %v898 = vmul.f32 %v897, 0.6931472
        %v899 = vmul.f32 -0.5, %v895
        %v900 = vadd.f32 %v899, 1.0
        %v901 = vmul.f32 %v900, %v895
        %v902 = vand.u32 2147483647, %v895
        %vm903 = vcmp.lt.f32.partialorder %v902, 0.0004427343
        %v904 = vsel %vm903, %v901, %v898
        %v905 = vadd.f32 %v889, %v904
        %v906 = vsel %vm890, %v891, %v905
        %907 = vst.msk [vmem:[#allocation4] sm:$0xff] %vm694, %v906
        %v908 = vmul.f32 %v906, %v702
        %909 = vst.msk [vmem:[#allocation5] sm:$0xff] %vm694, %v908
        %vm910 = vcmask 130048
        %911 = vst.msk [vmem:[#allocation6] sm:$0xff] %vm910, %v792
        %v912 = vld [vmem:[#allocation22] sm:$0xff]
        %v913 = vld [vmem:[#allocation4] sm:$0xff]
        %v914 = vld [vmem:[#allocation5] sm:$0xff]
        %v915 = vld [vmem:[#allocation6] sm:$0xff]
        %v917 = vcombine.high %v913, %v913
        %v919 = vunpack.c.l.s4 1966171168
        %v920 = vunpack.c.0.s8 %v919
        %v921 = vlaneseq
        %v922 = vshrl.u32 %v921, 7
        %v923 = vsub.s32 %v920, %v922
        %v924 = vrot.slane %v913, %v923
        %v926 = vunpack.c.l.s4 1966171168
        %v927 = vunpack.c.0.s8 %v926
        %v928 = vlaneseq
        %v929 = vshrl.u32 %v928, 7
        %v930 = vsub.s32 %v927, %v929
        %v931 = vrot.slane %v917, %v930
        %v932 = vcombine.high %v924, %v924
        %v933 = vcombine.high %v931, %v931
        %v935 = vunpack.c.l.s4 1966171168
        %v936 = vunpack.c.0.s8 %v935
        %v937 = vlaneseq
        %v938 = vshrl.u32 %v937, 7
        %v939 = vsub.s32 %v936, %v938
        %v940 = vrot.slane %v924, %v939
        %v942 = vunpack.c.l.s4 1966171168
        %v943 = vunpack.c.0.s8 %v942
        %v944 = vlaneseq
        %v945 = vshrl.u32 %v944, 7
        %v946 = vsub.s32 %v943, %v945
        %v947 = vrot.slane %v931, %v946
        %v949 = vunpack.c.l.s4 1966171168
        %v950 = vunpack.c.0.s8 %v949
        %v951 = vlaneseq
        %v952 = vshrl.u32 %v951, 7
        %v953 = vsub.s32 %v950, %v952
        %v954 = vrot.slane %v932, %v953
        %v956 = vunpack.c.l.s4 1966171168
        %v957 = vunpack.c.0.s8 %v956
        %v958 = vlaneseq
        %v959 = vshrl.u32 %v958, 7
        %v960 = vsub.s32 %v957, %v959
        %v961 = vrot.slane %v933, %v960
        %v962 = vcombine.high %v940, %v940
        %v963 = vcombine.high %v947, %v947
        %v964 = vcombine.high %v954, %v954
        %v965 = vcombine.high %v961, %v961
        %v966 = vlaneseq
        %v967 = vshrl.u32 %v966, 7
        %v968 = vsub.s32 0, %v967
        %v969 = vrot.slane %v940, %v968
        %v970 = vlaneseq
        %v971 = vshrl.u32 %v970, 7
        %v972 = vsub.s32 0, %v971
        %v973 = vrot.slane %v954, %v972
        %v974 = vlaneseq
        %v975 = vshrl.u32 %v974, 7
        %v976 = vsub.s32 0, %v975
        %v977 = vrot.slane %v962, %v976
        %v978 = vlaneseq
        %v979 = vshrl.u32 %v978, 7
        %v980 = vsub.s32 0, %v979
        %v981 = vrot.slane %v964, %v980
        %v982 = vlaneseq
        %v983 = vshrl.u32 %v982, 7
        %v984 = vsub.s32 0, %v983
        %v985 = vrot.slane %v947, %v984
        %v986 = vlaneseq
        %v987 = vshrl.u32 %v986, 7
        %v988 = vsub.s32 0, %v987
        %v989 = vrot.slane %v961, %v988
        %v990 = vlaneseq
        %v991 = vshrl.u32 %v990, 7
        %v992 = vsub.s32 0, %v991
        %v993 = vrot.slane %v963, %v992
        %v994 = vlaneseq
        %v995 = vshrl.u32 %v994, 7
        %v996 = vsub.s32 0, %v995
        %v997 = vrot.slane %v965, %v996
        %v1006 = vmul.f32 %v969, %v912
        %v1007 = vmul.f32 %v973, %v912
        %v1008 = vmul.f32 %v977, %v912
        %v1009 = vmul.f32 %v981, %v912
        %v1010 = vmul.f32 %v985, %v912
        %v1011 = vmul.f32 %v989, %v912
        %v1012 = vmul.f32 %v993, %v912
        %v1013 = vmul.f32 %v997, %v912
        %v1014 = vmul.f32 %v1006, 1.442695
        %v1015 = vpow.pop %v1014
        %v1016 = vmul.f32 %v1007, 1.442695
        %v1017 = vpow.pop %v1016
        %v1018 = vmul.f32 %v1008, 1.442695
        %v1019 = vpow.pop %v1018
        %v1020 = vmul.f32 %v1009, 1.442695
        %v1021 = vpow.pop %v1020
        %v1022 = vmul.f32 %v1010, 1.442695
        %v1023 = vpow.pop %v1022
        %v1024 = vmul.f32 %v1011, 1.442695
        %v1025 = vpow.pop %v1024
        %v1026 = vmul.f32 %v1012, 1.442695
        %v1027 = vpow.pop %v1026
        %v1028 = vmul.f32 %v1013, 1.442695
        %v1029 = vpow.pop %v1028
        %v1030 = vlaneseq
        %v1031 = vshrl.u32 %v1030, 7
        %v1032 = vsub.s32 0, %v1031
        %v1033 = vrot.slane %v915, %v1032
        %1035 = vbcast.lane.b32.xlu0 %v1033, 256
        %v1036 = vpop.permute.xlu0 %1035
        %v1037 = vlaneseq
        %v1038 = vshrl.u32 %v1037, 7
        %v1039 = vsub.s32 1, %v1038
        %v1040 = vrot.slane %v915, %v1039
        %1042 = vbcast.lane.b32.xlu0 %v1040, 256
        %v1043 = vpop.permute.xlu0 %1042
        %v1044 = vlaneseq
        %v1045 = vshrl.u32 %v1044, 7
        %v1046 = vsub.s32 2, %v1045
        %v1047 = vrot.slane %v915, %v1046
        %1049 = vbcast.lane.b32.xlu0 %v1047, 256
        %v1050 = vpop.permute.xlu0 %1049
        %v1051 = vlaneseq
        %v1052 = vshrl.u32 %v1051, 7
        %v1053 = vsub.s32 3, %v1052
        %v1054 = vrot.slane %v915, %v1053
        %1056 = vbcast.lane.b32.xlu0 %v1054, 256
        %v1057 = vpop.permute.xlu0 %1056
        %v1058 = vlaneseq
        %v1059 = vshrl.u32 %v1058, 7
        %v1060 = vsub.s32 4, %v1059
        %v1061 = vrot.slane %v915, %v1060
        %1063 = vbcast.lane.b32.xlu0 %v1061, 256
        %v1064 = vpop.permute.xlu0 %1063
        %v1065 = vlaneseq
        %v1066 = vshrl.u32 %v1065, 7
        %v1067 = vsub.s32 5, %v1066
        %v1068 = vrot.slane %v915, %v1067
        %1070 = vbcast.lane.b32.xlu0 %v1068, 256
        %v1071 = vpop.permute.xlu0 %1070
        %v1072 = vlaneseq
        %v1073 = vshrl.u32 %v1072, 7
        %v1074 = vsub.s32 6, %v1073
        %v1075 = vrot.slane %v915, %v1074
        %1077 = vbcast.lane.b32.xlu0 %v1075, 256
        %v1078 = vpop.permute.xlu0 %1077
        %v1079 = vlaneseq
        %v1080 = vshrl.u32 %v1079, 7
        %v1081 = vsub.s32 7, %v1080
        %v1082 = vrot.slane %v915, %v1081
        %1084 = vbcast.lane.b32.xlu0 %v1082, 256
        %v1085 = vpop.permute.xlu0 %1084
        %v1087 = vcombine.high %v914, %v914
        %v1089 = vunpack.c.l.s4 1966171168
        %v1090 = vunpack.c.0.s8 %v1089
        %v1091 = vlaneseq
        %v1092 = vshrl.u32 %v1091, 7
        %v1093 = vsub.s32 %v1090, %v1092
        %v1094 = vrot.slane %v914, %v1093
        %v1096 = vunpack.c.l.s4 1966171168
        %v1097 = vunpack.c.0.s8 %v1096
        %v1098 = vlaneseq
        %v1099 = vshrl.u32 %v1098, 7
        %v1100 = vsub.s32 %v1097, %v1099
        %v1101 = vrot.slane %v1087, %v1100
        %v1102 = vcombine.high %v1094, %v1094
        %v1103 = vcombine.high %v1101, %v1101
        %v1105 = vunpack.c.l.s4 1966171168
        %v1106 = vunpack.c.0.s8 %v1105
        %v1107 = vlaneseq
        %v1108 = vshrl.u32 %v1107, 7
        %v1109 = vsub.s32 %v1106, %v1108
        %v1110 = vrot.slane %v1094, %v1109
        %v1112 = vunpack.c.l.s4 1966171168
        %v1113 = vunpack.c.0.s8 %v1112
        %v1114 = vlaneseq
        %v1115 = vshrl.u32 %v1114, 7
        %v1116 = vsub.s32 %v1113, %v1115
        %v1117 = vrot.slane %v1101, %v1116
        %v1119 = vunpack.c.l.s4 1966171168
        %v1120 = vunpack.c.0.s8 %v1119
        %v1121 = vlaneseq
        %v1122 = vshrl.u32 %v1121, 7
        %v1123 = vsub.s32 %v1120, %v1122
        %v1124 = vrot.slane %v1102, %v1123
        %v1126 = vunpack.c.l.s4 1966171168
        %v1127 = vunpack.c.0.s8 %v1126
        %v1128 = vlaneseq
        %v1129 = vshrl.u32 %v1128, 7
        %v1130 = vsub.s32 %v1127, %v1129
        %v1131 = vrot.slane %v1103, %v1130
        %v1132 = vcombine.high %v1110, %v1110
        %v1133 = vcombine.high %v1117, %v1117
        %v1134 = vcombine.high %v1124, %v1124
        %v1135 = vcombine.high %v1131, %v1131
        %v1136 = vlaneseq
        %v1137 = vshrl.u32 %v1136, 7
        %v1138 = vsub.s32 0, %v1137
        %v1139 = vrot.slane %v1110, %v1138
        %v1140 = vlaneseq
        %v1141 = vshrl.u32 %v1140, 7
        %v1142 = vsub.s32 0, %v1141
        %v1143 = vrot.slane %v1124, %v1142
        %v1144 = vlaneseq
        %v1145 = vshrl.u32 %v1144, 7
        %v1146 = vsub.s32 0, %v1145
        %v1147 = vrot.slane %v1132, %v1146
        %v1148 = vlaneseq
        %v1149 = vshrl.u32 %v1148, 7
        %v1150 = vsub.s32 0, %v1149
        %v1151 = vrot.slane %v1134, %v1150
        %v1152 = vlaneseq
        %v1153 = vshrl.u32 %v1152, 7
        %v1154 = vsub.s32 0, %v1153
        %v1155 = vrot.slane %v1117, %v1154
        %v1156 = vlaneseq
        %v1157 = vshrl.u32 %v1156, 7
        %v1158 = vsub.s32 0, %v1157
        %v1159 = vrot.slane %v1131, %v1158
        %v1160 = vlaneseq
        %v1161 = vshrl.u32 %v1160, 7
        %v1162 = vsub.s32 0, %v1161
        %v1163 = vrot.slane %v1133, %v1162
        %v1164 = vlaneseq
        %v1165 = vshrl.u32 %v1164, 7
        %v1166 = vsub.s32 0, %v1165
        %v1167 = vrot.slane %v1135, %v1166
        %v1176 = vmul.f32 %v1036, %v1139
        %v1177 = vmul.f32 %v1043, %v1143
        %v1178 = vmul.f32 %v1050, %v1147
        %v1179 = vmul.f32 %v1057, %v1151
        %v1180 = vmul.f32 %v1064, %v1155
        %v1181 = vmul.f32 %v1071, %v1159
        %v1182 = vmul.f32 %v1078, %v1163
        %v1183 = vmul.f32 %v1085, %v1167
        %v1184 = vld [vmem:[#allocation2] sm:$0xff]
        %v1185 = vmul.f32 %v1015, %v1184
        %v1186 = vadd.f32 %v1185, %v1176
        %v1187 = vmul.f32 %v1017, %v1186
        %v1188 = vadd.f32 %v1187, %v1177
        %v1189 = vmul.f32 %v1019, %v1188
        %v1190 = vadd.f32 %v1189, %v1178
        %v1191 = vmul.f32 %v1021, %v1190
        %v1192 = vadd.f32 %v1191, %v1179
        %v1193 = vmul.f32 %v1023, %v1192
        %v1194 = vadd.f32 %v1193, %v1180
        %v1195 = vmul.f32 %v1025, %v1194
        %v1196 = vadd.f32 %v1195, %v1181
        %v1197 = vmul.f32 %v1027, %v1196
        %v1198 = vadd.f32 %v1197, %v1182
        %v1199 = vmul.f32 %v1029, %v1198
        %v1200 = vadd.f32 %v1199, %v1183
        %1201 = vst.msk [vmem:[#allocation2] sm:$0xff] %vm694, %v1200
        %s1203 = sor.u32 256, 8
        %1204 = vbcast.lane.b32.xlu0 %v1033, %s1203
        %v1205 = vpop.permute.xlu0 %1204
        %s1207 = sor.u32 256, 8
        %1208 = vbcast.lane.b32.xlu0 %v1040, %s1207
        %v1209 = vpop.permute.xlu0 %1208
        %s1211 = sor.u32 256, 8
        %1212 = vbcast.lane.b32.xlu0 %v1047, %s1211
        %v1213 = vpop.permute.xlu0 %1212
        %s1215 = sor.u32 256, 8
        %1216 = vbcast.lane.b32.xlu0 %v1054, %s1215
        %v1217 = vpop.permute.xlu0 %1216
        %s1219 = sor.u32 256, 8
        %1220 = vbcast.lane.b32.xlu0 %v1061, %s1219
        %v1221 = vpop.permute.xlu0 %1220
        %s1223 = sor.u32 256, 8
        %1224 = vbcast.lane.b32.xlu0 %v1068, %s1223
        %v1225 = vpop.permute.xlu0 %1224
        %s1227 = sor.u32 256, 8
        %1228 = vbcast.lane.b32.xlu0 %v1075, %s1227
        %v1229 = vpop.permute.xlu0 %1228
        %s1231 = sor.u32 256, 8
        %1232 = vbcast.lane.b32.xlu0 %v1082, %s1231
        %v1233 = vpop.permute.xlu0 %1232
        %v1234 = vmul.f32 %v1186, %v1205
        %v1235 = vmul.f32 %v1188, %v1209
        %v1236 = vmul.f32 %v1190, %v1213
        %v1237 = vmul.f32 %v1192, %v1217
        %v1238 = vmul.f32 %v1194, %v1221
        %v1239 = vmul.f32 %v1196, %v1225
        %v1240 = vmul.f32 %v1198, %v1229
        %v1241 = vmul.f32 %v1200, %v1233
        %v1242 = vsel %vm694, %v1234, 0.0
        %v1243 = vrot.slane %v1242, 4
        %v1244 = vadd.f32 %v1242, %v1243
        %v1245 = vrot.slane %v1244, 2
        %v1246 = vadd.f32 %v1244, %v1245
        %v1247 = vrot.slane %v1246, 1
        %v1248 = vadd.f32 %v1246, %v1247
        %v1249 = vsel %vm694, %v1235, 0.0
        %v1250 = vrot.slane %v1249, 4
        %v1251 = vadd.f32 %v1249, %v1250
        %v1252 = vrot.slane %v1251, 2
        %v1253 = vadd.f32 %v1251, %v1252
        %v1254 = vrot.slane %v1253, 1
        %v1255 = vadd.f32 %v1253, %v1254
        %v1256 = vsel %vm694, %v1236, 0.0
        %v1257 = vrot.slane %v1256, 4
        %v1258 = vadd.f32 %v1256, %v1257
        %v1259 = vrot.slane %v1258, 2
        %v1260 = vadd.f32 %v1258, %v1259
        %v1261 = vrot.slane %v1260, 1
        %v1262 = vadd.f32 %v1260, %v1261
        %v1263 = vsel %vm694, %v1237, 0.0
        %v1264 = vrot.slane %v1263, 4
        %v1265 = vadd.f32 %v1263, %v1264
        %v1266 = vrot.slane %v1265, 2
        %v1267 = vadd.f32 %v1265, %v1266
        %v1268 = vrot.slane %v1267, 1
        %v1269 = vadd.f32 %v1267, %v1268
        %v1270 = vsel %vm694, %v1238, 0.0
        %v1271 = vrot.slane %v1270, 4
        %v1272 = vadd.f32 %v1270, %v1271
        %v1273 = vrot.slane %v1272, 2
        %v1274 = vadd.f32 %v1272, %v1273
        %v1275 = vrot.slane %v1274, 1
        %v1276 = vadd.f32 %v1274, %v1275
        %v1277 = vsel %vm694, %v1239, 0.0
        %v1278 = vrot.slane %v1277, 4
        %v1279 = vadd.f32 %v1277, %v1278
        %v1280 = vrot.slane %v1279, 2
        %v1281 = vadd.f32 %v1279, %v1280
        %v1282 = vrot.slane %v1281, 1
        %v1283 = vadd.f32 %v1281, %v1282
        %v1284 = vsel %vm694, %v1240, 0.0
        %v1285 = vrot.slane %v1284, 4
        %v1286 = vadd.f32 %v1284, %v1285
        %v1287 = vrot.slane %v1286, 2
        %v1288 = vadd.f32 %v1286, %v1287
        %v1289 = vrot.slane %v1288, 1
        %v1290 = vadd.f32 %v1288, %v1289
        %v1291 = vsel %vm694, %v1241, 0.0
        %v1292 = vrot.slane %v1291, 4
        %v1293 = vadd.f32 %v1291, %v1292
        %v1294 = vrot.slane %v1293, 2
        %v1295 = vadd.f32 %v1293, %v1294
        %v1296 = vrot.slane %v1295, 1
        %v1297 = vadd.f32 %v1295, %v1296
        %vm1306 = vcmask 1041409
        %v1307 = vsel %vm1306, %v1255, %v1248
        %vm1308 = vcmask 1042434
        %v1309 = vsel %vm1308, %v1262, %v1307
        %vm1310 = vcmask 1043459
        %v1311 = vsel %vm1310, %v1269, %v1309
        %vm1312 = vcmask 1044484
        %v1313 = vsel %vm1312, %v1276, %v1311
        %vm1314 = vcmask 1045509
        %v1315 = vsel %vm1314, %v1283, %v1313
        %vm1316 = vcmask 1046534
        %v1317 = vsel %vm1316, %v1290, %v1315
        %vm1318 = vcmask 1047559
        %v1319 = vsel %vm1318, %v1297, %v1317
        %1321 = vst.msk [vmem:[#allocation7] sm:$0xff] %vm694, %v1319
        %v1322 = vld [vmem:[#allocation7] sm:$0xff]
        %v1323 = vld [vmem:[#allocation23] sm:$0x1]
        %v1325 = vlaneseq
        %v1326 = vshrl.u32 %v1325, 7
        %v1327 = vsub.s32 0, %v1326
        %v1328 = vrot.slane %v1323, %v1327
        %v1330 = vmul.f32 %v702, %v1328
        %v1331 = vadd.f32 %v1322, %v1330
        %v1332 = vxor.u32 %v635, 2147483648
        %v1333 = vmul.f32 %v1332, 1.442695
        %v1334 = vpow.pop %v1333
        %v1335 = vadd.f32 %v1334, 1.0
        %v1336 = vrcp.pop %v1335
        %v1337 = vmul.f32 1.0, %v1336
        %v1338 = vmul.f32 %v635, %v1337
        %1340 = vrot.lane.b32.xlu0 %v1338, 64
        %v1341 = vpop.permute.xlu0 %1340
        %v1343 = vmul.f32 %v1331, %v1341
        %v1344 = vpack.c.bf16 %v1343, %v1343
        %v1345 = vld [vmem:[#allocation25] sm:$0xf]
        %v1346 = vld [vmem:[#allocation25 + $0x4] sm:$0xf]
        %v1347 = vld [vmem:[#allocation25 + $0x8] sm:$0xf]
        %v1348 = vld [vmem:[#allocation25 + $0xc] sm:$0xf]
        %v1349 = vld [vmem:[#allocation25 + $0x10] sm:$0xf]
        %v1350 = vld [vmem:[#allocation25 + $0x14] sm:$0xf]
        %v1351 = vld [vmem:[#allocation25 + $0x18] sm:$0xf]
        %v1352 = vld [vmem:[#allocation25 + $0x1c] sm:$0xf]
        %v1361 = vunpack.c.l.b16 %v1345
        %v1362 = vunpack.c.l.b16 %v1346
        %v1363 = vunpack.c.l.b16 %v1347
        %v1364 = vunpack.c.l.b16 %v1348
        %v1365 = vunpack.c.l.b16 %v1349
        %v1366 = vunpack.c.l.b16 %v1350
        %v1367 = vunpack.c.l.b16 %v1351
        %v1368 = vunpack.c.l.b16 %v1352
        %v1369 = vpack.c.b16 %v1362, %v1361
        %v1370 = vpack.c.b16 %v1364, %v1363
        %v1371 = vpack.c.b16 %v1366, %v1365
        %v1372 = vpack.c.b16 %v1368, %v1367
        %v1378 = vsel %vm694, %v1344, 0
        %1380 = vmatprep.subr.bf16.mxu0 0
        %1381 = vmatpush1.bf16.msra.mxu0 %v1369
        %1382 = vmatprep.subr.bf16.mxu0 0
        %1383 = vmatpush1.bf16.msra.mxu0 %v1370
        %1384 = vmatprep.subr.bf16.mxu0 0
        %1385 = vmatpush1.bf16.msra.mxu0 %v1371
        %1386 = vmatprep.subr.bf16.mxu0 0
        %1387 = vmatpush1.bf16.msra.mxu0 %v1372
        %1388 = vmatprep.subr.bf16.mxu0 0
        %1389 = vmatpush1.bf16.msra.mxu0 0
        %1390 = vmatprep.subr.bf16.mxu0 0
        %1391 = vmatpush1.bf16.msra.mxu0 0
        %1392 = vmatprep.subr.bf16.mxu0 0
        %1393 = vmatpush1.bf16.msra.mxu0 0
        %1394 = vmatprep.subr.bf16.mxu0 0
        %1395 = vmatpush1.bf16.msra.mxu0 0
        %1396 = vmatprep.subr.bf16.mxu0 0
        %1397 = vmatpush1.bf16.msra.mxu0 0
        %1398 = vmatprep.subr.bf16.mxu0 0
        %1399 = vmatpush1.bf16.msra.mxu0 0
        %1400 = vmatprep.subr.bf16.mxu0 0
        %1401 = vmatpush1.bf16.msra.mxu0 0
        %1402 = vmatprep.subr.bf16.mxu0 0
        %1403 = vmatpush1.bf16.msra.mxu0 0
        %1404 = vmatprep.subr.bf16.mxu0 0
        %1405 = vmatpush1.bf16.msra.mxu0 0
        %1406 = vmatprep.subr.bf16.mxu0 0
        %1407 = vmatpush1.bf16.msra.mxu0 0
        %1408 = vmatprep.subr.bf16.mxu0 0
        %1409 = vmatpush1.bf16.msra.mxu0 0
        %1410 = vmatprep.subr.bf16.mxu0 0
        %1411 = vmatpush1.bf16.msra.mxu0 0
        %1412 = vmatprep.mubr.bf16.mxu0 0
        %1413 = vmatmul.mubr.bf16.gmra.mrb[0].mxu0 %v1378
        %v1414 = vpop.f32.mrb[0].mxu0
        %v1415 = vadd.f32 %v561, %v1414
        %v1416 = vpop.f32.mrb[0].mxu0
        %v1417 = vpop.f32.mrb[0].mxu0
        %v1418 = vpop.f32.mrb[0].mxu0
        %1419 = vdwg.mxu0
        %1420 = vst.msk [vmem:[%s552] sm:$0xff] %vm563, %v1415
        %s1421 = sand.u32 %s293, 1
        %s1422 = scalar_lea.sflag [#allocation10], %s1421
        %s1423 = sand.u32 %s293, 1
        %s1424 = smul.addr %s1423, 8
        %s1425 = scalar_lea.vmem [#allocation26], %s1424
        // Predicated region
        $region113: #{tpu_custom_call.1} parent=63 // pred_check
          %p1426 = pneg %p303
        $region114: #{tpu_custom_call.1} parent=63 // pred_check_branch
          %1428 = sbr.rel (%p1426) target = $region116
        $region115: #{tpu_custom_call.1} parent=63 // pred_region
          %s1430 = ssub.s32 128, 128
          %1431 = vsyncadd %s1422, %s1430
          %s1432 = smul.addr %s37, 2
          %s1433 = sadd.s32 %s38, %s1432
          %s1434 = smul.addr %s1433, 128
          %s1435 = scalar_lea.hbm %s11, %s1434
          %s1437 = sshll.u32 %s1425, 4
          %s1438 = int_to_ptr.vmem [resolvable:$true] %s1437
          %1440 = dma.vmem_to_hbm [thread:$0]  %s1438, 128, %s1435, %s1422
        $region116: #{tpu_custom_call.1} parent=63 // pred_fallthru
          _
      $region64: #{tpu_custom_call.1} parent=5 // pred_fallthru
        _
      %p1441 = scmp.le.s32.totalorder 2, %s28
      // Predicated region
      $region117: #{tpu_custom_call.1} parent=5 // pred_check
        %p1442 = pneg %p1441
      $region118: #{tpu_custom_call.1} parent=5 // pred_check_branch
        %1444 = sbr.rel (%p1442) target = $region120
      $region119: #{tpu_custom_call.1} parent=5 // pred_region
        %s1445 = ssub.s32 %s28, 2
        // Predicated region
        $region121: #{tpu_custom_call.1} parent=119 // pred_check
          %p1446 = pneg %p309
        $region122: #{tpu_custom_call.1} parent=119 // pred_check_branch
          %1448 = sbr.rel (%p1446) target = $region124
        $region123: #{tpu_custom_call.1} parent=119 // pred_region
          %s1449 = sand.u32 %s294, 1
          %s1450 = scalar_lea.sflag [#allocation10], %s1449
          %s1451 = sand.u32 %s294, 1
          %s1452 = smul.addr %s1451, 8
          %s1453 = scalar_lea.vmem [#allocation26], %s1452
          %1454 = dma.done %s1450, 128
        $region124: #{tpu_custom_call.1} parent=119 // pred_fallthru
          _
      $region120: #{tpu_custom_call.1} parent=5 // pred_fallthru
        _
    $region6: #{tpu_custom_call.1} parent=1 // loop_footer
      %s32 = sadd.s32 1, %s28
    $region7: #{tpu_custom_call.1} parent=1 // loop_footer_branch
      %27 = sbr.rel target = $region3
    $region8: #{tpu_custom_call.1} parent=1 // loop_exit
      _
    %1455 = vsyncpa [#allocation9], 1
    %s1456 = scalar_lea.sflag [#allocation9], 1
    %1457 = vsyncpa %s1456, 1
    %1458 = vsyncpa [#allocation12], 1
    %1459 = vsyncpa [#allocation15], 1
    %1460 = vsyncpa [#allocation18], 1
    %1461 = vsyncpa [#allocation21], 1
    %1462 = vsyncpa [#allocation24], 1
    %1463 = vsyncpa [#allocation10], 1
    %s1464 = scalar_lea.sflag [#allocation10], 1
    %1465 = vsyncpa %s1464, 1

// kernel: tpu_custom_call.1
$region0: #{tpu_custom_call.1}
  #allocation0 [shape = 'u32[]', space=smem, size = 0x4, offset = 0x4, fixed_abs, tag = 'smem constant byte address 0x4 - core index']
  #allocation1 [shape = 'u32[144,128]{1,0:T(1,128)}', space=vmem, size = 0x12000, scoped, tag = 'internal scratch']
  #allocation2 [shape = 'f32[8,64]{1,0:T(8,128)}', space=vmem, size = 0x1000, scoped, tag = 'scratch operand']
  #allocation3 [shape = 'f32[8,64]{1,0:T(8,128)}', space=vmem, size = 0x1000, scoped, tag = 'scratch operand']
  #allocation4 [shape = 'f32[8,64]{1,0:T(8,128)}', space=vmem, size = 0x1000, scoped, tag = 'scratch operand']
  #allocation5 [shape = 'f32[8,64]{1,0:T(8,128)}', space=vmem, size = 0x1000, scoped, tag = 'scratch operand']
  #allocation6 [shape = 'f32[8,16]{1,0:T(8,128)}', space=vmem, size = 0x1000, scoped, tag = 'scratch operand']
  #allocation7 [shape = 'f32[8,64]{1,0:T(8,128)}', space=vmem, size = 0x1000, scoped, tag = 'scratch operand']
  %s0 = inlined_call_operand.hbm [shape: f32[2,16,32], index: 0, kind: input, shape index: {}]
  %s1 = inlined_call_operand.hbm [shape: f32[1,32], index: 1, kind: input, shape index: {}]
  %s2 = inlined_call_operand.hbm [shape: bf16[32,128], index: 2, kind: input, shape index: {}]
  %s3 = inlined_call_operand.hbm [shape: f32[4,64], index: 3, kind: input, shape index: {}]
  %s4 = inlined_call_operand.hbm [shape: f32[1,64], index: 4, kind: input, shape index: {}]
  %s5 = inlined_call_operand.hbm [shape: bf16[64,144], index: 5, kind: input, shape index: {}]
  %s6 = inlined_call_operand.hbm [shape: f32[128,64], index: 6, kind: input, shape index: {}]
  %s7 = inlined_call_operand.hbm [shape: f32[1,64], index: 7, kind: input, shape index: {}]
  %s8 = inlined_call_operand.hbm [shape: f32[8,64], index: 8, kind: input, shape index: {}]
  %s9 = inlined_call_operand.hbm [shape: f32[1,64], index: 9, kind: input, shape index: {}]
  %s10 = inlined_call_operand.hbm [shape: bf16[64,32], index: 10, kind: input, shape index: {}]
  %s11 = inlined_call_operand.hbm [shape: f32[2,16,32], index: 11, kind: output, shape index: {}]
  %s12 = sld [smem:[#allocation0]]
  $region125: #{tpu_custom_call.1} parent=0
    _
  %s14 = ssub.s32 1, %s12
  %s15 = scalar_select 0, %s14, %s12
  $region1: #{tpu_custom_call.1} parent=0
    #allocation8 [shape = 'u8[8192]{0}', space=vmem, size = 0x2000, scoped, tag = 'input window, operand 0']
    #allocation9 [shape = 's32[2]{0}', space=sflag, size = 0x8, scoped, tag = 'scoped memory for tpu_custom_call.1']
    #allocation10 [shape = 's32[2]{0}', space=sflag, size = 0x8, scoped, tag = 'scoped memory for tpu_custom_call.1']
    #allocation11 [shape = 'u8[512]{0}', space=vmem, size = 0x400, scoped, tag = 'input window, operand 1, single buffered']
    #allocation12 [shape = 's32[1]{0}', space=sflag, size = 0x4, scoped, tag = 'scoped memory for tpu_custom_call.1']
    #allocation13 [shape = 'u8[8192]{0}', space=vmem, size = 0x2000, scoped, tag = 'input window, operand 2, single buffered']
    #allocation14 [shape = 'u8[2048]{0}', space=vmem, size = 0x800, scoped, tag = 'input window, operand 3, single buffered']
    #allocation15 [shape = 's32[1]{0}', space=sflag, size = 0x4, scoped, tag = 'scoped memory for tpu_custom_call.1']
    #allocation16 [shape = 'u8[512]{0}', space=vmem, size = 0x400, scoped, tag = 'input window, operand 4, single buffered']
    #allocation17 [shape = 'u8[32768]{0}', space=vmem, size = 0x8000, scoped, tag = 'input window, operand 5, single buffered']
    #allocation18 [shape = 's32[1]{0}', space=sflag, size = 0x4, scoped, tag = 'scoped memory for tpu_custom_call.1']
    #allocation19 [shape = 'u8[65536]{0}', space=vmem, size = 0x10000, scoped, tag = 'input window, operand 6, single buffered']
    #allocation20 [shape = 'u8[512]{0}', space=vmem, size = 0x400, scoped, tag = 'input window, operand 7, single buffered']
    #allocation21 [shape = 's32[1]{0}', space=sflag, size = 0x4, scoped, tag = 'scoped memory for tpu_custom_call.1']
    #allocation22 [shape = 'u8[4096]{0}', space=vmem, size = 0x1000, scoped, tag = 'input window, operand 8, single buffered']
    #allocation23 [shape = 'u8[512]{0}', space=vmem, size = 0x400, scoped, tag = 'input window, operand 9, single buffered']
    #allocation24 [shape = 's32[1]{0}', space=sflag, size = 0x4, scoped, tag = 'scoped memory for tpu_custom_call.1']
    #allocation25 [shape = 'u8[16384]{0}', space=vmem, size = 0x4000, scoped, tag = 'input window, operand 10, single buffered']
    #allocation26 [shape = 'u8[8192]{0}', space=vmem, size = 0x2000, scoped, tag = 'output window, operand 0']
    %16 = vsyncpa [#allocation9], 0
    %s17 = scalar_lea.sflag [#allocation9], 1
    %18 = vsyncpa %s17, 0
    %19 = vsyncpa [#allocation12], 0
    %20 = vsyncpa [#allocation15], 0
    %21 = vsyncpa [#allocation18], 0
    %22 = vsyncpa [#allocation21], 0
    %23 = vsyncpa [#allocation24], 0
    %24 = vsyncpa [#allocation10], 0
    %s25 = scalar_lea.sflag [#allocation10], 1
    %26 = vsyncpa %s25, 0
    loop: start=0, step=1, limit=6
    $region2: #{tpu_custom_call.1} parent=1 // loop_pre_header
      _
    $region3: #{tpu_custom_call.1} parent=1 // loop_header
      %s28 = sphi 0, %s32
      %p29 = scmp.ge.s32.totalorder %s28, 6
      %s35 = sphi 0, %s47
      %s36 = sphi 0, %s43
      %s37 = sphi 0, %s35
      %s38 = sphi 0, %s36
      %s39 = sphi 0, %s37
      %s40 = sphi 0, %s38
      %s52 = sphi 0, %s54
      %s55 = sphi 0, %s52
      %s56 = sphi 0, %s55
      %s72 = sphi 0, %s56
      %s76 = sphi 0, %s76
      %s78 = sphi 0, %s76
      %s79 = sphi 0, %s78
      %s93 = sphi 0, %s79
      %s97 = sphi 0, %s97
      %s99 = sphi 0, %s97
      %s100 = sphi 0, %s99
      %s114 = sphi 0, %s100
      %s118 = sphi 0, %s118
      %s120 = sphi 0, %s118
      %s121 = sphi 0, %s120
      %s135 = sphi 0, %s121
      %s139 = sphi 0, %s139
      %s141 = sphi 0, %s139
      %s142 = sphi 0, %s141
      %s156 = sphi 0, %s142
      %s160 = sphi 0, %s160
      %s162 = sphi 0, %s160
      %s163 = sphi 0, %s162
      %s177 = sphi 0, %s163
      %s181 = sphi 0, %s181
      %s183 = sphi 0, %s181
      %s184 = sphi 0, %s183
      %s198 = sphi 0, %s184
      %s202 = sphi 0, %s202
      %s204 = sphi 0, %s202
      %s205 = sphi 0, %s204
      %s219 = sphi 0, %s205
      %s223 = sphi 0, %s223
      %s225 = sphi 0, %s223
      %s226 = sphi 0, %s225
      %s240 = sphi 0, %s226
      %s244 = sphi 0, %s244
      %s246 = sphi 0, %s244
      %s247 = sphi 0, %s246
      %s261 = sphi 0, %s247
      %s265 = sphi 0, %s265
      %s267 = sphi 0, %s265
      %s268 = sphi 0, %s267
      %s282 = sphi 0, %s268
      %s290 = sphi 0, %s292
      %s293 = sphi 0, %s290
      %s294 = sphi 0, %s293
      %s310 = sphi 0, %s294
    $region4: #{tpu_custom_call.1} parent=1 // loop_header_branch
      %31 = sbr.rel (%p29) target = $region8
    $region5: #{tpu_custom_call.1} parent=1 // loop_body
      %s33 = ssub.s32 %s28, 1
      %s34 = ssub.s32 %s28, 2
      %s41 = sadd.s32 1, %s36
      %p42 = scmp.ge.s32.totalorder %s41, 2
      %s43 = scalar_select %p42, 0, %s41
      %s44 = sadd.s32 1, %s35
      %s45 = scalar_select %p42, %s44, %s35
      %p46 = scmp.ge.s32.totalorder %s45, 2
      %s47 = scalar_select %p46, 0, %s45
      %s48 = ssub.s32 %s35, %s47
      %s49 = ssub.s32 %s36, %s43
      %s50 = sor.u32 %s48, %s49
      %p51 = scmp.eq.s32.totalorder %s50, 0
      %s53 = sadd.s32 %s52, 1
      %s54 = scalar_select %p51, %s52, %s53
      %p57 = pneg %p51
      %p58 = scmp.eq.s32.totalorder %s28, 3
      %p59 = por %p57, %p58
      %p60 = scmp.ne.s32.totalorder %s52, %s55
      %p61 = scmp.eq.s32.totalorder %s28, 0
      %p62 = por %p60, %p61
      %p63 = scmp.ne.s32.totalorder %s52, %s55
      %p64 = scmp.eq.s32.totalorder %s33, 3
      %p65 = por %p63, %p64
      %p66 = scmp.ne.s32.totalorder %s55, %s56
      %p67 = scmp.eq.s32.totalorder %s33, 0
      %p68 = por %p66, %p67
      %p69 = scmp.ne.s32.totalorder %s55, %s56
      %p70 = scmp.eq.s32.totalorder %s34, 3
      %p71 = por %p69, %p70
      %p73 = scmp.ne.s32.totalorder %s56, %s72
      %p74 = scmp.eq.s32.totalorder %s34, 0
      %p75 = por %p73, %p74
      %s77 = sadd.s32 %s76, 1
      %p80 = scmp.eq.s32.totalorder %s28, 3
      %p81 = scmp.ne.s32.totalorder %s76, %s78
      %p82 = scmp.eq.s32.totalorder %s28, 0
      %p83 = por %p81, %p82
      %p84 = scmp.ne.s32.totalorder %s76, %s78
      %p85 = scmp.eq.s32.totalorder %s33, 3
      %p86 = por %p84, %p85
      %p87 = scmp.ne.s32.totalorder %s78, %s79
      %p88 = scmp.eq.s32.totalorder %s33, 0
      %p89 = por %p87, %p88
      %p90 = scmp.ne.s32.totalorder %s78, %s79
      %p91 = scmp.eq.s32.totalorder %s34, 3
      %p92 = por %p90, %p91
      %p94 = scmp.ne.s32.totalorder %s79, %s93
      %p95 = scmp.eq.s32.totalorder %s34, 0
      %p96 = por %p94, %p95
      %s98 = sadd.s32 %s97, 1
      %p101 = scmp.eq.s32.totalorder %s28, 3
      %p102 = scmp.ne.s32.totalorder %s97, %s99
      %p103 = scmp.eq.s32.totalorder %s28, 0
      %p104 = por %p102, %p103
      %p105 = scmp.ne.s32.totalorder %s97, %s99
      %p106 = scmp.eq.s32.totalorder %s33, 3
      %p107 = por %p105, %p106
      %p108 = scmp.ne.s32.totalorder %s99, %s100
      %p109 = scmp.eq.s32.totalorder %s33, 0
      %p110 = por %p108, %p109
      %p111 = scmp.ne.s32.totalorder %s99, %s100
      %p112 = scmp.eq.s32.totalorder %s34, 3
      %p113 = por %p111, %p112
      %p115 = scmp.ne.s32.totalorder %s100, %s114
      %p116 = scmp.eq.s32.totalorder %s34, 0
      %p117 = por %p115, %p116
      %s119 = sadd.s32 %s118, 1
      %p122 = scmp.eq.s32.totalorder %s28, 3
      %p123 = scmp.ne.s32.totalorder %s118, %s120
      %p124 = scmp.eq.s32.totalorder %s28, 0
      %p125 = por %p123, %p124
      %p126 = scmp.ne.s32.totalorder %s118, %s120
      %p127 = scmp.eq.s32.totalorder %s33, 3
      %p128 = por %p126, %p127
      %p129 = scmp.ne.s32.totalorder %s120, %s121
      %p130 = scmp.eq.s32.totalorder %s33, 0
      %p131 = por %p129, %p130
      %p132 = scmp.ne.s32.totalorder %s120, %s121
      %p133 = scmp.eq.s32.totalorder %s34, 3
      %p134 = por %p132, %p133
      %p136 = scmp.ne.s32.totalorder %s121, %s135
      %p137 = scmp.eq.s32.totalorder %s34, 0
      %p138 = por %p136, %p137
      %s140 = sadd.s32 %s139, 1
      %p143 = scmp.eq.s32.totalorder %s28, 3
      %p144 = scmp.ne.s32.totalorder %s139, %s141
      %p145 = scmp.eq.s32.totalorder %s28, 0
      %p146 = por %p144, %p145
      %p147 = scmp.ne.s32.totalorder %s139, %s141
      %p148 = scmp.eq.s32.totalorder %s33, 3
      %p149 = por %p147, %p148
      %p150 = scmp.ne.s32.totalorder %s141, %s142
      %p151 = scmp.eq.s32.totalorder %s33, 0
      %p152 = por %p150, %p151
      %p153 = scmp.ne.s32.totalorder %s141, %s142
      %p154 = scmp.eq.s32.totalorder %s34, 3
      %p155 = por %p153, %p154
      %p157 = scmp.ne.s32.totalorder %s142, %s156
      %p158 = scmp.eq.s32.totalorder %s34, 0
      %p159 = por %p157, %p158
      %s161 = sadd.s32 %s160, 1
      %p164 = scmp.eq.s32.totalorder %s28, 3
      %p165 = scmp.ne.s32.totalorder %s160, %s162
      %p166 = scmp.eq.s32.totalorder %s28, 0
      %p167 = por %p165, %p166
      %p168 = scmp.ne.s32.totalorder %s160, %s162
      %p169 = scmp.eq.s32.totalorder %s33, 3
      %p170 = por %p168, %p169
      %p171 = scmp.ne.s32.totalorder %s162, %s163
      %p172 = scmp.eq.s32.totalorder %s33, 0
      %p173 = por %p171, %p172
      %p174 = scmp.ne.s32.totalorder %s162, %s163
      %p175 = scmp.eq.s32.totalorder %s34, 3
      %p176 = por %p174, %p175
      %p178 = scmp.ne.s32.totalorder %s163, %s177
      %p179 = scmp.eq.s32.totalorder %s34, 0
      %p180 = por %p178, %p179
      %s182 = sadd.s32 %s181, 1
      %p185 = scmp.eq.s32.totalorder %s28, 3
      %p186 = scmp.ne.s32.totalorder %s181, %s183
      %p187 = scmp.eq.s32.totalorder %s28, 0
      %p188 = por %p186, %p187
      %p189 = scmp.ne.s32.totalorder %s181, %s183
      %p190 = scmp.eq.s32.totalorder %s33, 3
      %p191 = por %p189, %p190
      %p192 = scmp.ne.s32.totalorder %s183, %s184
      %p193 = scmp.eq.s32.totalorder %s33, 0
      %p194 = por %p192, %p193
      %p195 = scmp.ne.s32.totalorder %s183, %s184
      %p196 = scmp.eq.s32.totalorder %s34, 3
      %p197 = por %p195, %p196
      %p199 = scmp.ne.s32.totalorder %s184, %s198
      %p200 = scmp.eq.s32.totalorder %s34, 0
      %p201 = por %p199, %p200
      %s203 = sadd.s32 %s202, 1
      %p206 = scmp.eq.s32.totalorder %s28, 3
      %p207 = scmp.ne.s32.totalorder %s202, %s204
      %p208 = scmp.eq.s32.totalorder %s28, 0
      %p209 = por %p207, %p208
      %p210 = scmp.ne.s32.totalorder %s202, %s204
      %p211 = scmp.eq.s32.totalorder %s33, 3
      %p212 = por %p210, %p211
      %p213 = scmp.ne.s32.totalorder %s204, %s205
      %p214 = scmp.eq.s32.totalorder %s33, 0
      %p215 = por %p213, %p214
      %p216 = scmp.ne.s32.totalorder %s204, %s205
      %p217 = scmp.eq.s32.totalorder %s34, 3
      %p218 = por %p216, %p217
      %p220 = scmp.ne.s32.totalorder %s205, %s219
      %p221 = scmp.eq.s32.totalorder %s34, 0
      %p222 = por %p220, %p221
      %s224 = sadd.s32 %s223, 1
      %p227 = scmp.eq.s32.totalorder %s28, 3
      %p228 = scmp.ne.s32.totalorder %s223, %s225
      %p229 = scmp.eq.s32.totalorder %s28, 0
      %p230 = por %p228, %p229
      %p231 = scmp.ne.s32.totalorder %s223, %s225
      %p232 = scmp.eq.s32.totalorder %s33, 3
      %p233 = por %p231, %p232
      %p234 = scmp.ne.s32.totalorder %s225, %s226
      %p235 = scmp.eq.s32.totalorder %s33, 0
      %p236 = por %p234, %p235
      %p237 = scmp.ne.s32.totalorder %s225, %s226
      %p238 = scmp.eq.s32.totalorder %s34, 3
      %p239 = por %p237, %p238
      %p241 = scmp.ne.s32.totalorder %s226, %s240
      %p242 = scmp.eq.s32.totalorder %s34, 0
      %p243 = por %p241, %p242
      %s245 = sadd.s32 %s244, 1
      %p248 = scmp.eq.s32.totalorder %s28, 3
      %p249 = scmp.ne.s32.totalorder %s244, %s246
      %p250 = scmp.eq.s32.totalorder %s28, 0
      %p251 = por %p249, %p250
      %p252 = scmp.ne.s32.totalorder %s244, %s246
      %p253 = scmp.eq.s32.totalorder %s33, 3
      %p254 = por %p252, %p253
      %p255 = scmp.ne.s32.totalorder %s246, %s247
      %p256 = scmp.eq.s32.totalorder %s33, 0
      %p257 = por %p255, %p256
      %p258 = scmp.ne.s32.totalorder %s246, %s247
      %p259 = scmp.eq.s32.totalorder %s34, 3
      %p260 = por %p258, %p259
      %p262 = scmp.ne.s32.totalorder %s247, %s261
      %p263 = scmp.eq.s32.totalorder %s34, 0
      %p264 = por %p262, %p263
      %s266 = sadd.s32 %s265, 1
      %p269 = scmp.eq.s32.totalorder %s28, 3
      %p270 = scmp.ne.s32.totalorder %s265, %s267
      %p271 = scmp.eq.s32.totalorder %s28, 0
      %p272 = por %p270, %p271
      %p273 = scmp.ne.s32.totalorder %s265, %s267
      %p274 = scmp.eq.s32.totalorder %s33, 3
      %p275 = por %p273, %p274
      %p276 = scmp.ne.s32.totalorder %s267, %s268
      %p277 = scmp.eq.s32.totalorder %s33, 0
      %p278 = por %p276, %p277
      %p279 = scmp.ne.s32.totalorder %s267, %s268
      %p280 = scmp.eq.s32.totalorder %s34, 3
      %p281 = por %p279, %p280
      %p283 = scmp.ne.s32.totalorder %s268, %s282
      %p284 = scmp.eq.s32.totalorder %s34, 0
      %p285 = por %p283, %p284
      %s286 = ssub.s32 %s35, %s47
      %s287 = ssub.s32 %s36, %s43
      %s288 = sor.u32 %s286, %s287
      %p289 = scmp.eq.s32.totalorder %s288, 0
      %s291 = sadd.s32 %s290, 1
      %s292 = scalar_select %p289, %s290, %s291
      %p295 = pneg %p289
      %p296 = scmp.eq.s32.totalorder %s28, 3
      %p297 = por %p295, %p296
      %p298 = scmp.ne.s32.totalorder %s290, %s293
      %p299 = scmp.eq.s32.totalorder %s28, 0
      %p300 = por %p298, %p299
      %p301 = scmp.ne.s32.totalorder %s290, %s293
      %p302 = scmp.eq.s32.totalorder %s33, 3
      %p303 = por %p301, %p302
      %p304 = scmp.ne.s32.totalorder %s293, %s294
      %p305 = scmp.eq.s32.totalorder %s33, 0
      %p306 = por %p304, %p305
      %p307 = scmp.ne.s32.totalorder %s293, %s294
      %p308 = scmp.eq.s32.totalorder %s34, 3
      %p309 = por %p307, %p308
      %p311 = scmp.ne.s32.totalorder %s294, %s310
      %p312 = scmp.eq.s32.totalorder %s34, 0
      %p313 = por %p311, %p312
      %p314 = scmp.le.s32.totalorder 1, %s28
      %p315 = scmp.lt.s32.totalorder %s28, 5
      %p316 = pnand %p314, %p315
      %p317 = pneg %p316
      // Predicated region
      $region9: #{tpu_custom_call.1} parent=5 // pred_check
        _
      $region10: #{tpu_custom_call.1} parent=5 // pred_check_branch
        %319 = sbr.rel (%p316) target = $region12
      $region11: #{tpu_custom_call.1} parent=5 // pred_region
        %s320 = ssub.s32 %s28, 1
        // Predicated region
        $region13: #{tpu_custom_call.1} parent=11 // pred_check
          %p321 = pneg %p89
        $region14: #{tpu_custom_call.1} parent=11 // pred_check_branch
          %323 = sbr.rel (%p321) target = $region16
        $region15: #{tpu_custom_call.1} parent=11 // pred_region
          %s325 = ssub.s32 16, 16
          %326 = vsyncadd [#allocation12], %s325
          %s328 = sshll.u32 [#allocation11], 4
          %s329 = int_to_ptr.vmem [resolvable:$true] %s328
          %331 = dma.hbm_to_vmem [thread:$0]  %s1, 16, %s329, [#allocation12]
        $region16: #{tpu_custom_call.1} parent=11 // pred_fallthru
          _
        // Predicated region
        $region17: #{tpu_custom_call.1} parent=11 // pred_check
          %p332 = pneg %p110
        $region18: #{tpu_custom_call.1} parent=11 // pred_check_branch
          %334 = sbr.rel (%p332) target = $region20
        $region19: #{tpu_custom_call.1} parent=11 // pred_region
          %s336 = ssub.s32 256, 256
          %337 = vsyncadd [#allocation12], %s336
          %s338 = sshll.u32 [#allocation13], 4
          %s339 = int_to_ptr.vmem [resolvable:$true] %s338
          %344 = dma.hbm_to_vmem [thread:$0]  %s2, 256, %s339, [#allocation12], 64, 64, 4
        $region20: #{tpu_custom_call.1} parent=11 // pred_fallthru
          _
        // Predicated region
        $region21: #{tpu_custom_call.1} parent=11 // pred_check
          %p345 = pneg %p131
        $region22: #{tpu_custom_call.1} parent=11 // pred_check_branch
          %347 = sbr.rel (%p345) target = $region24
        $region23: #{tpu_custom_call.1} parent=11 // pred_region
          %s349 = ssub.s32 64, 64
          %350 = vsyncadd [#allocation15], %s349
          %s352 = sshll.u32 [#allocation14], 4
          %s353 = int_to_ptr.vmem [resolvable:$true] %s352
          %355 = dma.hbm_to_vmem [thread:$0]  %s3, 64, %s353, [#allocation15]
        $region24: #{tpu_custom_call.1} parent=11 // pred_fallthru
          _
        // Predicated region
        $region25: #{tpu_custom_call.1} parent=11 // pred_check
          %p356 = pneg %p152
        $region26: #{tpu_custom_call.1} parent=11 // pred_check_branch
          %358 = sbr.rel (%p356) target = $region28
        $region27: #{tpu_custom_call.1} parent=11 // pred_region
          %s360 = ssub.s32 16, 16
          %361 = vsyncadd [#allocation15], %s360
          %s363 = sshll.u32 [#allocation16], 4
          %s364 = int_to_ptr.vmem [resolvable:$true] %s363
          %366 = dma.hbm_to_vmem [thread:$0]  %s4, 16, %s364, [#allocation15]
        $region28: #{tpu_custom_call.1} parent=11 // pred_fallthru
          _
        // Predicated region
        $region29: #{tpu_custom_call.1} parent=11 // pred_check
          %p367 = pneg %p173
        $region30: #{tpu_custom_call.1} parent=11 // pred_check_branch
          %369 = sbr.rel (%p367) target = $region32
        $region31: #{tpu_custom_call.1} parent=11 // pred_region
          %s371 = ssub.s32 1024, 1024
          %372 = vsyncadd [#allocation18], %s371
          %s373 = sshll.u32 [#allocation17], 4
          %s374 = int_to_ptr.vmem [resolvable:$true] %s373
          %379 = dma.hbm_to_vmem [thread:$0]  %s5, 1024, %s374, [#allocation18], 128, 128, 8
        $region32: #{tpu_custom_call.1} parent=11 // pred_fallthru
          _
        // Predicated region
        $region33: #{tpu_custom_call.1} parent=11 // pred_check
          %p380 = pneg %p194
        $region34: #{tpu_custom_call.1} parent=11 // pred_check_branch
          %382 = sbr.rel (%p380) target = $region36
        $region35: #{tpu_custom_call.1} parent=11 // pred_region
          %s384 = ssub.s32 2048, 2048
          %385 = vsyncadd [#allocation18], %s384
          %s386 = sshll.u32 [#allocation19], 4
          %s387 = int_to_ptr.vmem [resolvable:$true] %s386
          %392 = dma.hbm_to_vmem [thread:$0]  %s6, 2048, %s387, [#allocation18], 128, 128, 8
        $region36: #{tpu_custom_call.1} parent=11 // pred_fallthru
          _
        // Predicated region
        $region37: #{tpu_custom_call.1} parent=11 // pred_check
          %p393 = pneg %p215
        $region38: #{tpu_custom_call.1} parent=11 // pred_check_branch
          %395 = sbr.rel (%p393) target = $region40
        $region39: #{tpu_custom_call.1} parent=11 // pred_region
          %s397 = ssub.s32 16, 16
          %398 = vsyncadd [#allocation21], %s397
          %s400 = sshll.u32 [#allocation20], 4
          %s401 = int_to_ptr.vmem [resolvable:$true] %s400
          %403 = dma.hbm_to_vmem [thread:$0]  %s7, 16, %s401, [#allocation21]
        $region40: #{tpu_custom_call.1} parent=11 // pred_fallthru
          _
        // Predicated region
        $region41: #{tpu_custom_call.1} parent=11 // pred_check
          %p404 = pneg %p236
        $region42: #{tpu_custom_call.1} parent=11 // pred_check_branch
          %406 = sbr.rel (%p404) target = $region44
        $region43: #{tpu_custom_call.1} parent=11 // pred_region
          %s408 = ssub.s32 128, 128
          %409 = vsyncadd [#allocation21], %s408
          %s411 = sshll.u32 [#allocation22], 4
          %s412 = int_to_ptr.vmem [resolvable:$true] %s411
          %414 = dma.hbm_to_vmem [thread:$0]  %s8, 128, %s412, [#allocation21]
        $region44: #{tpu_custom_call.1} parent=11 // pred_fallthru
          _
        // Predicated region
        $region45: #{tpu_custom_call.1} parent=11 // pred_check
          %p415 = pneg %p257
        $region46: #{tpu_custom_call.1} parent=11 // pred_check_branch
          %417 = sbr.rel (%p415) target = $region48
        $region47: #{tpu_custom_call.1} parent=11 // pred_region
          %s419 = ssub.s32 16, 16
          %420 = vsyncadd [#allocation24], %s419
          %s422 = sshll.u32 [#allocation23], 4
          %s423 = int_to_ptr.vmem [resolvable:$true] %s422
          %425 = dma.hbm_to_vmem [thread:$0]  %s9, 16, %s423, [#allocation24]
        $region48: #{tpu_custom_call.1} parent=11 // pred_fallthru
          _
        // Predicated region
        $region49: #{tpu_custom_call.1} parent=11 // pred_check
          %p426 = pneg %p278
        $region50: #{tpu_custom_call.1} parent=11 // pred_check_branch
          %428 = sbr.rel (%p426) target = $region52
        $region51: #{tpu_custom_call.1} parent=11 // pred_region
          %s430 = ssub.s32 512, 512
          %431 = vsyncadd [#allocation24], %s430
          %s432 = sshll.u32 [#allocation25], 4
          %s433 = int_to_ptr.vmem [resolvable:$true] %s432
          %438 = dma.hbm_to_vmem [thread:$0]  %s10, 512, %s433, [#allocation24], 64, 64, 4
        $region52: #{tpu_custom_call.1} parent=11 // pred_fallthru
          _
      $region12: #{tpu_custom_call.1} parent=5 // pred_fallthru
        _
      %p439 = scmp.lt.s32.totalorder %s28, 4
      // Predicated region
      $region53: #{tpu_custom_call.1} parent=5 // pred_check
        %p440 = pneg %p439
      $region54: #{tpu_custom_call.1} parent=5 // pred_check_branch
        %442 = sbr.rel (%p440) target = $region56
      $region55: #{tpu_custom_call.1} parent=5 // pred_region
        // Predicated region
        $region57: #{tpu_custom_call.1} parent=55 // pred_check
          %p443 = pneg %p62
        $region58: #{tpu_custom_call.1} parent=55 // pred_check_branch
          %445 = sbr.rel (%p443) target = $region60
        $region59: #{tpu_custom_call.1} parent=55 // pred_region
          %s446 = sand.u32 %s52, 1
          %s447 = scalar_lea.sflag [#allocation9], %s446
          %s448 = sand.u32 %s52, 1
          %s449 = smul.addr %s448, 8
          %s450 = scalar_lea.vmem [#allocation8], %s449
          %s452 = ssub.s32 128, 128
          %453 = vsyncadd %s447, %s452
          %s454 = smul.addr %s35, 2
          %s455 = sadd.s32 %s36, %s454
          %s456 = smul.addr %s455, 128
          %s457 = scalar_lea.hbm %s0, %s456
          %s459 = sshll.u32 %s450, 4
          %s460 = int_to_ptr.vmem [resolvable:$true] %s459
          %462 = dma.hbm_to_vmem [thread:$0]  %s457, 128, %s460, %s447
        $region60: #{tpu_custom_call.1} parent=55 // pred_fallthru
          _
      $region56: #{tpu_custom_call.1} parent=5 // pred_fallthru
        _
      %p463 = scmp.le.s32.totalorder 1, %s28
      %p464 = scmp.lt.s32.totalorder %s28, 5
      %p465 = pnand %p463, %p464
      %p466 = pneg %p465
      // Predicated region
      $region61: #{tpu_custom_call.1} parent=5 // pred_check
        _
      $region62: #{tpu_custom_call.1} parent=5 // pred_check_branch
        %468 = sbr.rel (%p465) target = $region64
      $region63: #{tpu_custom_call.1} parent=5 // pred_region
        %s469 = ssub.s32 %s28, 1
        %s470 = sand.u32 %s55, 1
        %s471 = scalar_lea.sflag [#allocation9], %s470
        %s472 = sand.u32 %s55, 1
        %s473 = smul.addr %s472, 8
        %s474 = scalar_lea.vmem [#allocation8], %s473
        // Predicated region
        $region65: #{tpu_custom_call.1} parent=63 // pred_check
          %p475 = pneg %p68
        $region66: #{tpu_custom_call.1} parent=63 // pred_check_branch
          %477 = sbr.rel (%p475) target = $region68
        $region67: #{tpu_custom_call.1} parent=63 // pred_region
          %478 = dma.done %s471, 128
        $region68: #{tpu_custom_call.1} parent=63 // pred_fallthru
          _
        // Predicated region
        $region69: #{tpu_custom_call.1} parent=63 // pred_check
          %p479 = pneg %p89
        $region70: #{tpu_custom_call.1} parent=63 // pred_check_branch
          %481 = sbr.rel (%p479) target = $region72
        $region71: #{tpu_custom_call.1} parent=63 // pred_region
          %482 = dma.done [#allocation12], 16
        $region72: #{tpu_custom_call.1} parent=63 // pred_fallthru
          _
        // Predicated region
        $region73: #{tpu_custom_call.1} parent=63 // pred_check
          %p483 = pneg %p110
        $region74: #{tpu_custom_call.1} parent=63 // pred_check_branch
          %485 = sbr.rel (%p483) target = $region76
        $region75: #{tpu_custom_call.1} parent=63 // pred_region
          %486 = dma.done [#allocation12], 256
        $region76: #{tpu_custom_call.1} parent=63 // pred_fallthru
          _
        // Predicated region
        $region77: #{tpu_custom_call.1} parent=63 // pred_check
          %p487 = pneg %p131
        $region78: #{tpu_custom_call.1} parent=63 // pred_check_branch
          %489 = sbr.rel (%p487) target = $region80
        $region79: #{tpu_custom_call.1} parent=63 // pred_region
          %490 = dma.done [#allocation15], 64
        $region80: #{tpu_custom_call.1} parent=63 // pred_fallthru
          _
        // Predicated region
        $region81: #{tpu_custom_call.1} parent=63 // pred_check
          %p491 = pneg %p152
        $region82: #{tpu_custom_call.1} parent=63 // pred_check_branch
          %493 = sbr.rel (%p491) target = $region84
        $region83: #{tpu_custom_call.1} parent=63 // pred_region
          %494 = dma.done [#allocation15], 16
        $region84: #{tpu_custom_call.1} parent=63 // pred_fallthru
          _
        // Predicated region
        $region85: #{tpu_custom_call.1} parent=63 // pred_check
          %p495 = pneg %p173
        $region86: #{tpu_custom_call.1} parent=63 // pred_check_branch
          %497 = sbr.rel (%p495) target = $region88
        $region87: #{tpu_custom_call.1} parent=63 // pred_region
          %498 = dma.done [#allocation18], 1024
        $region88: #{tpu_custom_call.1} parent=63 // pred_fallthru
          _
        // Predicated region
        $region89: #{tpu_custom_call.1} parent=63 // pred_check
          %p499 = pneg %p194
        $region90: #{tpu_custom_call.1} parent=63 // pred_check_branch
          %501 = sbr.rel (%p499) target = $region92
        $region91: #{tpu_custom_call.1} parent=63 // pred_region
          %502 = dma.done [#allocation18], 2048
        $region92: #{tpu_custom_call.1} parent=63 // pred_fallthru
          _
        // Predicated region
        $region93: #{tpu_custom_call.1} parent=63 // pred_check
          %p503 = pneg %p215
        $region94: #{tpu_custom_call.1} parent=63 // pred_check_branch
          %505 = sbr.rel (%p503) target = $region96
        $region95: #{tpu_custom_call.1} parent=63 // pred_region
          %506 = dma.done [#allocation21], 16
        $region96: #{tpu_custom_call.1} parent=63 // pred_fallthru
          _
        // Predicated region
        $region97: #{tpu_custom_call.1} parent=63 // pred_check
          %p507 = pneg %p236
        $region98: #{tpu_custom_call.1} parent=63 // pred_check_branch
          %509 = sbr.rel (%p507) target = $region100
        $region99: #{tpu_custom_call.1} parent=63 // pred_region
          %510 = dma.done [#allocation21], 128
        $region100: #{tpu_custom_call.1} parent=63 // pred_fallthru
          _
        // Predicated region
        $region101: #{tpu_custom_call.1} parent=63 // pred_check
          %p511 = pneg %p257
        $region102: #{tpu_custom_call.1} parent=63 // pred_check_branch
          %513 = sbr.rel (%p511) target = $region104
        $region103: #{tpu_custom_call.1} parent=63 // pred_region
          %514 = dma.done [#allocation24], 16
        $region104: #{tpu_custom_call.1} parent=63 // pred_fallthru
          _
        // Predicated region
        $region105: #{tpu_custom_call.1} parent=63 // pred_check
          %p515 = pneg %p278
        $region106: #{tpu_custom_call.1} parent=63 // pred_check_branch
          %517 = sbr.rel (%p515) target = $region108
        $region107: #{tpu_custom_call.1} parent=63 // pred_region
          %518 = dma.done [#allocation24], 512
        $region108: #{tpu_custom_call.1} parent=63 // pred_fallthru
          _
        %s519 = sand.u32 %s55, 1
        %s520 = scalar_lea.sflag [#allocation9], %s519
        %s521 = sand.u32 %s55, 1
        %s522 = smul.addr %s521, 8
        %s523 = scalar_lea.vmem [#allocation8], %s522
        %p524 = pneg %p68
        %p525 = pneg %p65
        %p526 = pneg %p89
        %p527 = pneg %p86
        %p528 = pneg %p110
        %p529 = pneg %p107
        %p530 = pneg %p131
        %p531 = pneg %p128
        %p532 = pneg %p152
        %p533 = pneg %p149
        %p534 = pneg %p173
        %p535 = pneg %p170
        %p536 = pneg %p194
        %p537 = pneg %p191
        %p538 = pneg %p215
        %p539 = pneg %p212
        %p540 = pneg %p236
        %p541 = pneg %p233
        %p542 = pneg %p257
        %p543 = pneg %p254
        %p544 = pneg %p278
        %p545 = pneg %p275
        %p546 = pneg %p306
        %p547 = pneg %p303
        %s548 = sand.u32 %s293, 1
        %s549 = scalar_lea.sflag [#allocation10], %s548
        %s550 = sand.u32 %s293, 1
        %s551 = smul.addr %s550, 8
        %s552 = scalar_lea.vmem [#allocation26], %s551
        %p554 = scmp.eq.s32.totalorder %s38, 0
        // Predicated region
        $region109: #{tpu_custom_call.1} parent=63 // pred_check
          %p555 = pneg %p554
        $region110: #{tpu_custom_call.1} parent=63 // pred_check_branch
          %557 = sbr.rel (%p555) target = $region112
        $region111: #{tpu_custom_call.1} parent=63 // pred_region
          %vm558 = vcmask 523264
          %559 = vst.msk [vmem:[#allocation2] sm:$0xff] %vm558, 0.0
          %560 = vst.msk [vmem:[#allocation3] sm:$0xff] %vm558, 0.0
        $region112: #{tpu_custom_call.1} parent=63 // pred_fallthru
          _
        %v561 = vld [vmem:[%s474] sm:$0xff]
        %v562 = vmul.f32 %v561, %v561
        %vm563 = vcmask 261120
        %v564 = vsel %vm563, %v562, 0.0
        %565 = vadd.xlane.f32.xlu0 %v564
        %v566 = vpop.xlane.xlu0 %565
        %v567 = vrcp.pop 32.0
        %v568 = vmul.f32 %v566, %v567
        %v569 = vadd.f32 %v568, 1e-05
        %v570 = vrsqrt.pop %v569
        %v571 = vmul.f32 %v561, %v570
        %v572 = vld [vmem:[#allocation11] sm:$0x1]
        %v574 = vlaneseq
        %v575 = vshrl.u32 %v574, 7
        %v576 = vsub.s32 0, %v575
        %v577 = vrot.slane %v572, %v576
        %v579 = vmul.f32 %v571, %v577
        %v580 = vpack.c.bf16 %v579, %v579
        %v581 = vld [vmem:[#allocation13] sm:$0xf]
        %v582 = vld [vmem:[#allocation13 + $0x4] sm:$0xf]
        %v583 = vld [vmem:[#allocation13 + $0x8] sm:$0xf]
        %v584 = vld [vmem:[#allocation13 + $0xc] sm:$0xf]
        %v589 = vunpack.c.l.b16 %v581
        %v590 = vunpack.c.l.b16 %v582
        %v591 = vunpack.c.l.b16 %v583
        %v592 = vunpack.c.l.b16 %v584
        %v593 = vpack.c.b16 %v590, %v589
        %v594 = vpack.c.b16 %v592, %v591
        %v598 = vsel %vm563, %v580, 0
        %600 = vmatprep.subr.bf16.mxu0 0
        %601 = vmatpush1.bf16.msra.mxu0 %v593
        %602 = vmatprep.subr.bf16.mxu0 0
        %603 = vmatpush1.bf16.msra.mxu0 %v594
        %604 = vmatprep.subr.bf16.mxu0 0
        %605 = vmatpush1.bf16.msra.mxu0 0
        %606 = vmatprep.subr.bf16.mxu0 0
        %607 = vmatpush1.bf16.msra.mxu0 0
        %608 = vmatprep.subr.bf16.mxu0 0
        %609 = vmatpush1.bf16.msra.mxu0 0
        %610 = vmatprep.subr.bf16.mxu0 0
        %611 = vmatpush1.bf16.msra.mxu0 0
        %612 = vmatprep.subr.bf16.mxu0 0
        %613 = vmatpush1.bf16.msra.mxu0 0
        %614 = vmatprep.subr.bf16.mxu0 0
        %615 = vmatpush1.bf16.msra.mxu0 0
        %616 = vmatprep.subr.bf16.mxu0 0
        %617 = vmatpush1.bf16.msra.mxu0 0
        %618 = vmatprep.subr.bf16.mxu0 0
        %619 = vmatpush1.bf16.msra.mxu0 0
        %620 = vmatprep.subr.bf16.mxu0 0
        %621 = vmatpush1.bf16.msra.mxu0 0
        %622 = vmatprep.subr.bf16.mxu0 0
        %623 = vmatpush1.bf16.msra.mxu0 0
        %624 = vmatprep.subr.bf16.mxu0 0
        %625 = vmatpush1.bf16.msra.mxu0 0
        %626 = vmatprep.subr.bf16.mxu0 0
        %627 = vmatpush1.bf16.msra.mxu0 0
        %628 = vmatprep.subr.bf16.mxu0 0
        %629 = vmatpush1.bf16.msra.mxu0 0
        %630 = vmatprep.subr.bf16.mxu0 0
        %631 = vmatpush1.bf16.msra.mxu0 0
        %632 = vmatprep.mubr.bf16.mxu0 0
        %633 = vmatmul.mubr.bf16.gmra.mrb[0].mxu0 %v598
        %v634 = vpop.f32.mrb[0].mxu0
        %v635 = vadd.f32 0.0, %v634
        %v636 = vpop.f32.mrb[0].mxu0
        %v637 = vpop.f32.mrb[0].mxu0
        %v638 = vpop.f32.mrb[0].mxu0
        %639 = vdwg.mxu0
        %v640 = vld [vmem:[#allocation16] sm:$0x1]
        %v641 = vld [vmem:[#allocation14 + $0x3] sm:$0x1]
        %v642 = vlaneseq
        %v643 = vshrl.u32 %v642, 7
        %v644 = vsub.s32 0, %v643
        %v645 = vrot.slane %v641, %v644
        %v646 = vmul.f32 %v635, %v645
        %v648 = vlaneseq
        %v649 = vshrl.u32 %v648, 7
        %v650 = vsub.s32 0, %v649
        %v651 = vrot.slane %v640, %v650
        %v653 = vadd.f32 %v651, %v646
        %v654 = vld [vmem:[#allocation3 + $0x5] sm:$0x7]
        %v656 = vrot.slane %v635, 5
        %vm658 = vcmask 1042432
        %v659 = vsel %vm658, %v654, %v656
        %v660 = vld [vmem:[#allocation14] sm:$0x1]
        %v661 = vlaneseq
        %v662 = vshrl.u32 %v661, 7
        %v663 = vsub.s32 0, %v662
        %v664 = vrot.slane %v660, %v663
        %v665 = vmul.f32 %v659, %v664
        %v666 = vadd.f32 %v653, %v665
        %v668 = vrot.slane %v654, 1
        %v670 = vrot.slane %v635, 6
        %vm672 = vcmask 1041408
        %v673 = vsel %vm672, %v668, %v670
        %v674 = vld [vmem:[#allocation14 + $0x1] sm:$0x1]
        %v675 = vlaneseq
        %v676 = vshrl.u32 %v675, 7
        %v677 = vsub.s32 0, %v676
        %v678 = vrot.slane %v674, %v677
        %v679 = vmul.f32 %v673, %v678
        %v680 = vadd.f32 %v666, %v679
        %v681 = vrot.slane %v654, 2
        %v683 = vrot.slane %v635, 7
        %vm685 = vcmask 1040384
        %v686 = vsel %vm685, %v681, %v683
        %v687 = vld [vmem:[#allocation14 + $0x2] sm:$0x1]
        %v688 = vlaneseq
        %v689 = vshrl.u32 %v688, 7
        %v690 = vsub.s32 0, %v689
        %v691 = vrot.slane %v687, %v690
        %v692 = vmul.f32 %v686, %v691
        %v693 = vadd.f32 %v680, %v692
        %vm694 = vcmask 523264
        %695 = vst.msk [vmem:[#allocation3] sm:$0xff] %vm694, %v635
        %v696 = vxor.u32 %v693, 2147483648
        %v697 = vmul.f32 %v696, 1.442695
        %v698 = vpow.pop %v697
        %v699 = vadd.f32 %v698, 1.0
        %v700 = vrcp.pop %v699
        %v701 = vmul.f32 1.0, %v700
        %v702 = vmul.f32 %v693, %v701
        %v703 = vpack.c.bf16 %v702, %v702
        %v704 = vld [vmem:[#allocation17] sm:$0xff]
        %v705 = vld [vmem:[#allocation17 + $0x8] sm:$0xff]
        %v706 = vld [vmem:[#allocation17 + $0x10] sm:$0xff]
        %v707 = vld [vmem:[#allocation17 + $0x18] sm:$0xff]
        %v708 = vld [vmem:[#allocation17 + $0x20] sm:$0xff]
        %v709 = vld [vmem:[#allocation17 + $0x28] sm:$0xff]
        %v710 = vld [vmem:[#allocation17 + $0x30] sm:$0xff]
        %v711 = vld [vmem:[#allocation17 + $0x38] sm:$0xff]
        %v720 = vunpack.c.l.b16 %v704
        %v721 = vunpack.c.h.b16 %v704
        %v722 = vunpack.c.l.b16 %v705
        %v723 = vunpack.c.h.b16 %v705
        %v724 = vunpack.c.l.b16 %v706
        %v725 = vunpack.c.h.b16 %v706
        %v726 = vunpack.c.l.b16 %v707
        %v727 = vunpack.c.h.b16 %v707
        %v728 = vunpack.c.l.b16 %v708
        %v729 = vunpack.c.h.b16 %v708
        %v730 = vunpack.c.l.b16 %v709
        %v731 = vunpack.c.h.b16 %v709
        %v732 = vunpack.c.l.b16 %v710
        %v733 = vunpack.c.h.b16 %v710
        %v734 = vunpack.c.l.b16 %v711
        %v735 = vunpack.c.h.b16 %v711
        %v736 = vpack.c.b16 %v722, %v720
        %v737 = vpack.c.b16 %v723, %v721
        %v738 = vpack.c.b16 %v726, %v724
        %v739 = vpack.c.b16 %v727, %v725
        %v740 = vpack.c.b16 %v730, %v728
        %v741 = vpack.c.b16 %v731, %v729
        %v742 = vpack.c.b16 %v734, %v732
        %v743 = vpack.c.b16 %v735, %v733
        %v753 = vsel %vm694, %v703, 0
        %755 = vmatprep.subr.bf16.mxu0 %v737
        %756 = vmatpush1.bf16.msra.mxu0 %v736
        %757 = vmatprep.subr.bf16.mxu0 %v739
        %758 = vmatpush1.bf16.msra.mxu0 %v738
        %759 = vmatprep.subr.bf16.mxu0 %v741
        %760 = vmatpush1.bf16.msra.mxu0 %v740
        %761 = vmatprep.subr.bf16.mxu0 %v743
        %762 = vmatpush1.bf16.msra.mxu0 %v742
        %763 = vmatprep.subr.bf16.mxu0 0
        %764 = vmatpush1.bf16.msra.mxu0 0
        %765 = vmatprep.subr.bf16.mxu0 0
        %766 = vmatpush1.bf16.msra.mxu0 0
        %767 = vmatprep.subr.bf16.mxu0 0
        %768 = vmatpush1.bf16.msra.mxu0 0
        %769 = vmatprep.subr.bf16.mxu0 0
        %770 = vmatpush1.bf16.msra.mxu0 0
        %771 = vmatprep.subr.bf16.mxu0 0
        %772 = vmatpush1.bf16.msra.mxu0 0
        %773 = vmatprep.subr.bf16.mxu0 0
        %774 = vmatpush1.bf16.msra.mxu0 0
        %775 = vmatprep.subr.bf16.mxu0 0
        %776 = vmatpush1.bf16.msra.mxu0 0
        %777 = vmatprep.subr.bf16.mxu0 0
        %778 = vmatpush1.bf16.msra.mxu0 0
        %779 = vmatprep.subr.bf16.mxu0 0
        %780 = vmatpush1.bf16.msra.mxu0 0
        %781 = vmatprep.subr.bf16.mxu0 0
        %782 = vmatpush1.bf16.msra.mxu0 0
        %783 = vmatprep.subr.bf16.mxu0 0
        %784 = vmatpush1.bf16.msra.mxu0 0
        %785 = vmatprep.subr.bf16.mxu0 0
        %786 = vmatpush1.bf16.msra.mxu0 0
        %787 = vmatprep.mubr.bf16.mxu0 0
        %788 = vmatmul.mubr.bf16.gmra.mrb[0].mxu0 %v753
        %v789 = vpop.f32.mrb[0].mxu0
        %v790 = vadd.f32 0.0, %v789
        %v791 = vpop.f32.mrb[0].mxu0
        %v792 = vadd.f32 0.0, %v791
        %v793 = vpop.f32.mrb[0].mxu0
        %v794 = vpop.f32.mrb[0].mxu0
        %795 = vdwg.mxu0
        %v796 = vld [vmem:[#allocation19] sm:$0xff]
        %v797 = vld [vmem:[#allocation19 + $0x8] sm:$0xff]
        %v798 = vld [vmem:[#allocation19 + $0x10] sm:$0xff]
        %v799 = vld [vmem:[#allocation19 + $0x18] sm:$0xff]
        %v800 = vld [vmem:[#allocation19 + $0x20] sm:$0xff]
        %v801 = vld [vmem:[#allocation19 + $0x28] sm:$0xff]
        %v802 = vld [vmem:[#allocation19 + $0x30] sm:$0xff]
        %v803 = vld [vmem:[#allocation19 + $0x38] sm:$0xff]
        %v804 = vld [vmem:[#allocation19 + $0x40] sm:$0xff]
        %v805 = vld [vmem:[#allocation19 + $0x48] sm:$0xff]
        %v806 = vld [vmem:[#allocation19 + $0x50] sm:$0xff]
        %v807 = vld [vmem:[#allocation19 + $0x58] sm:$0xff]
        %v808 = vld [vmem:[#allocation19 + $0x60] sm:$0xff]
        %v809 = vld [vmem:[#allocation19 + $0x68] sm:$0xff]
        %v810 = vld [vmem:[#allocation19 + $0x70] sm:$0xff]
        %v811 = vld [vmem:[#allocation19 + $0x78] sm:$0xff]
        %v812 = vld [vmem:[#allocation20] sm:$0x1]
        %v814 = vlaneseq
        %v815 = vshrl.u32 %v814, 7
        %v816 = vsub.s32 0, %v815
        %v817 = vrot.slane %v812, %v816
        %819 = vmatprep.subr.mxu0 0.0
        %820 = vmatpush1.msra.mxu0 %v796
        %821 = vmatprep.subr.mxu0 0.0
        %822 = vmatpush1.msra.mxu0 %v797
        %823 = vmatprep.subr.mxu0 0.0
        %824 = vmatpush1.msra.mxu0 %v798
        %825 = vmatprep.subr.mxu0 0.0
        %826 = vmatpush1.msra.mxu0 %v799
        %827 = vmatprep.subr.mxu0 0.0
        %828 = vmatpush1.msra.mxu0 %v800
        %829 = vmatprep.subr.mxu0 0.0
        %830 = vmatpush1.msra.mxu0 %v801
        %831 = vmatprep.subr.mxu0 0.0
        %832 = vmatpush1.msra.mxu0 %v802
        %833 = vmatprep.subr.mxu0 0.0
        %834 = vmatpush1.msra.mxu0 %v803
        %835 = vmatprep.subr.mxu0 0.0
        %836 = vmatpush1.msra.mxu0 %v804
        %837 = vmatprep.subr.mxu0 0.0
        %838 = vmatpush1.msra.mxu0 %v805
        %839 = vmatprep.subr.mxu0 0.0
        %840 = vmatpush1.msra.mxu0 %v806
        %841 = vmatprep.subr.mxu0 0.0
        %842 = vmatpush1.msra.mxu0 %v807
        %843 = vmatprep.subr.mxu0 0.0
        %844 = vmatpush1.msra.mxu0 %v808
        %845 = vmatprep.subr.mxu0 0.0
        %846 = vmatpush1.msra.mxu0 %v809
        %847 = vmatprep.subr.mxu0 0.0
        %848 = vmatpush1.msra.mxu0 %v810
        %849 = vmatprep.subr.mxu0 0.0
        %850 = vmatpush1.msra.mxu0 %v811
        %851 = vmatprep.subr.mxu0 0.0
        %852 = vmatpush1.msra.mxu0 0.0
        %853 = vmatprep.subr.mxu0 0.0
        %854 = vmatpush1.msra.mxu0 0.0
        %855 = vmatprep.subr.mxu0 0.0
        %856 = vmatpush1.msra.mxu0 0.0
        %857 = vmatprep.subr.mxu0 0.0
        %858 = vmatpush1.msra.mxu0 0.0
        %859 = vmatprep.subr.mxu0 0.0
        %860 = vmatpush1.msra.mxu0 0.0
        %861 = vmatprep.subr.mxu0 0.0
        %862 = vmatpush1.msra.mxu0 0.0
        %863 = vmatprep.subr.mxu0 0.0
        %864 = vmatpush1.msra.mxu0 0.0
        %865 = vmatprep.subr.mxu0 0.0
        %866 = vmatpush1.msra.mxu0 0.0
        %867 = vmatprep.subr.mxu0 0.0
        %868 = vmatpush1.msra.mxu0 0.0
        %869 = vmatprep.subr.mxu0 0.0
        %870 = vmatpush1.msra.mxu0 0.0
        %871 = vmatprep.subr.mxu0 0.0
        %872 = vmatpush1.msra.mxu0 0.0
        %873 = vmatprep.subr.mxu0 0.0
        %874 = vmatpush1.msra.mxu0 0.0
        %875 = vmatprep.subr.mxu0 0.0
        %876 = vmatpush1.msra.mxu0 0.0
        %877 = vmatprep.subr.mxu0 0.0
        %878 = vmatpush1.msra.mxu0 0.0
        %879 = vmatprep.subr.mxu0 0.0
        %880 = vmatpush1.msra.mxu0 0.0
        %881 = vmatprep.subr.mxu0 0.0
        %882 = vmatpush1.msra.mxu0 0.0
        %883 = vmatprep.mubr.f32.mxu0 0.0
        %884 = vmatmul.mubr.f32.gmra.mrb[0].mxu0 %v790
        %v885 = vpop.f32.mrb[0].mxu0
        %v886 = vadd.f32 %v817, %v885
        %v887 = vpop.f32.mrb[0].mxu0
        %888 = vdwg.mxu0
        %v889 = vmax.f32 %v886, 0.0
        %vm890 = vcmp.ne.f32.partialorder %v886, %v886
        %v891 = vadd.f32 %v886, 0.0
        %v892 = vand.u32 2147483647, %v886
        %v893 = vsub.f32 0.0, %v892
        %v894 = vmul.f32 %v893, 1.442695
        %v895 = vpow.pop %v894
        %v896 = vadd.f32 %v895, 1.0
        %v897 = vlog2.pop %v896
        %v898 = vmul.f32 %v897, 0.6931472
        %v899 = vmul.f32 -0.5, %v895
        %v900 = vadd.f32 %v899, 1.0
        %v901 = vmul.f32 %v900, %v895
        %v902 = vand.u32 2147483647, %v895
        %vm903 = vcmp.lt.f32.partialorder %v902, 0.0004427343
        %v904 = vsel %vm903, %v901, %v898
        %v905 = vadd.f32 %v889, %v904
        %v906 = vsel %vm890, %v891, %v905
        %907 = vst.msk [vmem:[#allocation4] sm:$0xff] %vm694, %v906
        %v908 = vmul.f32 %v906, %v702
        %909 = vst.msk [vmem:[#allocation5] sm:$0xff] %vm694, %v908
        %vm910 = vcmask 130048
        %911 = vst.msk [vmem:[#allocation6] sm:$0xff] %vm910, %v792
        %v912 = vld [vmem:[#allocation22] sm:$0xff]
        %v913 = vld [vmem:[#allocation4] sm:$0xff]
        %v914 = vld [vmem:[#allocation5] sm:$0xff]
        %v915 = vld [vmem:[#allocation6] sm:$0xff]
        %v917 = vcombine.high %v913, %v913
        %v919 = vunpack.c.l.s4 1966171168
        %v920 = vunpack.c.0.s8 %v919
        %v921 = vlaneseq
        %v922 = vshrl.u32 %v921, 7
        %v923 = vsub.s32 %v920, %v922
        %v924 = vrot.slane %v913, %v923
        %v926 = vunpack.c.l.s4 1966171168
        %v927 = vunpack.c.0.s8 %v926
        %v928 = vlaneseq
        %v929 = vshrl.u32 %v928, 7
        %v930 = vsub.s32 %v927, %v929
        %v931 = vrot.slane %v917, %v930
        %v932 = vcombine.high %v924, %v924
        %v933 = vcombine.high %v931, %v931
        %v935 = vunpack.c.l.s4 1966171168
        %v936 = vunpack.c.0.s8 %v935
        %v937 = vlaneseq
        %v938 = vshrl.u32 %v937, 7
        %v939 = vsub.s32 %v936, %v938
        %v940 = vrot.slane %v924, %v939
        %v942 = vunpack.c.l.s4 1966171168
        %v943 = vunpack.c.0.s8 %v942
        %v944 = vlaneseq
        %v945 = vshrl.u32 %v944, 7
        %v946 = vsub.s32 %v943, %v945
        %v947 = vrot.slane %v931, %v946
        %v949 = vunpack.c.l.s4 1966171168
        %v950 = vunpack.c.0.s8 %v949
        %v951 = vlaneseq
        %v952 = vshrl.u32 %v951, 7
        %v953 = vsub.s32 %v950, %v952
        %v954 = vrot.slane %v932, %v953
        %v956 = vunpack.c.l.s4 1966171168
        %v957 = vunpack.c.0.s8 %v956
        %v958 = vlaneseq
        %v959 = vshrl.u32 %v958, 7
        %v960 = vsub.s32 %v957, %v959
        %v961 = vrot.slane %v933, %v960
        %v962 = vcombine.high %v940, %v940
        %v963 = vcombine.high %v947, %v947
        %v964 = vcombine.high %v954, %v954
        %v965 = vcombine.high %v961, %v961
        %v966 = vlaneseq
        %v967 = vshrl.u32 %v966, 7
        %v968 = vsub.s32 0, %v967
        %v969 = vrot.slane %v940, %v968
        %v970 = vlaneseq
        %v971 = vshrl.u32 %v970, 7
        %v972 = vsub.s32 0, %v971
        %v973 = vrot.slane %v954, %v972
        %v974 = vlaneseq
        %v975 = vshrl.u32 %v974, 7
        %v976 = vsub.s32 0, %v975
        %v977 = vrot.slane %v962, %v976
        %v978 = vlaneseq
        %v979 = vshrl.u32 %v978, 7
        %v980 = vsub.s32 0, %v979
        %v981 = vrot.slane %v964, %v980
        %v982 = vlaneseq
        %v983 = vshrl.u32 %v982, 7
        %v984 = vsub.s32 0, %v983
        %v985 = vrot.slane %v947, %v984
        %v986 = vlaneseq
        %v987 = vshrl.u32 %v986, 7
        %v988 = vsub.s32 0, %v987
        %v989 = vrot.slane %v961, %v988
        %v990 = vlaneseq
        %v991 = vshrl.u32 %v990, 7
        %v992 = vsub.s32 0, %v991
        %v993 = vrot.slane %v963, %v992
        %v994 = vlaneseq
        %v995 = vshrl.u32 %v994, 7
        %v996 = vsub.s32 0, %v995
        %v997 = vrot.slane %v965, %v996
        %v1006 = vmul.f32 %v969, %v912
        %v1007 = vmul.f32 %v973, %v912
        %v1008 = vmul.f32 %v977, %v912
        %v1009 = vmul.f32 %v981, %v912
        %v1010 = vmul.f32 %v985, %v912
        %v1011 = vmul.f32 %v989, %v912
        %v1012 = vmul.f32 %v993, %v912
        %v1013 = vmul.f32 %v997, %v912
        %v1014 = vmul.f32 %v1006, 1.442695
        %v1015 = vpow.pop %v1014
        %v1016 = vmul.f32 %v1007, 1.442695
        %v1017 = vpow.pop %v1016
        %v1018 = vmul.f32 %v1008, 1.442695
        %v1019 = vpow.pop %v1018
        %v1020 = vmul.f32 %v1009, 1.442695
        %v1021 = vpow.pop %v1020
        %v1022 = vmul.f32 %v1010, 1.442695
        %v1023 = vpow.pop %v1022
        %v1024 = vmul.f32 %v1011, 1.442695
        %v1025 = vpow.pop %v1024
        %v1026 = vmul.f32 %v1012, 1.442695
        %v1027 = vpow.pop %v1026
        %v1028 = vmul.f32 %v1013, 1.442695
        %v1029 = vpow.pop %v1028
        %v1030 = vlaneseq
        %v1031 = vshrl.u32 %v1030, 7
        %v1032 = vsub.s32 0, %v1031
        %v1033 = vrot.slane %v915, %v1032
        %1035 = vbcast.lane.b32.xlu0 %v1033, 256
        %v1036 = vpop.permute.xlu0 %1035
        %v1037 = vlaneseq
        %v1038 = vshrl.u32 %v1037, 7
        %v1039 = vsub.s32 1, %v1038
        %v1040 = vrot.slane %v915, %v1039
        %1042 = vbcast.lane.b32.xlu0 %v1040, 256
        %v1043 = vpop.permute.xlu0 %1042
        %v1044 = vlaneseq
        %v1045 = vshrl.u32 %v1044, 7
        %v1046 = vsub.s32 2, %v1045
        %v1047 = vrot.slane %v915, %v1046
        %1049 = vbcast.lane.b32.xlu0 %v1047, 256
        %v1050 = vpop.permute.xlu0 %1049
        %v1051 = vlaneseq
        %v1052 = vshrl.u32 %v1051, 7
        %v1053 = vsub.s32 3, %v1052
        %v1054 = vrot.slane %v915, %v1053
        %1056 = vbcast.lane.b32.xlu0 %v1054, 256
        %v1057 = vpop.permute.xlu0 %1056
        %v1058 = vlaneseq
        %v1059 = vshrl.u32 %v1058, 7
        %v1060 = vsub.s32 4, %v1059
        %v1061 = vrot.slane %v915, %v1060
        %1063 = vbcast.lane.b32.xlu0 %v1061, 256
        %v1064 = vpop.permute.xlu0 %1063
        %v1065 = vlaneseq
        %v1066 = vshrl.u32 %v1065, 7
        %v1067 = vsub.s32 5, %v1066
        %v1068 = vrot.slane %v915, %v1067
        %1070 = vbcast.lane.b32.xlu0 %v1068, 256
        %v1071 = vpop.permute.xlu0 %1070
        %v1072 = vlaneseq
        %v1073 = vshrl.u32 %v1072, 7
        %v1074 = vsub.s32 6, %v1073
        %v1075 = vrot.slane %v915, %v1074
        %1077 = vbcast.lane.b32.xlu0 %v1075, 256
        %v1078 = vpop.permute.xlu0 %1077
        %v1079 = vlaneseq
        %v1080 = vshrl.u32 %v1079, 7
        %v1081 = vsub.s32 7, %v1080
        %v1082 = vrot.slane %v915, %v1081
        %1084 = vbcast.lane.b32.xlu0 %v1082, 256
        %v1085 = vpop.permute.xlu0 %1084
        %v1087 = vcombine.high %v914, %v914
        %v1089 = vunpack.c.l.s4 1966171168
        %v1090 = vunpack.c.0.s8 %v1089
        %v1091 = vlaneseq
        %v1092 = vshrl.u32 %v1091, 7
        %v1093 = vsub.s32 %v1090, %v1092
        %v1094 = vrot.slane %v914, %v1093
        %v1096 = vunpack.c.l.s4 1966171168
        %v1097 = vunpack.c.0.s8 %v1096
        %v1098 = vlaneseq
        %v1099 = vshrl.u32 %v1098, 7
        %v1100 = vsub.s32 %v1097, %v1099
        %v1101 = vrot.slane %v1087, %v1100
        %v1102 = vcombine.high %v1094, %v1094
        %v1103 = vcombine.high %v1101, %v1101
        %v1105 = vunpack.c.l.s4 1966171168
        %v1106 = vunpack.c.0.s8 %v1105
        %v1107 = vlaneseq
        %v1108 = vshrl.u32 %v1107, 7
        %v1109 = vsub.s32 %v1106, %v1108
        %v1110 = vrot.slane %v1094, %v1109
        %v1112 = vunpack.c.l.s4 1966171168
        %v1113 = vunpack.c.0.s8 %v1112
        %v1114 = vlaneseq
        %v1115 = vshrl.u32 %v1114, 7
        %v1116 = vsub.s32 %v1113, %v1115
        %v1117 = vrot.slane %v1101, %v1116
        %v1119 = vunpack.c.l.s4 1966171168
        %v1120 = vunpack.c.0.s8 %v1119
        %v1121 = vlaneseq
        %v1122 = vshrl.u32 %v1121, 7
        %v1123 = vsub.s32 %v1120, %v1122
        %v1124 = vrot.slane %v1102, %v1123
        %v1126 = vunpack.c.l.s4 1966171168
        %v1127 = vunpack.c.0.s8 %v1126
        %v1128 = vlaneseq
        %v1129 = vshrl.u32 %v1128, 7
        %v1130 = vsub.s32 %v1127, %v1129
        %v1131 = vrot.slane %v1103, %v1130
        %v1132 = vcombine.high %v1110, %v1110
        %v1133 = vcombine.high %v1117, %v1117
        %v1134 = vcombine.high %v1124, %v1124
        %v1135 = vcombine.high %v1131, %v1131
        %v1136 = vlaneseq
        %v1137 = vshrl.u32 %v1136, 7
        %v1138 = vsub.s32 0, %v1137
        %v1139 = vrot.slane %v1110, %v1138
        %v1140 = vlaneseq
        %v1141 = vshrl.u32 %v1140, 7
        %v1142 = vsub.s32 0, %v1141
        %v1143 = vrot.slane %v1124, %v1142
        %v1144 = vlaneseq
        %v1145 = vshrl.u32 %v1144, 7
        %v1146 = vsub.s32 0, %v1145
        %v1147 = vrot.slane %v1132, %v1146
        %v1148 = vlaneseq
        %v1149 = vshrl.u32 %v1148, 7
        %v1150 = vsub.s32 0, %v1149
        %v1151 = vrot.slane %v1134, %v1150
        %v1152 = vlaneseq
        %v1153 = vshrl.u32 %v1152, 7
        %v1154 = vsub.s32 0, %v1153
        %v1155 = vrot.slane %v1117, %v1154
        %v1156 = vlaneseq
        %v1157 = vshrl.u32 %v1156, 7
        %v1158 = vsub.s32 0, %v1157
        %v1159 = vrot.slane %v1131, %v1158
        %v1160 = vlaneseq
        %v1161 = vshrl.u32 %v1160, 7
        %v1162 = vsub.s32 0, %v1161
        %v1163 = vrot.slane %v1133, %v1162
        %v1164 = vlaneseq
        %v1165 = vshrl.u32 %v1164, 7
        %v1166 = vsub.s32 0, %v1165
        %v1167 = vrot.slane %v1135, %v1166
        %v1176 = vmul.f32 %v1036, %v1139
        %v1177 = vmul.f32 %v1043, %v1143
        %v1178 = vmul.f32 %v1050, %v1147
        %v1179 = vmul.f32 %v1057, %v1151
        %v1180 = vmul.f32 %v1064, %v1155
        %v1181 = vmul.f32 %v1071, %v1159
        %v1182 = vmul.f32 %v1078, %v1163
        %v1183 = vmul.f32 %v1085, %v1167
        %v1184 = vld [vmem:[#allocation2] sm:$0xff]
        %v1185 = vmul.f32 %v1015, %v1184
        %v1186 = vadd.f32 %v1185, %v1176
        %v1187 = vmul.f32 %v1017, %v1186
        %v1188 = vadd.f32 %v1187, %v1177
        %v1189 = vmul.f32 %v1019, %v1188
        %v1190 = vadd.f32 %v1189, %v1178
        %v1191 = vmul.f32 %v1021, %v1190
        %v1192 = vadd.f32 %v1191, %v1179
        %v1193 = vmul.f32 %v1023, %v1192
        %v1194 = vadd.f32 %v1193, %v1180
        %v1195 = vmul.f32 %v1025, %v1194
        %v1196 = vadd.f32 %v1195, %v1181
        %v1197 = vmul.f32 %v1027, %v1196
        %v1198 = vadd.f32 %v1197, %v1182
        %v1199 = vmul.f32 %v1029, %v1198
        %v1200 = vadd.f32 %v1199, %v1183
        %1201 = vst.msk [vmem:[#allocation2] sm:$0xff] %vm694, %v1200
        %s1203 = sor.u32 256, 8
        %1204 = vbcast.lane.b32.xlu0 %v1033, %s1203
        %v1205 = vpop.permute.xlu0 %1204
        %s1207 = sor.u32 256, 8
        %1208 = vbcast.lane.b32.xlu0 %v1040, %s1207
        %v1209 = vpop.permute.xlu0 %1208
        %s1211 = sor.u32 256, 8
        %1212 = vbcast.lane.b32.xlu0 %v1047, %s1211
        %v1213 = vpop.permute.xlu0 %1212
        %s1215 = sor.u32 256, 8
        %1216 = vbcast.lane.b32.xlu0 %v1054, %s1215
        %v1217 = vpop.permute.xlu0 %1216
        %s1219 = sor.u32 256, 8
        %1220 = vbcast.lane.b32.xlu0 %v1061, %s1219
        %v1221 = vpop.permute.xlu0 %1220
        %s1223 = sor.u32 256, 8
        %1224 = vbcast.lane.b32.xlu0 %v1068, %s1223
        %v1225 = vpop.permute.xlu0 %1224
        %s1227 = sor.u32 256, 8
        %1228 = vbcast.lane.b32.xlu0 %v1075, %s1227
        %v1229 = vpop.permute.xlu0 %1228
        %s1231 = sor.u32 256, 8
        %1232 = vbcast.lane.b32.xlu0 %v1082, %s1231
        %v1233 = vpop.permute.xlu0 %1232
        %v1234 = vmul.f32 %v1186, %v1205
        %v1235 = vmul.f32 %v1188, %v1209
        %v1236 = vmul.f32 %v1190, %v1213
        %v1237 = vmul.f32 %v1192, %v1217
        %v1238 = vmul.f32 %v1194, %v1221
        %v1239 = vmul.f32 %v1196, %v1225
        %v1240 = vmul.f32 %v1198, %v1229
        %v1241 = vmul.f32 %v1200, %v1233
        %v1242 = vsel %vm694, %v1234, 0.0
        %v1243 = vrot.slane %v1242, 4
        %v1244 = vadd.f32 %v1242, %v1243
        %v1245 = vrot.slane %v1244, 2
        %v1246 = vadd.f32 %v1244, %v1245
        %v1247 = vrot.slane %v1246, 1
        %v1248 = vadd.f32 %v1246, %v1247
        %v1249 = vsel %vm694, %v1235, 0.0
        %v1250 = vrot.slane %v1249, 4
        %v1251 = vadd.f32 %v1249, %v1250
        %v1252 = vrot.slane %v1251, 2
        %v1253 = vadd.f32 %v1251, %v1252
        %v1254 = vrot.slane %v1253, 1
        %v1255 = vadd.f32 %v1253, %v1254
        %v1256 = vsel %vm694, %v1236, 0.0
        %v1257 = vrot.slane %v1256, 4
        %v1258 = vadd.f32 %v1256, %v1257
        %v1259 = vrot.slane %v1258, 2
        %v1260 = vadd.f32 %v1258, %v1259
        %v1261 = vrot.slane %v1260, 1
        %v1262 = vadd.f32 %v1260, %v1261
        %v1263 = vsel %vm694, %v1237, 0.0
        %v1264 = vrot.slane %v1263, 4
        %v1265 = vadd.f32 %v1263, %v1264
        %v1266 = vrot.slane %v1265, 2
        %v1267 = vadd.f32 %v1265, %v1266
        %v1268 = vrot.slane %v1267, 1
        %v1269 = vadd.f32 %v1267, %v1268
        %v1270 = vsel %vm694, %v1238, 0.0
        %v1271 = vrot.slane %v1270, 4
        %v1272 = vadd.f32 %v1270, %v1271
        %v1273 = vrot.slane %v1272, 2
        %v1274 = vadd.f32 %v1272, %v1273
        %v1275 = vrot.slane %v1274, 1
        %v1276 = vadd.f32 %v1274, %v1275
        %v1277 = vsel %vm694, %v1239, 0.0
        %v1278 = vrot.slane %v1277, 4
        %v1279 = vadd.f32 %v1277, %v1278
        %v1280 = vrot.slane %v1279, 2
        %v1281 = vadd.f32 %v1279, %v1280
        %v1282 = vrot.slane %v1281, 1
        %v1283 = vadd.f32 %v1281, %v1282
        %v1284 = vsel %vm694, %v1240, 0.0
        %v1285 = vrot.slane %v1284, 4
        %v1286 = vadd.f32 %v1284, %v1285
        %v1287 = vrot.slane %v1286, 2
        %v1288 = vadd.f32 %v1286, %v1287
        %v1289 = vrot.slane %v1288, 1
        %v1290 = vadd.f32 %v1288, %v1289
        %v1291 = vsel %vm694, %v1241, 0.0
        %v1292 = vrot.slane %v1291, 4
        %v1293 = vadd.f32 %v1291, %v1292
        %v1294 = vrot.slane %v1293, 2
        %v1295 = vadd.f32 %v1293, %v1294
        %v1296 = vrot.slane %v1295, 1
        %v1297 = vadd.f32 %v1295, %v1296
        %vm1306 = vcmask 1041409
        %v1307 = vsel %vm1306, %v1255, %v1248
        %vm1308 = vcmask 1042434
        %v1309 = vsel %vm1308, %v1262, %v1307
        %vm1310 = vcmask 1043459
        %v1311 = vsel %vm1310, %v1269, %v1309
        %vm1312 = vcmask 1044484
        %v1313 = vsel %vm1312, %v1276, %v1311
        %vm1314 = vcmask 1045509
        %v1315 = vsel %vm1314, %v1283, %v1313
        %vm1316 = vcmask 1046534
        %v1317 = vsel %vm1316, %v1290, %v1315
        %vm1318 = vcmask 1047559
        %v1319 = vsel %vm1318, %v1297, %v1317
        %1321 = vst.msk [vmem:[#allocation7] sm:$0xff] %vm694, %v1319
        %v1322 = vld [vmem:[#allocation7] sm:$0xff]
        %v1323 = vld [vmem:[#allocation23] sm:$0x1]
        %v1325 = vlaneseq
        %v1326 = vshrl.u32 %v1325, 7
        %v1327 = vsub.s32 0, %v1326
        %v1328 = vrot.slane %v1323, %v1327
        %v1330 = vmul.f32 %v702, %v1328
        %v1331 = vadd.f32 %v1322, %v1330
        %v1332 = vxor.u32 %v635, 2147483648
        %v1333 = vmul.f32 %v1332, 1.442695
        %v1334 = vpow.pop %v1333
        %v1335 = vadd.f32 %v1334, 1.0
        %v1336 = vrcp.pop %v1335
        %v1337 = vmul.f32 1.0, %v1336
        %v1338 = vmul.f32 %v635, %v1337
        %1340 = vrot.lane.b32.xlu0 %v1338, 64
        %v1341 = vpop.permute.xlu0 %1340
        %v1343 = vmul.f32 %v1331, %v1341
        %v1344 = vpack.c.bf16 %v1343, %v1343
        %v1345 = vld [vmem:[#allocation25] sm:$0xf]
        %v1346 = vld [vmem:[#allocation25 + $0x4] sm:$0xf]
        %v1347 = vld [vmem:[#allocation25 + $0x8] sm:$0xf]
        %v1348 = vld [vmem:[#allocation25 + $0xc] sm:$0xf]
        %v1349 = vld [vmem:[#allocation25 + $0x10] sm:$0xf]
        %v1350 = vld [vmem:[#allocation25 + $0x14] sm:$0xf]
        %v1351 = vld [vmem:[#allocation25 + $0x18] sm:$0xf]
        %v1352 = vld [vmem:[#allocation25 + $0x1c] sm:$0xf]
        %v1361 = vunpack.c.l.b16 %v1345
        %v1362 = vunpack.c.l.b16 %v1346
        %v1363 = vunpack.c.l.b16 %v1347
        %v1364 = vunpack.c.l.b16 %v1348
        %v1365 = vunpack.c.l.b16 %v1349
        %v1366 = vunpack.c.l.b16 %v1350
        %v1367 = vunpack.c.l.b16 %v1351
        %v1368 = vunpack.c.l.b16 %v1352
        %v1369 = vpack.c.b16 %v1362, %v1361
        %v1370 = vpack.c.b16 %v1364, %v1363
        %v1371 = vpack.c.b16 %v1366, %v1365
        %v1372 = vpack.c.b16 %v1368, %v1367
        %v1378 = vsel %vm694, %v1344, 0
        %1380 = vmatprep.subr.bf16.mxu0 0
        %1381 = vmatpush1.bf16.msra.mxu0 %v1369
        %1382 = vmatprep.subr.bf16.mxu0 0
        %1383 = vmatpush1.bf16.msra.mxu0 %v1370
        %1384 = vmatprep.subr.bf16.mxu0 0
        %1385 = vmatpush1.bf16.msra.mxu0 %v1371
        %1386 = vmatprep.subr.bf16.mxu0 0
        %1387 = vmatpush1.bf16.msra.mxu0 %v1372
        %1388 = vmatprep.subr.bf16.mxu0 0
        %1389 = vmatpush1.bf16.msra.mxu0 0
        %1390 = vmatprep.subr.bf16.mxu0 0
        %1391 = vmatpush1.bf16.msra.mxu0 0
        %1392 = vmatprep.subr.bf16.mxu0 0
        %1393 = vmatpush1.bf16.msra.mxu0 0
        %1394 = vmatprep.subr.bf16.mxu0 0
        %1395 = vmatpush1.bf16.msra.mxu0 0
        %1396 = vmatprep.subr.bf16.mxu0 0
        %1397 = vmatpush1.bf16.msra.mxu0 0
        %1398 = vmatprep.subr.bf16.mxu0 0
        %1399 = vmatpush1.bf16.msra.mxu0 0
        %1400 = vmatprep.subr.bf16.mxu0 0
        %1401 = vmatpush1.bf16.msra.mxu0 0
        %1402 = vmatprep.subr.bf16.mxu0 0
        %1403 = vmatpush1.bf16.msra.mxu0 0
        %1404 = vmatprep.subr.bf16.mxu0 0
        %1405 = vmatpush1.bf16.msra.mxu0 0
        %1406 = vmatprep.subr.bf16.mxu0 0
        %1407 = vmatpush1.bf16.msra.mxu0 0
        %1408 = vmatprep.subr.bf16.mxu0 0
        %1409 = vmatpush1.bf16.msra.mxu0 0
        %1410 = vmatprep.subr.bf16.mxu0 0
        %1411 = vmatpush1.bf16.msra.mxu0 0
        %1412 = vmatprep.mubr.bf16.mxu0 0
        %1413 = vmatmul.mubr.bf16.gmra.mrb[0].mxu0 %v1378
        %v1414 = vpop.f32.mrb[0].mxu0
        %v1415 = vadd.f32 %v561, %v1414
        %v1416 = vpop.f32.mrb[0].mxu0
        %v1417 = vpop.f32.mrb[0].mxu0
        %v1418 = vpop.f32.mrb[0].mxu0
        %1419 = vdwg.mxu0
        %1420 = vst.msk [vmem:[%s552] sm:$0xff] %vm563, %v1415
        %s1421 = sand.u32 %s293, 1
        %s1422 = scalar_lea.sflag [#allocation10], %s1421
        %s1423 = sand.u32 %s293, 1
        %s1424 = smul.addr %s1423, 8
        %s1425 = scalar_lea.vmem [#allocation26], %s1424
        // Predicated region
        $region113: #{tpu_custom_call.1} parent=63 // pred_check
          %p1426 = pneg %p303
        $region114: #{tpu_custom_call.1} parent=63 // pred_check_branch
          %1428 = sbr.rel (%p1426) target = $region116
        $region115: #{tpu_custom_call.1} parent=63 // pred_region
          %s1430 = ssub.s32 128, 128
          %1431 = vsyncadd %s1422, %s1430
          %s1432 = smul.addr %s37, 2
          %s1433 = sadd.s32 %s38, %s1432
          %s1434 = smul.addr %s1433, 128
          %s1435 = scalar_lea.hbm %s11, %s1434
          %s1437 = sshll.u32 %s1425, 4
          %s1438 = int_to_ptr.vmem [resolvable:$true] %s1437
          %1440 = dma.vmem_to_hbm [thread:$0]  %s1438, 128, %s1435, %s1422
        $region116: #{tpu_custom_call.1} parent=63 // pred_fallthru
          _
      $region64: #{tpu_custom_call.1} parent=5 // pred_fallthru
        _
      %p1441 = scmp.le.s32.totalorder 2, %s28
      // Predicated region
      $region117: #{tpu_custom_call.1} parent=5 // pred_check
        %p1442 = pneg %p1441
      $region118: #{tpu_custom_call.1} parent=5 // pred_check_branch
        %1444 = sbr.rel (%p1442) target = $region120
      $region119: #{tpu_custom_call.1} parent=5 // pred_region
        %s1445 = ssub.s32 %s28, 2
        // Predicated region
        $region121: #{tpu_custom_call.1} parent=119 // pred_check
          %p1446 = pneg %p309
        $region122: #{tpu_custom_call.1} parent=119 // pred_check_branch
          %1448 = sbr.rel (%p1446) target = $region124
        $region123: #{tpu_custom_call.1} parent=119 // pred_region
          %s1449 = sand.u32 %s294, 1
          %s1450 = scalar_lea.sflag [#allocation10], %s1449
          %s1451 = sand.u32 %s294, 1
          %s1452 = smul.addr %s1451, 8
          %s1453 = scalar_lea.vmem [#allocation26], %s1452
          %1454 = dma.done %s1450, 128
        $region124: #{tpu_custom_call.1} parent=119 // pred_fallthru
          _
      $region120: #{tpu_custom_call.1} parent=5 // pred_fallthru
        _
    $region6: #{tpu_custom_call.1} parent=1 // loop_footer
      %s32 = sadd.s32 1, %s28
    $region7: #{tpu_custom_call.1} parent=1 // loop_footer_branch
      %27 = sbr.rel target = $region3
    $region8: #{tpu_custom_call.1} parent=1 // loop_exit
      _
    %1455 = vsyncpa [#allocation9], 1
    %s1456 = scalar_lea.sflag [#allocation9], 1
    %1457 = vsyncpa %s1456, 1
    %1458 = vsyncpa [#allocation12], 1
    %1459 = vsyncpa [#allocation15], 1
    %1460 = vsyncpa [#allocation18], 1
    %1461 = vsyncpa [#allocation21], 1
    %1462 = vsyncpa [#allocation24], 1
    %1463 = vsyncpa [#allocation10], 1
    %s1464 = scalar_lea.sflag [#allocation10], 1
    %1465 = vsyncpa %s1464, 1

</llo_original>
